<compile_context>
chip_gen: v5e
topology: v5e:2x2
jax: 0.10.0
libtpu: 0.0.40
codegen_flags: <defaults>
</compile_context>

<pallas_src>
import functools

import jax
import jax.numpy as jnp
from jax.experimental import pallas as pl
from jax.experimental.pallas import tpu as pltpu


def _round_up(x, m):
    return ((x + m - 1) // m) * m


def _vdsr_fused_kernel(*refs, H, W, layer_dims, base, pad_len):
    """Whole VDSR-style conv stack for ONE image, fully fused in VMEM.

    refs = (x_ref, w0, b0, w1, b1, ..., w{L-1}, b{L-1}, o_ref, pad_ref)

      x_ref  : (1, C0, H*W)        f32  NCHW-flat input (lane-dense)
      w_i    : (9, Cout_i, Cin_i)  bf16 per-tap weight matrices (tap = dy*3+dx)
      b_i    : (Cout_i, 1)         f32
      o_ref  : (1, C0, H*W)        f32  NCHW-flat output (global residual added)
      pad_ref: (Cmax, pad_len)     bf16 flat activation buffer; interior lives at
               [base, base+H*W); zero slack on both sides is the top/bottom halo.
    """
    n_layers = len(layer_dims)
    x_ref = refs[0]
    o_ref = refs[1 + 2 * n_layers]
    pad_ref = refs[2 + 2 * n_layers]

    L = H * W
    c_pad = pad_ref.shape[0]
    cin0 = layer_dims[0][0]

    # Zero ONLY the halo slack strips (O(W) elements), not the whole buffer.
    # Done every grid step: with "parallel" semantics the second TensorCore never
    # executes iteration 0, so a program_id==0 gate would read garbage halo.
    pad_ref[:, 0:base] = jnp.zeros((c_pad, base), pad_ref.dtype)
    pad_ref[:, base + L:pad_len] = jnp.zeros((c_pad, pad_len - base - L), pad_ref.dtype)

    # Row-wrap masks for the dx=0 / dx=2 taps (computed once, reused every layer).
    xcol = jax.lax.broadcasted_iota(jnp.int32, (1, L), 1) % W
    mask_l = xcol > 0            # dx = 0 taps are invalid at output column 0
    mask_r = xcol < (W - 1)      # dx = 2 taps are invalid at output column W-1

    # Load the input straight into the flat activation buffer (bf16, lane-dense).
    pad_ref[0:cin0, base:base + L] = x_ref[0].astype(pad_ref.dtype)

    for i, (cin, cout) in enumerate(layer_dims):
        w_ref = refs[1 + 2 * i]
        b_ref = refs[2 + 2 * i]

        # 9 small MXU matmuls accumulated in f32 -- no im2col col-buffer, no concats.
        acc_l = None   # dx == 0 taps
        acc_m = None   # dx == 1 taps
        acc_r = None   # dx == 2 taps
        for dy in range(3):
            for dx in range(3):
                off = base + (dy - 1) * W + (dx - 1)
                rhs = pad_ref[0:cin, off:off + L]                     # (cin, L) bf16
                contrib = jnp.dot(w_ref[dy * 3 + dx], rhs,
                                  preferred_element_type=jnp.float32)  # (cout, L) f32
                if dx == 0:
                    acc_l = contrib if acc_l is None else acc_l + contrib
                elif dx == 2:
                    acc_r = contrib if acc_r is None else acc_r + contrib
                else:
                    acc_m = contrib if acc_m is None else acc_m + contrib

        acc = (acc_m + b_ref[...]
               + jnp.where(mask_l, acc_l, 0.0)
               + jnp.where(mask_r, acc_r, 0.0))                        # (cout, L) f32

        if i < n_layers - 1:
            # ReLU + write back into the activation buffer (bf16, aligned, lane-dense).
            pad_ref[0:cout, base:base + L] = jnp.maximum(acc, 0.0).astype(pad_ref.dtype)
        else:
            # VDSR global residual in f32; output is already NCHW-flat & lane-dense.
            o_ref[0] = (x_ref[0] + acc).astype(o_ref.dtype)


def vdsr_forward_nchw(x_nchw, params):
    """Fused forward. x_nchw: (N,C,H,W) f32; params: list of (w_hwio(3,3,Cin,Cout), b(Cout,))."""
    N, C0, H, W = x_nchw.shape
    layer_dims = tuple((w.shape[2], w.shape[3]) for w, _ in params)
    assert layer_dims[0][0] == C0
    assert layer_dims[-1][1] == C0, "global residual requires Cout_last == Cin_0"
    c_pad = max(max(ci, co) for ci, co in layer_dims)

    L = H * W
    base = _round_up(W + 1, 128)       # aligned interior start; slack >= W+1 (top halo)
    pad_len = base + L + W + 1         # room for the furthest (dy=2, dx=2) read

    x_flat = x_nchw.reshape(N, C0, L).astype(jnp.float32)   # free reshape of NCHW
    args = [x_flat]
    in_specs = [pl.BlockSpec((1, C0, L), lambda n: (n, 0, 0))]
    for (w, b) in params:
        cin, cout = w.shape[2], w.shape[3]
        # (3,3,Cin,Cout) HWIO -> (9, Cout, Cin): one (Cout, Cin) matrix per tap (dy,dx).
        w_tap = jnp.transpose(w, (0, 1, 3, 2)).reshape(9, cout, cin).astype(jnp.bfloat16)
        b2 = b.reshape(cout, 1).astype(jnp.float32)
        args += [w_tap, b2]
        in_specs += [
            pl.BlockSpec((9, cout, cin), lambda n: (0, 0, 0)),
            pl.BlockSpec((cout, 1), lambda n: (0, 0)),
        ]

    kernel = functools.partial(_vdsr_fused_kernel, H=H, W=W, layer_dims=layer_dims,
                               base=base, pad_len=pad_len)

    # Advisory cost estimate so XLA schedules the surrounding (free) reshapes correctly.
    w_bytes = sum(w.size * 2 + b.size * 4 for w, b in params)
    flops = 2 * N * L * sum(9 * ci * co for ci, co in layer_dims) + N * L * C0
    cost = pl.CostEstimate(flops=flops, transcendentals=0,
                           bytes_accessed=2 * N * C0 * L * 4 + w_bytes)

    # Explicit scoped-VMEM budget: bf16 pad buffer + f32 accumulators + double-buffered IO.
    vmem_needed = (c_pad * pad_len * 2            # flat activation buffer (bf16)
                   + 3 * c_pad * L * 4            # f32 tap accumulators (worst layer)
                   + 2 * 2 * C0 * L * 4           # in + out blocks, double-buffered
                   + w_bytes)
    vmem_limit = int(min(96 * 2 ** 20, max(16 * 2 ** 20, 4 * vmem_needed)))

    out = pl.pallas_call(
        kernel,
        out_shape=jax.ShapeDtypeStruct((N, C0, L), jnp.float32),
        grid=(N,),
        in_specs=in_specs,
        out_specs=pl.BlockSpec((1, C0, L), lambda n: (n, 0, 0)),
        scratch_shapes=[pltpu.VMEM((c_pad, pad_len), jnp.bfloat16)],
        compiler_params=pltpu.CompilerParams(
            dimension_semantics=("parallel",),
            vmem_limit_bytes=vmem_limit),
        cost_estimate=cost,
    )(*args)
    return out.reshape(N, C0, H, W)     # free reshape: kernel output is already NCHW order


def make_params(key, n_colors=3, n_feats=32, n_layers=4):
    """VDSR-style stack: conv(n_colors->F) ReLU, (n_layers-2)x conv(F->F) ReLU,
    conv(F->n_colors). Weights stored HWIO (3,3,Cin,Cout)."""
    params = []
    chans = [n_colors] + [n_feats] * (n_layers - 1) + [n_colors]
    for i in range(n_layers):
        cin, cout = chans[i], chans[i + 1]
        key, kw, kb = jax.random.split(key, 3)
        scale = 1.0 / jnp.sqrt(jnp.float32(cin * 9))
        w = jax.random.normal(kw, (3, 3, cin, cout), jnp.float32) * scale
        b = jax.random.normal(kb, (cout,), jnp.float32) * 0.01
        params.append((w, b))
    return params


class Model:
    """Mirrors the PyTorch wrapper's eval forward: chop=False, self_ensemble=False
    -> self.model.forward(x). Input/output stay NCHW (no wrapper transposes)."""

    def __init__(self, params, scale=(1,)):
        self.params = params
        self.scale = scale
        self.idx_scale = 0
        self.training = False

    def forward(self, x, idx_scale):
        self.idx_scale = idx_scale
        # eval path, no chop, no self-ensemble
        return vdsr_forward_nchw(x, self.params)

    __call__ = forward


if __name__ == "__main__":
    key = jax.random.PRNGKey(0)
    key, kx = jax.random.split(key)

    N, C, H, W = 2, 3, 16, 16          # small NCHW input (rgb image batch)
    x = jax.random.uniform(kx, (N, C, H, W), jnp.float32)

    params = make_params(key, n_colors=C, n_feats=32, n_layers=4)
    model = Model(params)

    y = model(x, idx_scale=0)
    y = jax.block_until_ready(y)

    assert y.shape == (N, C, H, W), y.shape
    assert y.dtype == jnp.float32
    assert bool(jnp.all(jnp.isfinite(y)))

    # Cross-check the fused Pallas conv stack against a pure-JAX f32 reference.
    def ref_forward(x_nchw, params):
        h = jnp.transpose(x_nchw, (0, 2, 3, 1))
        x0 = h
        for i, (w, b) in enumerate(params):
            h = jax.lax.conv_general_dilated(
                h, w, (1, 1), "SAME",
                dimension_numbers=("NHWC", "HWIO", "NHWC")) + b
            if i != len(params) - 1:
                h = jnp.maximum(h, 0.0)
        return jnp.transpose(x0 + h, (0, 3, 1, 2))

    y_ref = ref_forward(x, params)
    err = float(jnp.max(jnp.abs(y - y_ref)))
    # Kernel uses bf16 weights/activations with f32 accumulation (f32 residual),
    # reference is full f32 -> allow a bf16-sized tolerance.
    assert err < 3e-2, f"max abs err {err}"

    print("KERNEL_OK")
</pallas_src>

<mosaic_0001>
module attributes {stable_mosaic.version = 11 : i64} {
  func.func @_vdsr_fused_kernel(%arg0: i32, %arg1: memref<1x3x256xf32, #tpu.memory_space<vmem>>, %arg2: memref<9x32x3xbf16, #tpu.memory_space<vmem>>, %arg3: memref<32x1xf32, #tpu.memory_space<vmem>>, %arg4: memref<9x32x32xbf16, #tpu.memory_space<vmem>>, %arg5: memref<32x1xf32, #tpu.memory_space<vmem>>, %arg6: memref<9x32x32xbf16, #tpu.memory_space<vmem>>, %arg7: memref<32x1xf32, #tpu.memory_space<vmem>>, %arg8: memref<9x3x32xbf16, #tpu.memory_space<vmem>>, %arg9: memref<3x1xf32, #tpu.memory_space<vmem>>, %arg10: memref<1x3x256xf32, #tpu.memory_space<vmem>>, %arg11: memref<32x401xbf16, #tpu.memory_space<vmem>>) attributes {dimension_semantics = [#tpu.dimension_semantics<parallel>], iteration_bounds = array<i64: 2>, scalar_prefetch = 0 : i64, scratch_operands = 1 : i64, tpu.core_type = #tpu.core_type<tc>, window_params = [{transform_indices = @transform_0, window_bounds = array<i64: 1, 3, 256>}, {pipeline_mode = #tpu.pipeline_mode<synchronous>, transform_indices = @transform_1, window_bounds = array<i64: 9, 32, 3>}, {pipeline_mode = #tpu.pipeline_mode<synchronous>, transform_indices = @transform_2, window_bounds = array<i64: 32, 1>}, {pipeline_mode = #tpu.pipeline_mode<synchronous>, transform_indices = @transform_3, window_bounds = array<i64: 9, 32, 32>}, {pipeline_mode = #tpu.pipeline_mode<synchronous>, transform_indices = @transform_4, window_bounds = array<i64: 32, 1>}, {pipeline_mode = #tpu.pipeline_mode<synchronous>, transform_indices = @transform_5, window_bounds = array<i64: 9, 32, 32>}, {pipeline_mode = #tpu.pipeline_mode<synchronous>, transform_indices = @transform_6, window_bounds = array<i64: 32, 1>}, {pipeline_mode = #tpu.pipeline_mode<synchronous>, transform_indices = @transform_7, window_bounds = array<i64: 9, 3, 32>}, {pipeline_mode = #tpu.pipeline_mode<synchronous>, transform_indices = @transform_8, window_bounds = array<i64: 3, 1>}, {transform_indices = @transform_9, window_bounds = array<i64: 1, 3, 256>}]} {
    %cst = arith.constant 0.000000e+00 : bf16
    %0 = vector.broadcast %cst : bf16 to vector<32x128xbf16>
    %c0 = arith.constant 0 : index
    %c0_0 = arith.constant 0 : index
    %1 = vector.load %arg11[%c0, %c0_0] : memref<32x401xbf16, #tpu.memory_space<vmem>>, vector<32x128xbf16>
    tpu.vector_store %arg11[%c0, %c0_0], %0 {strides = array<i32>} : memref<32x401xbf16, #tpu.memory_space<vmem>>, vector<32x128xbf16>,
    %cst_1 = arith.constant 0.000000e+00 : bf16
    %2 = vector.broadcast %cst_1 : bf16 to vector<32x17xbf16>
    %c0_2 = arith.constant 0 : index
    %c384 = arith.constant 384 : index
    %3 = vector.load %arg11[%c0_2, %c384] : memref<32x401xbf16, #tpu.memory_space<vmem>>, vector<32x17xbf16>
    tpu.vector_store %arg11[%c0_2, %c384], %2 {strides = array<i32>} : memref<32x401xbf16, #tpu.memory_space<vmem>>, vector<32x17xbf16>,
    %4 = tpu.iota {dimensions = array<i32: 1>} : vector<1x256xi32>
    %c16_i32 = arith.constant 16 : i32
    %c0_i32 = arith.constant 0 : i32
    %5 = arith.cmpi eq, %c16_i32, %c0_i32 : i32
    %c1_i32 = arith.constant 1 : i32
    %6 = arith.select %5, %c1_i32, %c16_i32 : i32
    %7 = vector.broadcast %6 : i32 to vector<1x256xi32>
    %8 = arith.remsi %4, %7 : vector<1x256xi32>
    %c0_i32_3 = arith.constant 0 : i32
    %9 = vector.broadcast %c0_i32_3 : i32 to vector<1x256xi32>
    %10 = arith.cmpi ne, %8, %9 : vector<1x256xi32>
    %c0_i32_4 = arith.constant 0 : i32
    %11 = vector.broadcast %c0_i32_4 : i32 to vector<1x256xi32>
    %12 = arith.cmpi slt, %8, %11 : vector<1x256xi32>
    %c0_i32_5 = arith.constant 0 : i32
    %13 = arith.cmpi slt, %6, %c0_i32_5 : i32
    %14 = vector.broadcast %13 : i1 to vector<1x256xi1>
    %15 = vector.broadcast %14 : vector<1x256xi1> to vector<1x256xi1>
    %16 = arith.xori %12, %15 : vector<1x256xi1>
    %17 = arith.andi %16, %10 : vector<1x256xi1>
    %18 = vector.broadcast %6 : i32 to vector<1x256xi32>
    %19 = arith.addi %8, %18 : vector<1x256xi32>
    %20 = arith.select %17, %19, %8 : vector<1x256xi1>, vector<1x256xi32>
    %c0_i32_6 = arith.constant 0 : i32
    %21 = vector.broadcast %c0_i32_6 : i32 to vector<1x256xi32>
    %22 = arith.cmpi sgt, %20, %21 : vector<1x256xi32>
    %c15_i32 = arith.constant 15 : i32
    %23 = vector.broadcast %c15_i32 : i32 to vector<1x256xi32>
    %24 = arith.cmpi slt, %20, %23 : vector<1x256xi32>
    %c0_7 = arith.constant 0 : index
    %c0_8 = arith.constant 0 : index
    %c0_9 = arith.constant 0 : index
    %25 = vector.load %arg1[%c0_7, %c0_8, %c0_9] : memref<1x3x256xf32, #tpu.memory_space<vmem>>, vector<1x3x256xf32>
    %26 = vector.shape_cast %25 : vector<1x3x256xf32> to vector<3x256xf32>
    %27 = arith.truncf %26 : vector<3x256xf32> to vector<3x256xbf16>
    %c0_10 = arith.constant 0 : index
    %c128 = arith.constant 128 : index
    %28 = vector.load %arg11[%c0_10, %c128] : memref<32x401xbf16, #tpu.memory_space<vmem>>, vector<3x256xbf16>
    tpu.vector_store %arg11[%c0_10, %c128], %27 {strides = array<i32>} : memref<32x401xbf16, #tpu.memory_space<vmem>>, vector<3x256xbf16>,
    %c0_11 = arith.constant 0 : index
    %c111 = arith.constant 111 : index
    %29 = vector.load %arg11[%c0_11, %c111] : memref<32x401xbf16, #tpu.memory_space<vmem>>, vector<3x256xbf16>
    %c0_12 = arith.constant 0 : index
    %c0_13 = arith.constant 0 : index
    %c0_14 = arith.constant 0 : index
    %30 = vector.load %arg2[%c0_12, %c0_13, %c0_14] : memref<9x32x3xbf16, #tpu.memory_space<vmem>>, vector<1x32x3xbf16>
    %31 = vector.shape_cast %30 : vector<1x32x3xbf16> to vector<32x3xbf16>
    %cst_15 = arith.constant dense<0.000000e+00> : vector<32x256xf32>
    %32 = tpu.matmul %31, %29, %cst_15 {dimension_numbers = #tpu.dot_dimension_numbers<[1], [0], [0], [1], [0, 0, 1, 1], [], []>} : vector<32x3xbf16>, vector<3x256xbf16>, vector<32x256xf32> -> vector<32x256xf32>
    %c0_16 = arith.constant 0 : index
    %c112 = arith.constant 112 : index
    %33 = vector.load %arg11[%c0_16, %c112] : memref<32x401xbf16, #tpu.memory_space<vmem>>, vector<3x256xbf16>
    %c1 = arith.constant 1 : index
    %c0_17 = arith.constant 0 : index
    %c0_18 = arith.constant 0 : index
    %34 = vector.load %arg2[%c1, %c0_17, %c0_18] : memref<9x32x3xbf16, #tpu.memory_space<vmem>>, vector<1x32x3xbf16>
    %35 = vector.shape_cast %34 : vector<1x32x3xbf16> to vector<32x3xbf16>
    %cst_19 = arith.constant dense<0.000000e+00> : vector<32x256xf32>
    %36 = tpu.matmul %35, %33, %cst_19 {dimension_numbers = #tpu.dot_dimension_numbers<[1], [0], [0], [1], [0, 0, 1, 1], [], []>} : vector<32x3xbf16>, vector<3x256xbf16>, vector<32x256xf32> -> vector<32x256xf32>
    %c0_20 = arith.constant 0 : index
    %c113 = arith.constant 113 : index
    %37 = vector.load %arg11[%c0_20, %c113] : memref<32x401xbf16, #tpu.memory_space<vmem>>, vector<3x256xbf16>
    %c2 = arith.constant 2 : index
    %c0_21 = arith.constant 0 : index
    %c0_22 = arith.constant 0 : index
    %38 = vector.load %arg2[%c2, %c0_21, %c0_22] : memref<9x32x3xbf16, #tpu.memory_space<vmem>>, vector<1x32x3xbf16>
    %39 = vector.shape_cast %38 : vector<1x32x3xbf16> to vector<32x3xbf16>
    %cst_23 = arith.constant dense<0.000000e+00> : vector<32x256xf32>
    %40 = tpu.matmul %39, %37, %cst_23 {dimension_numbers = #tpu.dot_dimension_numbers<[1], [0], [0], [1], [0, 0, 1, 1], [], []>} : vector<32x3xbf16>, vector<3x256xbf16>, vector<32x256xf32> -> vector<32x256xf32>
    %c0_24 = arith.constant 0 : index
    %c127 = arith.constant 127 : index
    %41 = vector.load %arg11[%c0_24, %c127] : memref<32x401xbf16, #tpu.memory_space<vmem>>, vector<3x256xbf16>
    %c3 = arith.constant 3 : index
    %c0_25 = arith.constant 0 : index
    %c0_26 = arith.constant 0 : index
    %42 = vector.load %arg2[%c3, %c0_25, %c0_26] : memref<9x32x3xbf16, #tpu.memory_space<vmem>>, vector<1x32x3xbf16>
    %43 = vector.shape_cast %42 : vector<1x32x3xbf16> to vector<32x3xbf16>
    %cst_27 = arith.constant dense<0.000000e+00> : vector<32x256xf32>
    %44 = tpu.matmul %43, %41, %cst_27 {dimension_numbers = #tpu.dot_dimension_numbers<[1], [0], [0], [1], [0, 0, 1, 1], [], []>} : vector<32x3xbf16>, vector<3x256xbf16>, vector<32x256xf32> -> vector<32x256xf32>
    %45 = arith.addf %32, %44 : vector<32x256xf32>
    %c0_28 = arith.constant 0 : index
    %c128_29 = arith.constant 128 : index
    %46 = vector.load %arg11[%c0_28, %c128_29] : memref<32x401xbf16, #tpu.memory_space<vmem>>, vector<3x256xbf16>
    %c4 = arith.constant 4 : index
    %c0_30 = arith.constant 0 : index
    %c0_31 = arith.constant 0 : index
    %47 = vector.load %arg2[%c4, %c0_30, %c0_31] : memref<9x32x3xbf16, #tpu.memory_space<vmem>>, vector<1x32x3xbf16>
    %48 = vector.shape_cast %47 : vector<1x32x3xbf16> to vector<32x3xbf16>
    %cst_32 = arith.constant dense<0.000000e+00> : vector<32x256xf32>
    %49 = tpu.matmul %48, %46, %cst_32 {dimension_numbers = #tpu.dot_dimension_numbers<[1], [0], [0], [1], [0, 0, 1, 1], [], []>} : vector<32x3xbf16>, vector<3x256xbf16>, vector<32x256xf32> -> vector<32x256xf32>
    %50 = arith.addf %36, %49 : vector<32x256xf32>
    %c0_33 = arith.constant 0 : index
    %c129 = arith.constant 129 : index
    %51 = vector.load %arg11[%c0_33, %c129] : memref<32x401xbf16, #tpu.memory_space<vmem>>, vector<3x256xbf16>
    %c5 = arith.constant 5 : index
    %c0_34 = arith.constant 0 : index
    %c0_35 = arith.constant 0 : index
    %52 = vector.load %arg2[%c5, %c0_34, %c0_35] : memref<9x32x3xbf16, #tpu.memory_space<vmem>>, vector<1x32x3xbf16>
    %53 = vector.shape_cast %52 : vector<1x32x3xbf16> to vector<32x3xbf16>
    %cst_36 = arith.constant dense<0.000000e+00> : vector<32x256xf32>
    %54 = tpu.matmul %53, %51, %cst_36 {dimension_numbers = #tpu.dot_dimension_numbers<[1], [0], [0], [1], [0, 0, 1, 1], [], []>} : vector<32x3xbf16>, vector<3x256xbf16>, vector<32x256xf32> -> vector<32x256xf32>
    %55 = arith.addf %40, %54 : vector<32x256xf32>
    %c0_37 = arith.constant 0 : index
    %c143 = arith.constant 143 : index
    %56 = vector.load %arg11[%c0_37, %c143] : memref<32x401xbf16, #tpu.memory_space<vmem>>, vector<3x256xbf16>
    %c6 = arith.constant 6 : index
    %c0_38 = arith.constant 0 : index
    %c0_39 = arith.constant 0 : index
    %57 = vector.load %arg2[%c6, %c0_38, %c0_39] : memref<9x32x3xbf16, #tpu.memory_space<vmem>>, vector<1x32x3xbf16>
    %58 = vector.shape_cast %57 : vector<1x32x3xbf16> to vector<32x3xbf16>
    %cst_40 = arith.constant dense<0.000000e+00> : vector<32x256xf32>
    %59 = tpu.matmul %58, %56, %cst_40 {dimension_numbers = #tpu.dot_dimension_numbers<[1], [0], [0], [1], [0, 0, 1, 1], [], []>} : vector<32x3xbf16>, vector<3x256xbf16>, vector<32x256xf32> -> vector<32x256xf32>
    %60 = arith.addf %45, %59 : vector<32x256xf32>
    %c0_41 = arith.constant 0 : index
    %c144 = arith.constant 144 : index
    %61 = vector.load %arg11[%c0_41, %c144] : memref<32x401xbf16, #tpu.memory_space<vmem>>, vector<3x256xbf16>
    %c7 = arith.constant 7 : index
    %c0_42 = arith.constant 0 : index
    %c0_43 = arith.constant 0 : index
    %62 = vector.load %arg2[%c7, %c0_42, %c0_43] : memref<9x32x3xbf16, #tpu.memory_space<vmem>>, vector<1x32x3xbf16>
    %63 = vector.shape_cast %62 : vector<1x32x3xbf16> to vector<32x3xbf16>
    %cst_44 = arith.constant dense<0.000000e+00> : vector<32x256xf32>
    %64 = tpu.matmul %63, %61, %cst_44 {dimension_numbers = #tpu.dot_dimension_numbers<[1], [0], [0], [1], [0, 0, 1, 1], [], []>} : vector<32x3xbf16>, vector<3x256xbf16>, vector<32x256xf32> -> vector<32x256xf32>
    %65 = arith.addf %50, %64 : vector<32x256xf32>
    %c0_45 = arith.constant 0 : index
    %c145 = arith.constant 145 : index
    %66 = vector.load %arg11[%c0_45, %c145] : memref<32x401xbf16, #tpu.memory_space<vmem>>, vector<3x256xbf16>
    %c8 = arith.constant 8 : index
    %c0_46 = arith.constant 0 : index
    %c0_47 = arith.constant 0 : index
    %67 = vector.load %arg2[%c8, %c0_46, %c0_47] : memref<9x32x3xbf16, #tpu.memory_space<vmem>>, vector<1x32x3xbf16>
    %68 = vector.shape_cast %67 : vector<1x32x3xbf16> to vector<32x3xbf16>
    %cst_48 = arith.constant dense<0.000000e+00> : vector<32x256xf32>
    %69 = tpu.matmul %68, %66, %cst_48 {dimension_numbers = #tpu.dot_dimension_numbers<[1], [0], [0], [1], [0, 0, 1, 1], [], []>} : vector<32x3xbf16>, vector<3x256xbf16>, vector<32x256xf32> -> vector<32x256xf32>
    %70 = arith.addf %55, %69 : vector<32x256xf32>
    %c0_49 = arith.constant 0 : index
    %c0_50 = arith.constant 0 : index
    %71 = vector.load %arg3[%c0_49, %c0_50] : memref<32x1xf32, #tpu.memory_space<vmem>>, vector<32x1xf32>
    %72 = vector.broadcast %71 : vector<32x1xf32> to vector<32x256xf32>
    %73 = arith.addf %65, %72 : vector<32x256xf32>
    %cst_51 = arith.constant 0.000000e+00 : f32
    %74 = vector.shape_cast %22 : vector<1x256xi1> to vector<1x256xi1>
    %75 = vector.broadcast %74 : vector<1x256xi1> to vector<32x256xi1>
    %76 = vector.broadcast %cst_51 : f32 to vector<32x256xf32>
    %77 = arith.select %75, %60, %76 : vector<32x256xi1>, vector<32x256xf32>
    %78 = arith.addf %73, %77 : vector<32x256xf32>
    %cst_52 = arith.constant 0.000000e+00 : f32
    %79 = vector.shape_cast %24 : vector<1x256xi1> to vector<1x256xi1>
    %80 = vector.broadcast %79 : vector<1x256xi1> to vector<32x256xi1>
    %81 = vector.broadcast %cst_52 : f32 to vector<32x256xf32>
    %82 = arith.select %80, %70, %81 : vector<32x256xi1>, vector<32x256xf32>
    %83 = arith.addf %78, %82 : vector<32x256xf32>
    %cst_53 = arith.constant 0.000000e+00 : f32
    %84 = vector.broadcast %cst_53 : f32 to vector<32x256xf32>
    %85 = arith.maximumf %83, %84 : vector<32x256xf32>
    %86 = arith.truncf %85 : vector<32x256xf32> to vector<32x256xbf16>
    %c0_54 = arith.constant 0 : index
    %c128_55 = arith.constant 128 : index
    %87 = vector.load %arg11[%c0_54, %c128_55] : memref<32x401xbf16, #tpu.memory_space<vmem>>, vector<32x256xbf16>
    tpu.vector_store %arg11[%c0_54, %c128_55], %86 {strides = array<i32>} : memref<32x401xbf16, #tpu.memory_space<vmem>>, vector<32x256xbf16>,
    %c0_56 = arith.constant 0 : index
    %c111_57 = arith.constant 111 : index
    %88 = vector.load %arg11[%c0_56, %c111_57] : memref<32x401xbf16, #tpu.memory_space<vmem>>, vector<32x256xbf16>
    %c0_58 = arith.constant 0 : index
    %c0_59 = arith.constant 0 : index
    %c0_60 = arith.constant 0 : index
    %89 = vector.load %arg4[%c0_58, %c0_59, %c0_60] : memref<9x32x32xbf16, #tpu.memory_space<vmem>>, vector<1x32x32xbf16>
    %90 = vector.shape_cast %89 : vector<1x32x32xbf16> to vector<32x32xbf16>
    %cst_61 = arith.constant dense<0.000000e+00> : vector<32x256xf32>
    %91 = tpu.matmul %90, %88, %cst_61 {dimension_numbers = #tpu.dot_dimension_numbers<[1], [0], [0], [1], [0, 0, 1, 1], [], []>} : vector<32x32xbf16>, vector<32x256xbf16>, vector<32x256xf32> -> vector<32x256xf32>
    %c0_62 = arith.constant 0 : index
    %c112_63 = arith.constant 112 : index
    %92 = vector.load %arg11[%c0_62, %c112_63] : memref<32x401xbf16, #tpu.memory_space<vmem>>, vector<32x256xbf16>
    %c1_64 = arith.constant 1 : index
    %c0_65 = arith.constant 0 : index
    %c0_66 = arith.constant 0 : index
    %93 = vector.load %arg4[%c1_64, %c0_65, %c0_66] : memref<9x32x32xbf16, #tpu.memory_space<vmem>>, vector<1x32x32xbf16>
    %94 = vector.shape_cast %93 : vector<1x32x32xbf16> to vector<32x32xbf16>
    %cst_67 = arith.constant dense<0.000000e+00> : vector<32x256xf32>
    %95 = tpu.matmul %94, %92, %cst_67 {dimension_numbers = #tpu.dot_dimension_numbers<[1], [0], [0], [1], [0, 0, 1, 1], [], []>} : vector<32x32xbf16>, vector<32x256xbf16>, vector<32x256xf32> -> vector<32x256xf32>
    %c0_68 = arith.constant 0 : index
    %c113_69 = arith.constant 113 : index
    %96 = vector.load %arg11[%c0_68, %c113_69] : memref<32x401xbf16, #tpu.memory_space<vmem>>, vector<32x256xbf16>
    %c2_70 = arith.constant 2 : index
    %c0_71 = arith.constant 0 : index
    %c0_72 = arith.constant 0 : index
    %97 = vector.load %arg4[%c2_70, %c0_71, %c0_72] : memref<9x32x32xbf16, #tpu.memory_space<vmem>>, vector<1x32x32xbf16>
    %98 = vector.shape_cast %97 : vector<1x32x32xbf16> to vector<32x32xbf16>
    %cst_73 = arith.constant dense<0.000000e+00> : vector<32x256xf32>
    %99 = tpu.matmul %98, %96, %cst_73 {dimension_numbers = #tpu.dot_dimension_numbers<[1], [0], [0], [1], [0, 0, 1, 1], [], []>} : vector<32x32xbf16>, vector<32x256xbf16>, vector<32x256xf32> -> vector<32x256xf32>
    %c0_74 = arith.constant 0 : index
    %c127_75 = arith.constant 127 : index
    %100 = vector.load %arg11[%c0_74, %c127_75] : memref<32x401xbf16, #tpu.memory_space<vmem>>, vector<32x256xbf16>
    %c3_76 = arith.constant 3 : index
    %c0_77 = arith.constant 0 : index
    %c0_78 = arith.constant 0 : index
    %101 = vector.load %arg4[%c3_76, %c0_77, %c0_78] : memref<9x32x32xbf16, #tpu.memory_space<vmem>>, vector<1x32x32xbf16>
    %102 = vector.shape_cast %101 : vector<1x32x32xbf16> to vector<32x32xbf16>
    %cst_79 = arith.constant dense<0.000000e+00> : vector<32x256xf32>
    %103 = tpu.matmul %102, %100, %cst_79 {dimension_numbers = #tpu.dot_dimension_numbers<[1], [0], [0], [1], [0, 0, 1, 1], [], []>} : vector<32x32xbf16>, vector<32x256xbf16>, vector<32x256xf32> -> vector<32x256xf32>
    %104 = arith.addf %91, %103 : vector<32x256xf32>
    %c0_80 = arith.constant 0 : index
    %c128_81 = arith.constant 128 : index
    %105 = vector.load %arg11[%c0_80, %c128_81] : memref<32x401xbf16, #tpu.memory_space<vmem>>, vector<32x256xbf16>
    %c4_82 = arith.constant 4 : index
    %c0_83 = arith.constant 0 : index
    %c0_84 = arith.constant 0 : index
    %106 = vector.load %arg4[%c4_82, %c0_83, %c0_84] : memref<9x32x32xbf16, #tpu.memory_space<vmem>>, vector<1x32x32xbf16>
    %107 = vector.shape_cast %106 : vector<1x32x32xbf16> to vector<32x32xbf16>
    %cst_85 = arith.constant dense<0.000000e+00> : vector<32x256xf32>
    %108 = tpu.matmul %107, %105, %cst_85 {dimension_numbers = #tpu.dot_dimension_numbers<[1], [0], [0], [1], [0, 0, 1, 1], [], []>} : vector<32x32xbf16>, vector<32x256xbf16>, vector<32x256xf32> -> vector<32x256xf32>
    %109 = arith.addf %95, %108 : vector<32x256xf32>
    %c0_86 = arith.constant 0 : index
    %c129_87 = arith.constant 129 : index
    %110 = vector.load %arg11[%c0_86, %c129_87] : memref<32x401xbf16, #tpu.memory_space<vmem>>, vector<32x256xbf16>
    %c5_88 = arith.constant 5 : index
    %c0_89 = arith.constant 0 : index
    %c0_90 = arith.constant 0 : index
    %111 = vector.load %arg4[%c5_88, %c0_89, %c0_90] : memref<9x32x32xbf16, #tpu.memory_space<vmem>>, vector<1x32x32xbf16>
    %112 = vector.shape_cast %111 : vector<1x32x32xbf16> to vector<32x32xbf16>
    %cst_91 = arith.constant dense<0.000000e+00> : vector<32x256xf32>
    %113 = tpu.matmul %112, %110, %cst_91 {dimension_numbers = #tpu.dot_dimension_numbers<[1], [0], [0], [1], [0, 0, 1, 1], [], []>} : vector<32x32xbf16>, vector<32x256xbf16>, vector<32x256xf32> -> vector<32x256xf32>
    %114 = arith.addf %99, %113 : vector<32x256xf32>
    %c0_92 = arith.constant 0 : index
    %c143_93 = arith.constant 143 : index
    %115 = vector.load %arg11[%c0_92, %c143_93] : memref<32x401xbf16, #tpu.memory_space<vmem>>, vector<32x256xbf16>
    %c6_94 = arith.constant 6 : index
    %c0_95 = arith.constant 0 : index
    %c0_96 = arith.constant 0 : index
    %116 = vector.load %arg4[%c6_94, %c0_95, %c0_96] : memref<9x32x32xbf16, #tpu.memory_space<vmem>>, vector<1x32x32xbf16>
    %117 = vector.shape_cast %116 : vector<1x32x32xbf16> to vector<32x32xbf16>
    %cst_97 = arith.constant dense<0.000000e+00> : vector<32x256xf32>
    %118 = tpu.matmul %117, %115, %cst_97 {dimension_numbers = #tpu.dot_dimension_numbers<[1], [0], [0], [1], [0, 0, 1, 1], [], []>} : vector<32x32xbf16>, vector<32x256xbf16>, vector<32x256xf32> -> vector<32x256xf32>
    %119 = arith.addf %104, %118 : vector<32x256xf32>
    %c0_98 = arith.constant 0 : index
    %c144_99 = arith.constant 144 : index
    %120 = vector.load %arg11[%c0_98, %c144_99] : memref<32x401xbf16, #tpu.memory_space<vmem>>, vector<32x256xbf16>
    %c7_100 = arith.constant 7 : index
    %c0_101 = arith.constant 0 : index
    %c0_102 = arith.constant 0 : index
    %121 = vector.load %arg4[%c7_100, %c0_101, %c0_102] : memref<9x32x32xbf16, #tpu.memory_space<vmem>>, vector<1x32x32xbf16>
    %122 = vector.shape_cast %121 : vector<1x32x32xbf16> to vector<32x32xbf16>
    %cst_103 = arith.constant dense<0.000000e+00> : vector<32x256xf32>
    %123 = tpu.matmul %122, %120, %cst_103 {dimension_numbers = #tpu.dot_dimension_numbers<[1], [0], [0], [1], [0, 0, 1, 1], [], []>} : vector<32x32xbf16>, vector<32x256xbf16>, vector<32x256xf32> -> vector<32x256xf32>
    %124 = arith.addf %109, %123 : vector<32x256xf32>
    %c0_104 = arith.constant 0 : index
    %c145_105 = arith.constant 145 : index
    %125 = vector.load %arg11[%c0_104, %c145_105] : memref<32x401xbf16, #tpu.memory_space<vmem>>, vector<32x256xbf16>
    %c8_106 = arith.constant 8 : index
    %c0_107 = arith.constant 0 : index
    %c0_108 = arith.constant 0 : index
    %126 = vector.load %arg4[%c8_106, %c0_107, %c0_108] : memref<9x32x32xbf16, #tpu.memory_space<vmem>>, vector<1x32x32xbf16>
    %127 = vector.shape_cast %126 : vector<1x32x32xbf16> to vector<32x32xbf16>
    %cst_109 = arith.constant dense<0.000000e+00> : vector<32x256xf32>
    %128 = tpu.matmul %127, %125, %cst_109 {dimension_numbers = #tpu.dot_dimension_numbers<[1], [0], [0], [1], [0, 0, 1, 1], [], []>} : vector<32x32xbf16>, vector<32x256xbf16>, vector<32x256xf32> -> vector<32x256xf32>
    %129 = arith.addf %114, %128 : vector<32x256xf32>
    %c0_110 = arith.constant 0 : index
    %c0_111 = arith.constant 0 : index
    %130 = vector.load %arg5[%c0_110, %c0_111] : memref<32x1xf32, #tpu.memory_space<vmem>>, vector<32x1xf32>
    %131 = vector.broadcast %130 : vector<32x1xf32> to vector<32x256xf32>
    %132 = arith.addf %124, %131 : vector<32x256xf32>
    %cst_112 = arith.constant 0.000000e+00 : f32
    %133 = vector.shape_cast %22 : vector<1x256xi1> to vector<1x256xi1>
    %134 = vector.broadcast %133 : vector<1x256xi1> to vector<32x256xi1>
    %135 = vector.broadcast %cst_112 : f32 to vector<32x256xf32>
    %136 = arith.select %134, %119, %135 : vector<32x256xi1>, vector<32x256xf32>
    %137 = arith.addf %132, %136 : vector<32x256xf32>
    %cst_113 = arith.constant 0.000000e+00 : f32
    %138 = vector.shape_cast %24 : vector<1x256xi1> to vector<1x256xi1>
    %139 = vector.broadcast %138 : vector<1x256xi1> to vector<32x256xi1>
    %140 = vector.broadcast %cst_113 : f32 to vector<32x256xf32>
    %141 = arith.select %139, %129, %140 : vector<32x256xi1>, vector<32x256xf32>
    %142 = arith.addf %137, %141 : vector<32x256xf32>
    %cst_114 = arith.constant 0.000000e+00 : f32
    %143 = vector.broadcast %cst_114 : f32 to vector<32x256xf32>
    %144 = arith.maximumf %142, %143 : vector<32x256xf32>
    %145 = arith.truncf %144 : vector<32x256xf32> to vector<32x256xbf16>
    %c0_115 = arith.constant 0 : index
    %c128_116 = arith.constant 128 : index
    %146 = vector.load %arg11[%c0_115, %c128_116] : memref<32x401xbf16, #tpu.memory_space<vmem>>, vector<32x256xbf16>
    tpu.vector_store %arg11[%c0_115, %c128_116], %145 {strides = array<i32>} : memref<32x401xbf16, #tpu.memory_space<vmem>>, vector<32x256xbf16>,
    %c0_117 = arith.constant 0 : index
    %c111_118 = arith.constant 111 : index
    %147 = vector.load %arg11[%c0_117, %c111_118] : memref<32x401xbf16, #tpu.memory_space<vmem>>, vector<32x256xbf16>
    %c0_119 = arith.constant 0 : index
    %c0_120 = arith.constant 0 : index
    %c0_121 = arith.constant 0 : index
    %148 = vector.load %arg6[%c0_119, %c0_120, %c0_121] : memref<9x32x32xbf16, #tpu.memory_space<vmem>>, vector<1x32x32xbf16>
    %149 = vector.shape_cast %148 : vector<1x32x32xbf16> to vector<32x32xbf16>
    %cst_122 = arith.constant dense<0.000000e+00> : vector<32x256xf32>
    %150 = tpu.matmul %149, %147, %cst_122 {dimension_numbers = #tpu.dot_dimension_numbers<[1], [0], [0], [1], [0, 0, 1, 1], [], []>} : vector<32x32xbf16>, vector<32x256xbf16>, vector<32x256xf32> -> vector<32x256xf32>
    %c0_123 = arith.constant 0 : index
    %c112_124 = arith.constant 112 : index
    %151 = vector.load %arg11[%c0_123, %c112_124] : memref<32x401xbf16, #tpu.memory_space<vmem>>, vector<32x256xbf16>
    %c1_125 = arith.constant 1 : index
    %c0_126 = arith.constant 0 : index
    %c0_127 = arith.constant 0 : index
    %152 = vector.load %arg6[%c1_125, %c0_126, %c0_127] : memref<9x32x32xbf16, #tpu.memory_space<vmem>>, vector<1x32x32xbf16>
    %153 = vector.shape_cast %152 : vector<1x32x32xbf16> to vector<32x32xbf16>
    %cst_128 = arith.constant dense<0.000000e+00> : vector<32x256xf32>
    %154 = tpu.matmul %153, %151, %cst_128 {dimension_numbers = #tpu.dot_dimension_numbers<[1], [0], [0], [1], [0, 0, 1, 1], [], []>} : vector<32x32xbf16>, vector<32x256xbf16>, vector<32x256xf32> -> vector<32x256xf32>
    %c0_129 = arith.constant 0 : index
    %c113_130 = arith.constant 113 : index
    %155 = vector.load %arg11[%c0_129, %c113_130] : memref<32x401xbf16, #tpu.memory_space<vmem>>, vector<32x256xbf16>
    %c2_131 = arith.constant 2 : index
    %c0_132 = arith.constant 0 : index
    %c0_133 = arith.constant 0 : index
    %156 = vector.load %arg6[%c2_131, %c0_132, %c0_133] : memref<9x32x32xbf16, #tpu.memory_space<vmem>>, vector<1x32x32xbf16>
    %157 = vector.shape_cast %156 : vector<1x32x32xbf16> to vector<32x32xbf16>
    %cst_134 = arith.constant dense<0.000000e+00> : vector<32x256xf32>
    %158 = tpu.matmul %157, %155, %cst_134 {dimension_numbers = #tpu.dot_dimension_numbers<[1], [0], [0], [1], [0, 0, 1, 1], [], []>} : vector<32x32xbf16>, vector<32x256xbf16>, vector<32x256xf32> -> vector<32x256xf32>
    %c0_135 = arith.constant 0 : index
    %c127_136 = arith.constant 127 : index
    %159 = vector.load %arg11[%c0_135, %c127_136] : memref<32x401xbf16, #tpu.memory_space<vmem>>, vector<32x256xbf16>
    %c3_137 = arith.constant 3 : index
    %c0_138 = arith.constant 0 : index
    %c0_139 = arith.constant 0 : index
    %160 = vector.load %arg6[%c3_137, %c0_138, %c0_139] : memref<9x32x32xbf16, #tpu.memory_space<vmem>>, vector<1x32x32xbf16>
    %161 = vector.shape_cast %160 : vector<1x32x32xbf16> to vector<32x32xbf16>
    %cst_140 = arith.constant dense<0.000000e+00> : vector<32x256xf32>
    %162 = tpu.matmul %161, %159, %cst_140 {dimension_numbers = #tpu.dot_dimension_numbers<[1], [0], [0], [1], [0, 0, 1, 1], [], []>} : vector<32x32xbf16>, vector<32x256xbf16>, vector<32x256xf32> -> vector<32x256xf32>
    %163 = arith.addf %150, %162 : vector<32x256xf32>
    %c0_141 = arith.constant 0 : index
    %c128_142 = arith.constant 128 : index
    %164 = vector.load %arg11[%c0_141, %c128_142] : memref<32x401xbf16, #tpu.memory_space<vmem>>, vector<32x256xbf16>
    %c4_143 = arith.constant 4 : index
    %c0_144 = arith.constant 0 : index
    %c0_145 = arith.constant 0 : index
    %165 = vector.load %arg6[%c4_143, %c0_144, %c0_145] : memref<9x32x32xbf16, #tpu.memory_space<vmem>>, vector<1x32x32xbf16>
    %166 = vector.shape_cast %165 : vector<1x32x32xbf16> to vector<32x32xbf16>
    %cst_146 = arith.constant dense<0.000000e+00> : vector<32x256xf32>
    %167 = tpu.matmul %166, %164, %cst_146 {dimension_numbers = #tpu.dot_dimension_numbers<[1], [0], [0], [1], [0, 0, 1, 1], [], []>} : vector<32x32xbf16>, vector<32x256xbf16>, vector<32x256xf32> -> vector<32x256xf32>
    %168 = arith.addf %154, %167 : vector<32x256xf32>
    %c0_147 = arith.constant 0 : index
    %c129_148 = arith.constant 129 : index
    %169 = vector.load %arg11[%c0_147, %c129_148] : memref<32x401xbf16, #tpu.memory_space<vmem>>, vector<32x256xbf16>
    %c5_149 = arith.constant 5 : index
    %c0_150 = arith.constant 0 : index
    %c0_151 = arith.constant 0 : index
    %170 = vector.load %arg6[%c5_149, %c0_150, %c0_151] : memref<9x32x32xbf16, #tpu.memory_space<vmem>>, vector<1x32x32xbf16>
    %171 = vector.shape_cast %170 : vector<1x32x32xbf16> to vector<32x32xbf16>
    %cst_152 = arith.constant dense<0.000000e+00> : vector<32x256xf32>
    %172 = tpu.matmul %171, %169, %cst_152 {dimension_numbers = #tpu.dot_dimension_numbers<[1], [0], [0], [1], [0, 0, 1, 1], [], []>} : vector<32x32xbf16>, vector<32x256xbf16>, vector<32x256xf32> -> vector<32x256xf32>
    %173 = arith.addf %158, %172 : vector<32x256xf32>
    %c0_153 = arith.constant 0 : index
    %c143_154 = arith.constant 143 : index
    %174 = vector.load %arg11[%c0_153, %c143_154] : memref<32x401xbf16, #tpu.memory_space<vmem>>, vector<32x256xbf16>
    %c6_155 = arith.constant 6 : index
    %c0_156 = arith.constant 0 : index
    %c0_157 = arith.constant 0 : index
    %175 = vector.load %arg6[%c6_155, %c0_156, %c0_157] : memref<9x32x32xbf16, #tpu.memory_space<vmem>>, vector<1x32x32xbf16>
    %176 = vector.shape_cast %175 : vector<1x32x32xbf16> to vector<32x32xbf16>
    %cst_158 = arith.constant dense<0.000000e+00> : vector<32x256xf32>
    %177 = tpu.matmul %176, %174, %cst_158 {dimension_numbers = #tpu.dot_dimension_numbers<[1], [0], [0], [1], [0, 0, 1, 1], [], []>} : vector<32x32xbf16>, vector<32x256xbf16>, vector<32x256xf32> -> vector<32x256xf32>
    %178 = arith.addf %163, %177 : vector<32x256xf32>
    %c0_159 = arith.constant 0 : index
    %c144_160 = arith.constant 144 : index
    %179 = vector.load %arg11[%c0_159, %c144_160] : memref<32x401xbf16, #tpu.memory_space<vmem>>, vector<32x256xbf16>
    %c7_161 = arith.constant 7 : index
    %c0_162 = arith.constant 0 : index
    %c0_163 = arith.constant 0 : index
    %180 = vector.load %arg6[%c7_161, %c0_162, %c0_163] : memref<9x32x32xbf16, #tpu.memory_space<vmem>>, vector<1x32x32xbf16>
    %181 = vector.shape_cast %180 : vector<1x32x32xbf16> to vector<32x32xbf16>
    %cst_164 = arith.constant dense<0.000000e+00> : vector<32x256xf32>
    %182 = tpu.matmul %181, %179, %cst_164 {dimension_numbers = #tpu.dot_dimension_numbers<[1], [0], [0], [1], [0, 0, 1, 1], [], []>} : vector<32x32xbf16>, vector<32x256xbf16>, vector<32x256xf32> -> vector<32x256xf32>
    %183 = arith.addf %168, %182 : vector<32x256xf32>
    %c0_165 = arith.constant 0 : index
    %c145_166 = arith.constant 145 : index
    %184 = vector.load %arg11[%c0_165, %c145_166] : memref<32x401xbf16, #tpu.memory_space<vmem>>, vector<32x256xbf16>
    %c8_167 = arith.constant 8 : index
    %c0_168 = arith.constant 0 : index
    %c0_169 = arith.constant 0 : index
    %185 = vector.load %arg6[%c8_167, %c0_168, %c0_169] : memref<9x32x32xbf16, #tpu.memory_space<vmem>>, vector<1x32x32xbf16>
    %186 = vector.shape_cast %185 : vector<1x32x32xbf16> to vector<32x32xbf16>
    %cst_170 = arith.constant dense<0.000000e+00> : vector<32x256xf32>
    %187 = tpu.matmul %186, %184, %cst_170 {dimension_numbers = #tpu.dot_dimension_numbers<[1], [0], [0], [1], [0, 0, 1, 1], [], []>} : vector<32x32xbf16>, vector<32x256xbf16>, vector<32x256xf32> -> vector<32x256xf32>
    %188 = arith.addf %173, %187 : vector<32x256xf32>
    %c0_171 = arith.constant 0 : index
    %c0_172 = arith.constant 0 : index
    %189 = vector.load %arg7[%c0_171, %c0_172] : memref<32x1xf32, #tpu.memory_space<vmem>>, vector<32x1xf32>
    %190 = vector.broadcast %189 : vector<32x1xf32> to vector<32x256xf32>
    %191 = arith.addf %183, %190 : vector<32x256xf32>
    %cst_173 = arith.constant 0.000000e+00 : f32
    %192 = vector.shape_cast %22 : vector<1x256xi1> to vector<1x256xi1>
    %193 = vector.broadcast %192 : vector<1x256xi1> to vector<32x256xi1>
    %194 = vector.broadcast %cst_173 : f32 to vector<32x256xf32>
    %195 = arith.select %193, %178, %194 : vector<32x256xi1>, vector<32x256xf32>
    %196 = arith.addf %191, %195 : vector<32x256xf32>
    %cst_174 = arith.constant 0.000000e+00 : f32
    %197 = vector.shape_cast %24 : vector<1x256xi1> to vector<1x256xi1>
    %198 = vector.broadcast %197 : vector<1x256xi1> to vector<32x256xi1>
    %199 = vector.broadcast %cst_174 : f32 to vector<32x256xf32>
    %200 = arith.select %198, %188, %199 : vector<32x256xi1>, vector<32x256xf32>
    %201 = arith.addf %196, %200 : vector<32x256xf32>
    %cst_175 = arith.constant 0.000000e+00 : f32
    %202 = vector.broadcast %cst_175 : f32 to vector<32x256xf32>
    %203 = arith.maximumf %201, %202 : vector<32x256xf32>
    %204 = arith.truncf %203 : vector<32x256xf32> to vector<32x256xbf16>
    %c0_176 = arith.constant 0 : index
    %c128_177 = arith.constant 128 : index
    %205 = vector.load %arg11[%c0_176, %c128_177] : memref<32x401xbf16, #tpu.memory_space<vmem>>, vector<32x256xbf16>
    tpu.vector_store %arg11[%c0_176, %c128_177], %204 {strides = array<i32>} : memref<32x401xbf16, #tpu.memory_space<vmem>>, vector<32x256xbf16>,
    %c0_178 = arith.constant 0 : index
    %c111_179 = arith.constant 111 : index
    %206 = vector.load %arg11[%c0_178, %c111_179] : memref<32x401xbf16, #tpu.memory_space<vmem>>, vector<32x256xbf16>
    %c0_180 = arith.constant 0 : index
    %c0_181 = arith.constant 0 : index
    %c0_182 = arith.constant 0 : index
    %207 = vector.load %arg8[%c0_180, %c0_181, %c0_182] : memref<9x3x32xbf16, #tpu.memory_space<vmem>>, vector<1x3x32xbf16>
    %208 = vector.shape_cast %207 : vector<1x3x32xbf16> to vector<3x32xbf16>
    %cst_183 = arith.constant dense<0.000000e+00> : vector<3x256xf32>
    %209 = tpu.matmul %208, %206, %cst_183 {dimension_numbers = #tpu.dot_dimension_numbers<[1], [0], [0], [1], [0, 0, 1, 1], [], []>} : vector<3x32xbf16>, vector<32x256xbf16>, vector<3x256xf32> -> vector<3x256xf32>
    %c0_184 = arith.constant 0 : index
    %c112_185 = arith.constant 112 : index
    %210 = vector.load %arg11[%c0_184, %c112_185] : memref<32x401xbf16, #tpu.memory_space<vmem>>, vector<32x256xbf16>
    %c1_186 = arith.constant 1 : index
    %c0_187 = arith.constant 0 : index
    %c0_188 = arith.constant 0 : index
    %211 = vector.load %arg8[%c1_186, %c0_187, %c0_188] : memref<9x3x32xbf16, #tpu.memory_space<vmem>>, vector<1x3x32xbf16>
    %212 = vector.shape_cast %211 : vector<1x3x32xbf16> to vector<3x32xbf16>
    %cst_189 = arith.constant dense<0.000000e+00> : vector<3x256xf32>
    %213 = tpu.matmul %212, %210, %cst_189 {dimension_numbers = #tpu.dot_dimension_numbers<[1], [0], [0], [1], [0, 0, 1, 1], [], []>} : vector<3x32xbf16>, vector<32x256xbf16>, vector<3x256xf32> -> vector<3x256xf32>
    %c0_190 = arith.constant 0 : index
    %c113_191 = arith.constant 113 : index
    %214 = vector.load %arg11[%c0_190, %c113_191] : memref<32x401xbf16, #tpu.memory_space<vmem>>, vector<32x256xbf16>
    %c2_192 = arith.constant 2 : index
    %c0_193 = arith.constant 0 : index
    %c0_194 = arith.constant 0 : index
    %215 = vector.load %arg8[%c2_192, %c0_193, %c0_194] : memref<9x3x32xbf16, #tpu.memory_space<vmem>>, vector<1x3x32xbf16>
    %216 = vector.shape_cast %215 : vector<1x3x32xbf16> to vector<3x32xbf16>
    %cst_195 = arith.constant dense<0.000000e+00> : vector<3x256xf32>
    %217 = tpu.matmul %216, %214, %cst_195 {dimension_numbers = #tpu.dot_dimension_numbers<[1], [0], [0], [1], [0, 0, 1, 1], [], []>} : vector<3x32xbf16>, vector<32x256xbf16>, vector<3x256xf32> -> vector<3x256xf32>
    %c0_196 = arith.constant 0 : index
    %c127_197 = arith.constant 127 : index
    %218 = vector.load %arg11[%c0_196, %c127_197] : memref<32x401xbf16, #tpu.memory_space<vmem>>, vector<32x256xbf16>
    %c3_198 = arith.constant 3 : index
    %c0_199 = arith.constant 0 : index
    %c0_200 = arith.constant 0 : index
    %219 = vector.load %arg8[%c3_198, %c0_199, %c0_200] : memref<9x3x32xbf16, #tpu.memory_space<vmem>>, vector<1x3x32xbf16>
    %220 = vector.shape_cast %219 : vector<1x3x32xbf16> to vector<3x32xbf16>
    %cst_201 = arith.constant dense<0.000000e+00> : vector<3x256xf32>
    %221 = tpu.matmul %220, %218, %cst_201 {dimension_numbers = #tpu.dot_dimension_numbers<[1], [0], [0], [1], [0, 0, 1, 1], [], []>} : vector<3x32xbf16>, vector<32x256xbf16>, vector<3x256xf32> -> vector<3x256xf32>
    %222 = arith.addf %209, %221 : vector<3x256xf32>
    %c0_202 = arith.constant 0 : index
    %c128_203 = arith.constant 128 : index
    %223 = vector.load %arg11[%c0_202, %c128_203] : memref<32x401xbf16, #tpu.memory_space<vmem>>, vector<32x256xbf16>
    %c4_204 = arith.constant 4 : index
    %c0_205 = arith.constant 0 : index
    %c0_206 = arith.constant 0 : index
    %224 = vector.load %arg8[%c4_204, %c0_205, %c0_206] : memref<9x3x32xbf16, #tpu.memory_space<vmem>>, vector<1x3x32xbf16>
    %225 = vector.shape_cast %224 : vector<1x3x32xbf16> to vector<3x32xbf16>
    %cst_207 = arith.constant dense<0.000000e+00> : vector<3x256xf32>
    %226 = tpu.matmul %225, %223, %cst_207 {dimension_numbers = #tpu.dot_dimension_numbers<[1], [0], [0], [1], [0, 0, 1, 1], [], []>} : vector<3x32xbf16>, vector<32x256xbf16>, vector<3x256xf32> -> vector<3x256xf32>
    %227 = arith.addf %213, %226 : vector<3x256xf32>
    %c0_208 = arith.constant 0 : index
    %c129_209 = arith.constant 129 : index
    %228 = vector.load %arg11[%c0_208, %c129_209] : memref<32x401xbf16, #tpu.memory_space<vmem>>, vector<32x256xbf16>
    %c5_210 = arith.constant 5 : index
    %c0_211 = arith.constant 0 : index
    %c0_212 = arith.constant 0 : index
    %229 = vector.load %arg8[%c5_210, %c0_211, %c0_212] : memref<9x3x32xbf16, #tpu.memory_space<vmem>>, vector<1x3x32xbf16>
    %230 = vector.shape_cast %229 : vector<1x3x32xbf16> to vector<3x32xbf16>
    %cst_213 = arith.constant dense<0.000000e+00> : vector<3x256xf32>
    %231 = tpu.matmul %230, %228, %cst_213 {dimension_numbers = #tpu.dot_dimension_numbers<[1], [0], [0], [1], [0, 0, 1, 1], [], []>} : vector<3x32xbf16>, vector<32x256xbf16>, vector<3x256xf32> -> vector<3x256xf32>
    %232 = arith.addf %217, %231 : vector<3x256xf32>
    %c0_214 = arith.constant 0 : index
    %c143_215 = arith.constant 143 : index
    %233 = vector.load %arg11[%c0_214, %c143_215] : memref<32x401xbf16, #tpu.memory_space<vmem>>, vector<32x256xbf16>
    %c6_216 = arith.constant 6 : index
    %c0_217 = arith.constant 0 : index
    %c0_218 = arith.constant 0 : index
    %234 = vector.load %arg8[%c6_216, %c0_217, %c0_218] : memref<9x3x32xbf16, #tpu.memory_space<vmem>>, vector<1x3x32xbf16>
    %235 = vector.shape_cast %234 : vector<1x3x32xbf16> to vector<3x32xbf16>
    %cst_219 = arith.constant dense<0.000000e+00> : vector<3x256xf32>
    %236 = tpu.matmul %235, %233, %cst_219 {dimension_numbers = #tpu.dot_dimension_numbers<[1], [0], [0], [1], [0, 0, 1, 1], [], []>} : vector<3x32xbf16>, vector<32x256xbf16>, vector<3x256xf32> -> vector<3x256xf32>
    %237 = arith.addf %222, %236 : vector<3x256xf32>
    %c0_220 = arith.constant 0 : index
    %c144_221 = arith.constant 144 : index
    %238 = vector.load %arg11[%c0_220, %c144_221] : memref<32x401xbf16, #tpu.memory_space<vmem>>, vector<32x256xbf16>
    %c7_222 = arith.constant 7 : index
    %c0_223 = arith.constant 0 : index
    %c0_224 = arith.constant 0 : index
    %239 = vector.load %arg8[%c7_222, %c0_223, %c0_224] : memref<9x3x32xbf16, #tpu.memory_space<vmem>>, vector<1x3x32xbf16>
    %240 = vector.shape_cast %239 : vector<1x3x32xbf16> to vector<3x32xbf16>
    %cst_225 = arith.constant dense<0.000000e+00> : vector<3x256xf32>
    %241 = tpu.matmul %240, %238, %cst_225 {dimension_numbers = #tpu.dot_dimension_numbers<[1], [0], [0], [1], [0, 0, 1, 1], [], []>} : vector<3x32xbf16>, vector<32x256xbf16>, vector<3x256xf32> -> vector<3x256xf32>
    %242 = arith.addf %227, %241 : vector<3x256xf32>
    %c0_226 = arith.constant 0 : index
    %c145_227 = arith.constant 145 : index
    %243 = vector.load %arg11[%c0_226, %c145_227] : memref<32x401xbf16, #tpu.memory_space<vmem>>, vector<32x256xbf16>
    %c8_228 = arith.constant 8 : index
    %c0_229 = arith.constant 0 : index
    %c0_230 = arith.constant 0 : index
    %244 = vector.load %arg8[%c8_228, %c0_229, %c0_230] : memref<9x3x32xbf16, #tpu.memory_space<vmem>>, vector<1x3x32xbf16>
    %245 = vector.shape_cast %244 : vector<1x3x32xbf16> to vector<3x32xbf16>
    %cst_231 = arith.constant dense<0.000000e+00> : vector<3x256xf32>
    %246 = tpu.matmul %245, %243, %cst_231 {dimension_numbers = #tpu.dot_dimension_numbers<[1], [0], [0], [1], [0, 0, 1, 1], [], []>} : vector<3x32xbf16>, vector<32x256xbf16>, vector<3x256xf32> -> vector<3x256xf32>
    %247 = arith.addf %232, %246 : vector<3x256xf32>
    %c0_232 = arith.constant 0 : index
    %c0_233 = arith.constant 0 : index
    %248 = vector.load %arg9[%c0_232, %c0_233] : memref<3x1xf32, #tpu.memory_space<vmem>>, vector<3x1xf32>
    %249 = vector.broadcast %248 : vector<3x1xf32> to vector<3x256xf32>
    %250 = arith.addf %242, %249 : vector<3x256xf32>
    %cst_234 = arith.constant 0.000000e+00 : f32
    %251 = vector.shape_cast %22 : vector<1x256xi1> to vector<1x256xi1>
    %252 = vector.broadcast %251 : vector<1x256xi1> to vector<3x256xi1>
    %253 = vector.broadcast %cst_234 : f32 to vector<3x256xf32>
    %254 = arith.select %252, %237, %253 : vector<3x256xi1>, vector<3x256xf32>
    %255 = arith.addf %250, %254 : vector<3x256xf32>
    %cst_235 = arith.constant 0.000000e+00 : f32
    %256 = vector.shape_cast %24 : vector<1x256xi1> to vector<1x256xi1>
    %257 = vector.broadcast %256 : vector<1x256xi1> to vector<3x256xi1>
    %258 = vector.broadcast %cst_235 : f32 to vector<3x256xf32>
    %259 = arith.select %257, %247, %258 : vector<3x256xi1>, vector<3x256xf32>
    %260 = arith.addf %255, %259 : vector<3x256xf32>
    %c0_236 = arith.constant 0 : index
    %c0_237 = arith.constant 0 : index
    %c0_238 = arith.constant 0 : index
    %261 = vector.load %arg1[%c0_236, %c0_237, %c0_238] : memref<1x3x256xf32, #tpu.memory_space<vmem>>, vector<1x3x256xf32>
    %262 = vector.shape_cast %261 : vector<1x3x256xf32> to vector<3x256xf32>
    %263 = arith.addf %262, %260 : vector<3x256xf32>
    %c0_239 = arith.constant 0 : index
    %c0_240 = arith.constant 0 : index
    %c0_241 = arith.constant 0 : index
    %264 = vector.load %arg10[%c0_239, %c0_240, %c0_241] : memref<1x3x256xf32, #tpu.memory_space<vmem>>, vector<1x3x256xf32>
    %265 = vector.shape_cast %264 : vector<1x3x256xf32> to vector<3x256xf32>
    %266 = vector.shape_cast %263 : vector<3x256xf32> to vector<1x3x256xf32>
    tpu.vector_store %arg10[%c0_239, %c0_240, %c0_241], %266 {strides = array<i32>} : memref<1x3x256xf32, #tpu.memory_space<vmem>>, vector<1x3x256xf32>,
    return
  }
  func.func @transform_0(%arg0: i32) -> (i32, i32, i32) {
    %c0_i32 = arith.constant 0 : i32
    %c0_i32_0 = arith.constant 0 : i32
    %c0_i32_1 = arith.constant 0 : i32
    return %arg0, %c0_i32, %c0_i32_0 : i32, i32, i32
  }
  func.func @transform_1(%arg0: i32) -> (i32, i32, i32) {
    %c0_i32 = arith.constant 0 : i32
    %c0_i32_0 = arith.constant 0 : i32
    %c0_i32_1 = arith.constant 0 : i32
    %c0_i32_2 = arith.constant 0 : i32
    return %c0_i32, %c0_i32_0, %c0_i32_1 : i32, i32, i32
  }
  func.func @transform_2(%arg0: i32) -> (i32, i32) {
    %c0_i32 = arith.constant 0 : i32
    %c0_i32_0 = arith.constant 0 : i32
    %c0_i32_1 = arith.constant 0 : i32
    return %c0_i32, %c0_i32_0 : i32, i32
  }
  func.func @transform_3(%arg0: i32) -> (i32, i32, i32) {
    %c0_i32 = arith.constant 0 : i32
    %c0_i32_0 = arith.constant 0 : i32
    %c0_i32_1 = arith.constant 0 : i32
    %c0_i32_2 = arith.constant 0 : i32
    return %c0_i32, %c0_i32_0, %c0_i32_1 : i32, i32, i32
  }
  func.func @transform_4(%arg0: i32) -> (i32, i32) {
    %c0_i32 = arith.constant 0 : i32
    %c0_i32_0 = arith.constant 0 : i32
    %c0_i32_1 = arith.constant 0 : i32
    return %c0_i32, %c0_i32_0 : i32, i32
  }
  func.func @transform_5(%arg0: i32) -> (i32, i32, i32) {
    %c0_i32 = arith.constant 0 : i32
    %c0_i32_0 = arith.constant 0 : i32
    %c0_i32_1 = arith.constant 0 : i32
    %c0_i32_2 = arith.constant 0 : i32
    return %c0_i32, %c0_i32_0, %c0_i32_1 : i32, i32, i32
  }
  func.func @transform_6(%arg0: i32) -> (i32, i32) {
    %c0_i32 = arith.constant 0 : i32
    %c0_i32_0 = arith.constant 0 : i32
    %c0_i32_1 = arith.constant 0 : i32
    return %c0_i32, %c0_i32_0 : i32, i32
  }
  func.func @transform_7(%arg0: i32) -> (i32, i32, i32) {
    %c0_i32 = arith.constant 0 : i32
    %c0_i32_0 = arith.constant 0 : i32
    %c0_i32_1 = arith.constant 0 : i32
    %c0_i32_2 = arith.constant 0 : i32
    return %c0_i32, %c0_i32_0, %c0_i32_1 : i32, i32, i32
  }
  func.func @transform_8(%arg0: i32) -> (i32, i32) {
    %c0_i32 = arith.constant 0 : i32
    %c0_i32_0 = arith.constant 0 : i32
    %c0_i32_1 = arith.constant 0 : i32
    return %c0_i32, %c0_i32_0 : i32, i32
  }
  func.func @transform_9(%arg0: i32) -> (i32, i32, i32) {
    %c0_i32 = arith.constant 0 : i32
    %c0_i32_0 = arith.constant 0 : i32
    %c0_i32_1 = arith.constant 0 : i32
    return %arg0, %c0_i32, %c0_i32_0 : i32, i32, i32
  }
}

</mosaic_0001>

<llo_original>
// kernel: tpu_custom_call.1
$region0: #{tpu_custom_call.1}
  #allocation0 [shape = 'u32[]', space=smem, size = 0x4, offset = 0x4, fixed_abs, tag = 'smem constant byte address 0x4 - core index']
  #allocation1 [shape = 'u32[72,128]{1,0:T(1,128)}', space=vmem, size = 0x9000, scoped, tag = 'internal scratch']
  #allocation2 [shape = 'bf16[32,401]{1,0:T(8,128)(2,1)}', space=vmem, size = 0x8000, scoped, tag = 'scratch operand']
  %s0 = inlined_call_operand.vmem [shape: f32[2,3,256], index: 0, kind: input, shape index: {}]
  %s1 = inlined_call_operand.vmem [shape: bf16[9,32,3], index: 1, kind: input, shape index: {}]
  %s2 = inlined_call_operand.vmem [shape: f32[32,1], index: 2, kind: input, shape index: {}]
  %s3 = inlined_call_operand.vmem [shape: bf16[9,32,32], index: 3, kind: input, shape index: {}]
  %s4 = inlined_call_operand.vmem [shape: f32[32,1], index: 4, kind: input, shape index: {}]
  %s5 = inlined_call_operand.hbm [shape: bf16[9,32,32], index: 5, kind: input, shape index: {}]
  %s6 = inlined_call_operand.vmem [shape: f32[32,1], index: 6, kind: input, shape index: {}]
  %s7 = inlined_call_operand.vmem [shape: bf16[9,3,32], index: 7, kind: input, shape index: {}]
  %s8 = inlined_call_operand.vmem [shape: f32[3,1], index: 8, kind: input, shape index: {}]
  %s9 = inlined_call_operand.vmem [shape: f32[2,3,256], index: 9, kind: output, shape index: {}]
  %s10 = sld [smem:[#allocation0]]
  $region73: #{tpu_custom_call.1} parent=0
    _
  %s12 = ssub.s32 1, %s10
  %s13 = scalar_select 0, %s12, %s10
  $region1: #{tpu_custom_call.1} parent=0
    #allocation3 [shape = 'u8[73728]{0}', space=vmem, size = 0x12000, scoped, tag = 'input window, operand 5, single buffered']
    #allocation4 [shape = 's32[2]{0}', space=sflag, size = 0x8, scoped, tag = 'scoped memory for tpu_custom_call.1']
    %14 = vsyncpa [#allocation4], 0
    loop: start=0, step=1, limit=4
    $region2: #{tpu_custom_call.1} parent=1 // loop_pre_header
      _
    $region3: #{tpu_custom_call.1} parent=1 // loop_header
      %s16 = sphi 0, %s20
      %p17 = scmp.ge.s32.totalorder %s16, 4
      %s26 = sphi 0, %s28
      %s29 = sphi 0, %s26
      %s30 = sphi 0, %s29
      %s46 = sphi 0, %s30
      %s50 = sphi 0, %s50
      %s52 = sphi 0, %s50
      %s53 = sphi 0, %s52
      %s67 = sphi 0, %s53
      %s71 = sphi 0, %s71
      %s73 = sphi 0, %s71
      %s74 = sphi 0, %s73
      %s88 = sphi 0, %s74
      %s92 = sphi 0, %s92
      %s94 = sphi 0, %s92
      %s95 = sphi 0, %s94
      %s109 = sphi 0, %s95
      %s113 = sphi 0, %s113
      %s115 = sphi 0, %s113
      %s116 = sphi 0, %s115
      %s130 = sphi 0, %s116
      %s134 = sphi 0, %s134
      %s136 = sphi 0, %s134
      %s137 = sphi 0, %s136
      %s151 = sphi 0, %s137
      %s155 = sphi 0, %s155
      %s157 = sphi 0, %s155
      %s158 = sphi 0, %s157
      %s172 = sphi 0, %s158
      %s176 = sphi 0, %s176
      %s178 = sphi 0, %s176
      %s179 = sphi 0, %s178
      %s193 = sphi 0, %s179
      %s197 = sphi 0, %s197
      %s199 = sphi 0, %s197
      %s200 = sphi 0, %s199
      %s214 = sphi 0, %s200
      %s220 = sphi 0, %s222
      %s223 = sphi 0, %s220
      %s224 = sphi 0, %s223
      %s240 = sphi 0, %s224
    $region4: #{tpu_custom_call.1} parent=1 // loop_header_branch
      %19 = sbr.rel (%p17) target = $region8
    $region5: #{tpu_custom_call.1} parent=1 // loop_body
      %s21 = ssub.s32 %s16, 1
      %s22 = ssub.s32 %s16, 2
      %s23 = sadd.s32 %s16, 1
      %s24 = ssub.s32 %s16, %s23
      %p25 = scmp.eq.s32.totalorder %s24, 0
      %s27 = sadd.s32 %s26, 1
      %s28 = scalar_select %p25, %s26, %s27
      %p31 = pneg %p25
      %p32 = scmp.eq.s32.totalorder %s16, 1
      %p33 = por %p31, %p32
      %p34 = scmp.ne.s32.totalorder %s26, %s29
      %p35 = scmp.eq.s32.totalorder %s16, 0
      %p36 = por %p34, %p35
      %p37 = scmp.ne.s32.totalorder %s26, %s29
      %p38 = scmp.eq.s32.totalorder %s21, 1
      %p39 = por %p37, %p38
      %p40 = scmp.ne.s32.totalorder %s29, %s30
      %p41 = scmp.eq.s32.totalorder %s21, 0
      %p42 = por %p40, %p41
      %p43 = scmp.ne.s32.totalorder %s29, %s30
      %p44 = scmp.eq.s32.totalorder %s22, 1
      %p45 = por %p43, %p44
      %p47 = scmp.ne.s32.totalorder %s30, %s46
      %p48 = scmp.eq.s32.totalorder %s22, 0
      %p49 = por %p47, %p48
      %s51 = sadd.s32 %s50, 1
      %p54 = scmp.eq.s32.totalorder %s16, 1
      %p55 = scmp.ne.s32.totalorder %s50, %s52
      %p56 = scmp.eq.s32.totalorder %s16, 0
      %p57 = por %p55, %p56
      %p58 = scmp.ne.s32.totalorder %s50, %s52
      %p59 = scmp.eq.s32.totalorder %s21, 1
      %p60 = por %p58, %p59
      %p61 = scmp.ne.s32.totalorder %s52, %s53
      %p62 = scmp.eq.s32.totalorder %s21, 0
      %p63 = por %p61, %p62
      %p64 = scmp.ne.s32.totalorder %s52, %s53
      %p65 = scmp.eq.s32.totalorder %s22, 1
      %p66 = por %p64, %p65
      %p68 = scmp.ne.s32.totalorder %s53, %s67
      %p69 = scmp.eq.s32.totalorder %s22, 0
      %p70 = por %p68, %p69
      %s72 = sadd.s32 %s71, 1
      %p75 = scmp.eq.s32.totalorder %s16, 1
      %p76 = scmp.ne.s32.totalorder %s71, %s73
      %p77 = scmp.eq.s32.totalorder %s16, 0
      %p78 = por %p76, %p77
      %p79 = scmp.ne.s32.totalorder %s71, %s73
      %p80 = scmp.eq.s32.totalorder %s21, 1
      %p81 = por %p79, %p80
      %p82 = scmp.ne.s32.totalorder %s73, %s74
      %p83 = scmp.eq.s32.totalorder %s21, 0
      %p84 = por %p82, %p83
      %p85 = scmp.ne.s32.totalorder %s73, %s74
      %p86 = scmp.eq.s32.totalorder %s22, 1
      %p87 = por %p85, %p86
      %p89 = scmp.ne.s32.totalorder %s74, %s88
      %p90 = scmp.eq.s32.totalorder %s22, 0
      %p91 = por %p89, %p90
      %s93 = sadd.s32 %s92, 1
      %p96 = scmp.eq.s32.totalorder %s16, 1
      %p97 = scmp.ne.s32.totalorder %s92, %s94
      %p98 = scmp.eq.s32.totalorder %s16, 0
      %p99 = por %p97, %p98
      %p100 = scmp.ne.s32.totalorder %s92, %s94
      %p101 = scmp.eq.s32.totalorder %s21, 1
      %p102 = por %p100, %p101
      %p103 = scmp.ne.s32.totalorder %s94, %s95
      %p104 = scmp.eq.s32.totalorder %s21, 0
      %p105 = por %p103, %p104
      %p106 = scmp.ne.s32.totalorder %s94, %s95
      %p107 = scmp.eq.s32.totalorder %s22, 1
      %p108 = por %p106, %p107
      %p110 = scmp.ne.s32.totalorder %s95, %s109
      %p111 = scmp.eq.s32.totalorder %s22, 0
      %p112 = por %p110, %p111
      %s114 = sadd.s32 %s113, 1
      %p117 = scmp.eq.s32.totalorder %s16, 1
      %p118 = scmp.ne.s32.totalorder %s113, %s115
      %p119 = scmp.eq.s32.totalorder %s16, 0
      %p120 = por %p118, %p119
      %p121 = scmp.ne.s32.totalorder %s113, %s115
      %p122 = scmp.eq.s32.totalorder %s21, 1
      %p123 = por %p121, %p122
      %p124 = scmp.ne.s32.totalorder %s115, %s116
      %p125 = scmp.eq.s32.totalorder %s21, 0
      %p126 = por %p124, %p125
      %p127 = scmp.ne.s32.totalorder %s115, %s116
      %p128 = scmp.eq.s32.totalorder %s22, 1
      %p129 = por %p127, %p128
      %p131 = scmp.ne.s32.totalorder %s116, %s130
      %p132 = scmp.eq.s32.totalorder %s22, 0
      %p133 = por %p131, %p132
      %s135 = sadd.s32 %s134, 1
      %p138 = scmp.eq.s32.totalorder %s16, 1
      %p139 = scmp.ne.s32.totalorder %s134, %s136
      %p140 = scmp.eq.s32.totalorder %s16, 0
      %p141 = por %p139, %p140
      %p142 = scmp.ne.s32.totalorder %s134, %s136
      %p143 = scmp.eq.s32.totalorder %s21, 1
      %p144 = por %p142, %p143
      %p145 = scmp.ne.s32.totalorder %s136, %s137
      %p146 = scmp.eq.s32.totalorder %s21, 0
      %p147 = por %p145, %p146
      %p148 = scmp.ne.s32.totalorder %s136, %s137
      %p149 = scmp.eq.s32.totalorder %s22, 1
      %p150 = por %p148, %p149
      %p152 = scmp.ne.s32.totalorder %s137, %s151
      %p153 = scmp.eq.s32.totalorder %s22, 0
      %p154 = por %p152, %p153
      %s156 = sadd.s32 %s155, 1
      %p159 = scmp.eq.s32.totalorder %s16, 1
      %p160 = scmp.ne.s32.totalorder %s155, %s157
      %p161 = scmp.eq.s32.totalorder %s16, 0
      %p162 = por %p160, %p161
      %p163 = scmp.ne.s32.totalorder %s155, %s157
      %p164 = scmp.eq.s32.totalorder %s21, 1
      %p165 = por %p163, %p164
      %p166 = scmp.ne.s32.totalorder %s157, %s158
      %p167 = scmp.eq.s32.totalorder %s21, 0
      %p168 = por %p166, %p167
      %p169 = scmp.ne.s32.totalorder %s157, %s158
      %p170 = scmp.eq.s32.totalorder %s22, 1
      %p171 = por %p169, %p170
      %p173 = scmp.ne.s32.totalorder %s158, %s172
      %p174 = scmp.eq.s32.totalorder %s22, 0
      %p175 = por %p173, %p174
      %s177 = sadd.s32 %s176, 1
      %p180 = scmp.eq.s32.totalorder %s16, 1
      %p181 = scmp.ne.s32.totalorder %s176, %s178
      %p182 = scmp.eq.s32.totalorder %s16, 0
      %p183 = por %p181, %p182
      %p184 = scmp.ne.s32.totalorder %s176, %s178
      %p185 = scmp.eq.s32.totalorder %s21, 1
      %p186 = por %p184, %p185
      %p187 = scmp.ne.s32.totalorder %s178, %s179
      %p188 = scmp.eq.s32.totalorder %s21, 0
      %p189 = por %p187, %p188
      %p190 = scmp.ne.s32.totalorder %s178, %s179
      %p191 = scmp.eq.s32.totalorder %s22, 1
      %p192 = por %p190, %p191
      %p194 = scmp.ne.s32.totalorder %s179, %s193
      %p195 = scmp.eq.s32.totalorder %s22, 0
      %p196 = por %p194, %p195
      %s198 = sadd.s32 %s197, 1
      %p201 = scmp.eq.s32.totalorder %s16, 1
      %p202 = scmp.ne.s32.totalorder %s197, %s199
      %p203 = scmp.eq.s32.totalorder %s16, 0
      %p204 = por %p202, %p203
      %p205 = scmp.ne.s32.totalorder %s197, %s199
      %p206 = scmp.eq.s32.totalorder %s21, 1
      %p207 = por %p205, %p206
      %p208 = scmp.ne.s32.totalorder %s199, %s200
      %p209 = scmp.eq.s32.totalorder %s21, 0
      %p210 = por %p208, %p209
      %p211 = scmp.ne.s32.totalorder %s199, %s200
      %p212 = scmp.eq.s32.totalorder %s22, 1
      %p213 = por %p211, %p212
      %p215 = scmp.ne.s32.totalorder %s200, %s214
      %p216 = scmp.eq.s32.totalorder %s22, 0
      %p217 = por %p215, %p216
      %s218 = ssub.s32 %s16, %s23
      %p219 = scmp.eq.s32.totalorder %s218, 0
      %s221 = sadd.s32 %s220, 1
      %s222 = scalar_select %p219, %s220, %s221
      %p225 = pneg %p219
      %p226 = scmp.eq.s32.totalorder %s16, 1
      %p227 = por %p225, %p226
      %p228 = scmp.ne.s32.totalorder %s220, %s223
      %p229 = scmp.eq.s32.totalorder %s16, 0
      %p230 = por %p228, %p229
      %p231 = scmp.ne.s32.totalorder %s220, %s223
      %p232 = scmp.eq.s32.totalorder %s21, 1
      %p233 = por %p231, %p232
      %p234 = scmp.ne.s32.totalorder %s223, %s224
      %p235 = scmp.eq.s32.totalorder %s21, 0
      %p236 = por %p234, %p235
      %p237 = scmp.ne.s32.totalorder %s223, %s224
      %p238 = scmp.eq.s32.totalorder %s22, 1
      %p239 = por %p237, %p238
      %p241 = scmp.ne.s32.totalorder %s224, %s240
      %p242 = scmp.eq.s32.totalorder %s22, 0
      %p243 = por %p241, %p242
      %p244 = scmp.le.s32.totalorder 1, %s16
      %p245 = scmp.lt.s32.totalorder %s16, 3
      %p246 = pnand %p244, %p245
      %p247 = pneg %p246
      // Predicated region
      $region9: #{tpu_custom_call.1} parent=5 // pred_check
        _
      $region10: #{tpu_custom_call.1} parent=5 // pred_check_branch
        %249 = sbr.rel (%p246) target = $region12
      $region11: #{tpu_custom_call.1} parent=5 // pred_region
        %s250 = ssub.s32 %s16, 1
        // Predicated region
        $region13: #{tpu_custom_call.1} parent=11 // pred_check
          %p251 = pneg %p63
        $region14: #{tpu_custom_call.1} parent=11 // pred_check_branch
          %253 = sbr.rel (%p251) target = $region16
        $region15: #{tpu_custom_call.1} parent=11 // pred_region
          _
        $region16: #{tpu_custom_call.1} parent=11 // pred_fallthru
          _
        // Predicated region
        $region17: #{tpu_custom_call.1} parent=11 // pred_check
          %p254 = pneg %p84
        $region18: #{tpu_custom_call.1} parent=11 // pred_check_branch
          %256 = sbr.rel (%p254) target = $region20
        $region19: #{tpu_custom_call.1} parent=11 // pred_region
          _
        $region20: #{tpu_custom_call.1} parent=11 // pred_fallthru
          _
        // Predicated region
        $region21: #{tpu_custom_call.1} parent=11 // pred_check
          %p257 = pneg %p105
        $region22: #{tpu_custom_call.1} parent=11 // pred_check_branch
          %259 = sbr.rel (%p257) target = $region24
        $region23: #{tpu_custom_call.1} parent=11 // pred_region
          _
        $region24: #{tpu_custom_call.1} parent=11 // pred_fallthru
          _
        // Predicated region
        $region25: #{tpu_custom_call.1} parent=11 // pred_check
          %p260 = pneg %p126
        $region26: #{tpu_custom_call.1} parent=11 // pred_check_branch
          %262 = sbr.rel (%p260) target = $region28
        $region27: #{tpu_custom_call.1} parent=11 // pred_region
          _
        $region28: #{tpu_custom_call.1} parent=11 // pred_fallthru
          _
        // Predicated region
        $region29: #{tpu_custom_call.1} parent=11 // pred_check
          %p263 = pneg %p147
        $region30: #{tpu_custom_call.1} parent=11 // pred_check_branch
          %265 = sbr.rel (%p263) target = $region32
        $region31: #{tpu_custom_call.1} parent=11 // pred_region
          %267 = vsyncadd [#allocation4], 0
          %s268 = sshll.u32 %s5, 4
          %s269 = int_to_ptr.hbm [resolvable:$true] %s268
          %s270 = sshll.u32 [#allocation3], 4
          %s271 = int_to_ptr.vmem [resolvable:$true] %s270
          %276 = dma.hbm_to_vmem [thread:$0]  %s269, 2304, %s271, [#allocation4], 64, 64, 4
        $region32: #{tpu_custom_call.1} parent=11 // pred_fallthru
          _
        // Predicated region
        $region33: #{tpu_custom_call.1} parent=11 // pred_check
          %p277 = pneg %p168
        $region34: #{tpu_custom_call.1} parent=11 // pred_check_branch
          %279 = sbr.rel (%p277) target = $region36
        $region35: #{tpu_custom_call.1} parent=11 // pred_region
          _
        $region36: #{tpu_custom_call.1} parent=11 // pred_fallthru
          _
        // Predicated region
        $region37: #{tpu_custom_call.1} parent=11 // pred_check
          %p280 = pneg %p189
        $region38: #{tpu_custom_call.1} parent=11 // pred_check_branch
          %282 = sbr.rel (%p280) target = $region40
        $region39: #{tpu_custom_call.1} parent=11 // pred_region
          _
        $region40: #{tpu_custom_call.1} parent=11 // pred_fallthru
          _
        // Predicated region
        $region41: #{tpu_custom_call.1} parent=11 // pred_check
          %p283 = pneg %p210
        $region42: #{tpu_custom_call.1} parent=11 // pred_check_branch
          %285 = sbr.rel (%p283) target = $region44
        $region43: #{tpu_custom_call.1} parent=11 // pred_region
          _
        $region44: #{tpu_custom_call.1} parent=11 // pred_fallthru
          _
      $region12: #{tpu_custom_call.1} parent=5 // pred_fallthru
        _
      %p286 = scmp.lt.s32.totalorder %s16, 2
      // Predicated region
      $region45: #{tpu_custom_call.1} parent=5 // pred_check
        %p287 = pneg %p286
      $region46: #{tpu_custom_call.1} parent=5 // pred_check_branch
        %289 = sbr.rel (%p287) target = $region48
      $region47: #{tpu_custom_call.1} parent=5 // pred_region
        // Predicated region
        $region49: #{tpu_custom_call.1} parent=47 // pred_check
          %p290 = pneg %p36
        $region50: #{tpu_custom_call.1} parent=47 // pred_check_branch
          %292 = sbr.rel (%p290) target = $region52
        $region51: #{tpu_custom_call.1} parent=47 // pred_region
          %p293 = scmp.lt.s32.totalorder %s16, 1
          %s294 = scalar_select %p293, %s16, 1
          %s295 = smul.addr %s294, 2
          %s296 = smul.addr %s295, 4
          %s297 = scalar_lea.vmem %s0, %s296
        $region52: #{tpu_custom_call.1} parent=47 // pred_fallthru
          _
      $region48: #{tpu_custom_call.1} parent=5 // pred_fallthru
        _
      %p298 = scmp.le.s32.totalorder 1, %s16
      %p299 = scmp.lt.s32.totalorder %s16, 3
      %p300 = pnand %p298, %p299
      %p301 = pneg %p300
      // Predicated region
      $region53: #{tpu_custom_call.1} parent=5 // pred_check
        _
      $region54: #{tpu_custom_call.1} parent=5 // pred_check_branch
        %303 = sbr.rel (%p300) target = $region56
      $region55: #{tpu_custom_call.1} parent=5 // pred_region
        %s304 = ssub.s32 %s16, 1
        // Predicated region
        $region57: #{tpu_custom_call.1} parent=55 // pred_check
          %p305 = pneg %p147
        $region58: #{tpu_custom_call.1} parent=55 // pred_check_branch
          %307 = sbr.rel (%p305) target = $region60
        $region59: #{tpu_custom_call.1} parent=55 // pred_region
          %309 = dma.done [#allocation4], 2304
        $region60: #{tpu_custom_call.1} parent=55 // pred_fallthru
          _
        %p310 = scmp.lt.s32.totalorder %s21, 1
        %s311 = scalar_select %p310, %s21, 1
        %s312 = smul.addr %s311, 2
        %s313 = smul.addr %s312, 4
        %s314 = scalar_lea.vmem %s0, %s313
        %p315 = pneg %p42
        %p316 = pneg %p39
        %p317 = pneg %p63
        %p318 = pneg %p60
        %p319 = pneg %p84
        %p320 = pneg %p81
        %p321 = pneg %p105
        %p322 = pneg %p102
        %p323 = pneg %p126
        %p324 = pneg %p123
        %p325 = pneg %p147
        %p326 = pneg %p144
        %p327 = pneg %p168
        %p328 = pneg %p165
        %p329 = pneg %p189
        %p330 = pneg %p186
        %p331 = pneg %p210
        %p332 = pneg %p207
        %p333 = pneg %p236
        %p334 = pneg %p233
        %p335 = scmp.lt.s32.totalorder %s21, 1
        %s336 = scalar_select %p335, %s21, 1
        %s337 = smul.addr %s336, 2
        %s338 = smul.addr %s337, 4
        %s339 = scalar_lea.vmem %s9, %s338
        %p340 = scmp.lt.s32.totalorder %s21, 1
        %s341 = scalar_select %p340, %s21, 1
        %s342 = smul.addr %s341, 2
        %s343 = smul.addr %s342, 4
        %s344 = scalar_lea.vmem %s0, %s343
        %p345 = scmp.lt.s32.totalorder %s21, 1
        %s346 = scalar_select %p345, %s21, 1
        %s347 = smul.addr %s346, 2
        %s348 = smul.addr %s347, 4
        %s349 = scalar_lea.vmem %s9, %s348
        %351 = vst [vmem:[#allocation2] sm:$0xf] 0
        %352 = vst [vmem:[#allocation2 + $0x10] sm:$0xf] 0
        %353 = vst [vmem:[#allocation2 + $0x20] sm:$0xf] 0
        %354 = vst [vmem:[#allocation2 + $0x30] sm:$0xf] 0
        %vm355 = vcmask 134144
        %356 = vst.msk [vmem:[#allocation2 + $0xc] sm:$0xf] %vm355, 0
        %357 = vst.msk [vmem:[#allocation2 + $0x1c] sm:$0xf] %vm355, 0
        %358 = vst.msk [vmem:[#allocation2 + $0x2c] sm:$0xf] %vm355, 0
        %359 = vst.msk [vmem:[#allocation2 + $0x3c] sm:$0xf] %vm355, 0
        %v360 = vlaneseq
        %v361 = vand.u32 %v360, 127
        %v362 = vadd.s32 %v361, 128
        %vm363 = vcmp.lt.s32.totalorder %v361, 0
        %v364 = vsub.s32 0, %v361
        %v365 = vsel %vm363, %v364, %v361
        %v366 = vshrl.u32 %v365, 4
        %v367 = vand.u32 %v365, 15
        %v368 = vsub.s32 0, %v367
        %v369 = vsel %vm363, %v368, %v367
        %vm370 = vcmp.lt.s32.totalorder %v362, 0
        %v371 = vsub.s32 0, %v362
        %v372 = vsel %vm370, %v371, %v362
        %v373 = vshrl.u32 %v372, 4
        %v374 = vand.u32 %v372, 15
        %v375 = vsub.s32 0, %v374
        %v376 = vsel %vm370, %v375, %v374
        %vm377 = vcmp.ne.s32.totalorder %v369, 0
        %vm378 = vcmp.ne.s32.totalorder %v376, 0
        %vm379 = vcmp.lt.s32.totalorder %v369, 0
        %vm380 = vcmp.lt.s32.totalorder %v376, 0
        %vm381 = vmand %vm379, %vm377
        %vm382 = vmand %vm380, %vm378
        %v383 = vadd.s32 %v369, 16
        %v384 = vadd.s32 %v376, 16
        %v385 = vsel %vm381, %v383, %v369
        %v386 = vsel %vm382, %v384, %v376
        %vm387 = vcmp.gt.s32.totalorder %v385, 0
        %vm388 = vcmp.gt.s32.totalorder %v386, 0
        %vm389 = vcmp.lt.s32.totalorder %v385, 15
        %vm390 = vcmp.lt.s32.totalorder %v386, 15
        %v391 = vld [vmem:[%s344] sm:$0x77]
        %393 = vst [vmem:[#allocation1] ss:$2 sm:$0xff] %v391
        %v394 = vld.sshfl [vmem:[#allocation1] sm:$0xff pattern:$0x75316420]
        %v395 = vld.sshfl [vmem:[#allocation1 + $0x8] sm:$0xff pattern:$0x75316420]
        %v398 = vpack.c.bf16 %v395, %v394
        %vm399 = vcmask 1041408
        %vm400 = vsmask.f32 1280
        %vm401 = vmand %vm399, %vm400
        %vm402 = vcmask 1045508
        %vm403 = vsmask.f32 5376
        %vm404 = vmand %vm402, %vm403
        %vm405 = vmor %vm404, %vm401
        %v406 = vld [vmem:[#allocation2 + $0x4] sm:$0x33]
        %v407 = vsel %vm405, %v398, %v406
        %408 = vst [vmem:[#allocation2 + $0x4] sm:$0x33] %v407
        %v409 = vld [vmem:[#allocation2] sm:$0x33]
        %v410 = vld [vmem:[#allocation2 + $0x8] sm:$0x3]
        %v411 = vld [vmem:[%s1] sm:$0xf]
        %v412 = vld [vmem:[%s1 + $0x4] sm:$0xf]
        %v413 = vld [vmem:[%s1 + $0x8] sm:$0xf]
        %v414 = vld [vmem:[%s1 + $0xc] sm:$0xf]
        %s415 = scalar_lea.vmem %s1, 16
        %v416 = vld [vmem:[%s415] sm:$0xf]
        %v417 = vld [vmem:[%s415 + $0x4] sm:$0xf]
        %v418 = vld [vmem:[%s415 + $0x8] sm:$0xf]
        %v419 = vld [vmem:[%s415 + $0xc] sm:$0xf]
        %s420 = scalar_lea.vmem %s1, 32
        %v421 = vld [vmem:[%s420] sm:$0xf]
        %v422 = vld [vmem:[%s420 + $0x4] sm:$0xf]
        %v423 = vld [vmem:[%s420 + $0x8] sm:$0xf]
        %v424 = vld [vmem:[%s420 + $0xc] sm:$0xf]
        %s425 = scalar_lea.vmem %s1, 48
        %v426 = vld [vmem:[%s425] sm:$0xf]
        %v427 = vld [vmem:[%s425 + $0x4] sm:$0xf]
        %v428 = vld [vmem:[%s425 + $0x8] sm:$0xf]
        %v429 = vld [vmem:[%s425 + $0xc] sm:$0xf]
        %v434 = vunpack.c.l.b16 %v426
        %v435 = vunpack.c.l.b16 %v427
        %v436 = vunpack.c.l.b16 %v428
        %v437 = vunpack.c.l.b16 %v429
        %v438 = vpack.c.b16 %v435, %v434
        %v439 = vpack.c.b16 %v437, %v436
        %v442 = vunpack.c.l.b16 %v409
        %v443 = vunpack.c.h.b16 %v409
        %v444 = vunpack.c.l.b16 %v410
        %v445 = vpack.c.b16 %v442, %v442
        %v446 = vpack.c.b16 %v443, %v443
        %v447 = vpack.c.b16 %v444, %v444
        %448 = vrot.lane.b32.xlu0 %v445, 1
        %v449 = vpop.permute.xlu0 %448
        %450 = vrot.lane.b32.xlu0 %v446, 1
        %v451 = vpop.permute.xlu0 %450
        %452 = vrot.lane.b32.xlu0 %v447, 1
        %v453 = vpop.permute.xlu0 %452
        %vm454 = vcmask 7168
        %v455 = vsel %vm454, %v449, %v451
        %v456 = vsel %vm454, %v451, %v453
        %vm457 = vcmask 23552
        %v459 = vsel %vm457, %v438, 0
        %v462 = vsel %vm457, %v439, 0
        %vm464 = vcmask 1040384
        %vm465 = vcmask 1041408
        %v466 = vsel %vm464, 4294967295, 65535
        %v467 = vsel %vm465, %v466, 0
        %v469 = vand.u32 %v455, %v467
        %v472 = vand.u32 %v456, %v467
        %474 = vmatpush.bf16.msra.mxu0 0
        %475 = vmatpush.bf16.msra.mxu0 0
        %476 = vmatpush.bf16.msra.mxu0 0
        %477 = vmatpush.bf16.msra.mxu0 0
        %478 = vmatpush.bf16.msra.mxu0 0
        %479 = vmatpush.bf16.msra.mxu0 0
        %480 = vmatpush.bf16.msra.mxu0 0
        %481 = vmatpush.bf16.msra.mxu0 %v469
        %482 = vmatmul.bf16.gmra.mxu0 %v459
        %v483 = vpop.f32.mrf.mxu0
        %v484 = vadd.f32 0.0, %v483
        %v485 = vpop.f32.mrf.mxu0
        %v486 = vadd.f32 0.0, %v485
        %487 = vmatmul.bf16.gmra.mxu0 %v462
        %v488 = vpop.f32.mrf.mxu0
        %v489 = vadd.f32 0.0, %v488
        %v490 = vpop.f32.mrf.mxu0
        %v491 = vadd.f32 0.0, %v490
        %492 = vdwg.mxu0
        %493 = vmatpush.bf16.msra.mxu0 0
        %494 = vmatpush.bf16.msra.mxu0 0
        %495 = vmatpush.bf16.msra.mxu0 0
        %496 = vmatpush.bf16.msra.mxu0 0
        %497 = vmatpush.bf16.msra.mxu0 0
        %498 = vmatpush.bf16.msra.mxu0 0
        %499 = vmatpush.bf16.msra.mxu0 0
        %500 = vmatpush.bf16.msra.mxu0 %v472
        %501 = vmatmul.bf16.gmra.mxu0 %v459
        %v502 = vpop.f32.mrf.mxu0
        %v503 = vadd.f32 0.0, %v502
        %v504 = vpop.f32.mrf.mxu0
        %v505 = vadd.f32 0.0, %v504
        %506 = vmatmul.bf16.gmra.mxu0 %v462
        %v507 = vpop.f32.mrf.mxu0
        %v508 = vadd.f32 0.0, %v507
        %v509 = vpop.f32.mrf.mxu0
        %v510 = vadd.f32 0.0, %v509
        %511 = vdwg.mxu0
        %v516 = vunpack.c.l.b16 %v411
        %v517 = vunpack.c.l.b16 %v412
        %v518 = vunpack.c.l.b16 %v413
        %v519 = vunpack.c.l.b16 %v414
        %v520 = vpack.c.b16 %v517, %v516
        %v521 = vpack.c.b16 %v519, %v518
        %522 = vrot.lane.b32.xlu0 %v445, 17
        %v523 = vpop.permute.xlu0 %522
        %524 = vrot.lane.b32.xlu0 %v446, 17
        %v525 = vpop.permute.xlu0 %524
        %526 = vrot.lane.b32.xlu0 %v447, 17
        %v527 = vpop.permute.xlu0 %526
        %vm528 = vcmask 138240
        %v529 = vsel %vm528, %v523, %v525
        %v530 = vsel %vm528, %v525, %v527
        %v532 = vsel %vm457, %v520, 0
        %v535 = vsel %vm457, %v521, 0
        %v538 = vand.u32 %v529, %v467
        %v541 = vand.u32 %v530, %v467
        %543 = vmatpush.bf16.msra.mxu0 0
        %544 = vmatpush.bf16.msra.mxu0 0
        %545 = vmatpush.bf16.msra.mxu0 0
        %546 = vmatpush.bf16.msra.mxu0 0
        %547 = vmatpush.bf16.msra.mxu0 0
        %548 = vmatpush.bf16.msra.mxu0 0
        %549 = vmatpush.bf16.msra.mxu0 0
        %550 = vmatpush.bf16.msra.mxu0 %v538
        %551 = vmatmul.bf16.gmra.mxu0 %v532
        %v552 = vpop.f32.mrf.mxu0
        %v553 = vadd.f32 %v484, %v552
        %v554 = vpop.f32.mrf.mxu0
        %v555 = vadd.f32 %v486, %v554
        %556 = vmatmul.bf16.gmra.mxu0 %v535
        %v557 = vpop.f32.mrf.mxu0
        %v558 = vadd.f32 %v489, %v557
        %v559 = vpop.f32.mrf.mxu0
        %v560 = vadd.f32 %v491, %v559
        %561 = vdwg.mxu0
        %562 = vmatpush.bf16.msra.mxu0 0
        %563 = vmatpush.bf16.msra.mxu0 0
        %564 = vmatpush.bf16.msra.mxu0 0
        %565 = vmatpush.bf16.msra.mxu0 0
        %566 = vmatpush.bf16.msra.mxu0 0
        %567 = vmatpush.bf16.msra.mxu0 0
        %568 = vmatpush.bf16.msra.mxu0 0
        %569 = vmatpush.bf16.msra.mxu0 %v541
        %570 = vmatmul.bf16.gmra.mxu0 %v532
        %v571 = vpop.f32.mrf.mxu0
        %v572 = vadd.f32 %v503, %v571
        %v573 = vpop.f32.mrf.mxu0
        %v574 = vadd.f32 %v505, %v573
        %575 = vmatmul.bf16.gmra.mxu0 %v535
        %v576 = vpop.f32.mrf.mxu0
        %v577 = vadd.f32 %v508, %v576
        %v578 = vpop.f32.mrf.mxu0
        %v579 = vadd.f32 %v510, %v578
        %580 = vdwg.mxu0
        %v581 = vld [vmem:[#allocation2 + $0x4] sm:$0x33]
        %s582 = scalar_lea.vmem %s1, 64
        %v583 = vld [vmem:[%s582] sm:$0xf]
        %v584 = vld [vmem:[%s582 + $0x4] sm:$0xf]
        %v585 = vld [vmem:[%s582 + $0x8] sm:$0xf]
        %v586 = vld [vmem:[%s582 + $0xc] sm:$0xf]
        %v591 = vunpack.c.l.b16 %v583
        %v592 = vunpack.c.l.b16 %v584
        %v593 = vunpack.c.l.b16 %v585
        %v594 = vunpack.c.l.b16 %v586
        %v595 = vpack.c.b16 %v592, %v591
        %v596 = vpack.c.b16 %v594, %v593
        %v598 = vunpack.c.l.b16 %v581
        %v599 = vunpack.c.h.b16 %v581
        %v600 = vpack.c.b16 %v598, %v598
        %v601 = vpack.c.b16 %v599, %v599
        %v603 = vsel %vm457, %v595, 0
        %v606 = vsel %vm457, %v596, 0
        %v609 = vand.u32 %v600, %v467
        %v612 = vand.u32 %v601, %v467
        %614 = vmatpush.bf16.msra.mxu0 0
        %615 = vmatpush.bf16.msra.mxu0 0
        %616 = vmatpush.bf16.msra.mxu0 0
        %617 = vmatpush.bf16.msra.mxu0 0
        %618 = vmatpush.bf16.msra.mxu0 0
        %619 = vmatpush.bf16.msra.mxu0 0
        %620 = vmatpush.bf16.msra.mxu0 0
        %621 = vmatpush.bf16.msra.mxu0 %v609
        %622 = vmatmul.bf16.gmra.mxu0 %v603
        %v623 = vpop.f32.mrf.mxu0
        %v624 = vadd.f32 0.0, %v623
        %v625 = vpop.f32.mrf.mxu0
        %v626 = vadd.f32 0.0, %v625
        %627 = vmatmul.bf16.gmra.mxu0 %v606
        %v628 = vpop.f32.mrf.mxu0
        %v629 = vadd.f32 0.0, %v628
        %v630 = vpop.f32.mrf.mxu0
        %v631 = vadd.f32 0.0, %v630
        %632 = vdwg.mxu0
        %633 = vmatpush.bf16.msra.mxu0 0
        %634 = vmatpush.bf16.msra.mxu0 0
        %635 = vmatpush.bf16.msra.mxu0 0
        %636 = vmatpush.bf16.msra.mxu0 0
        %637 = vmatpush.bf16.msra.mxu0 0
        %638 = vmatpush.bf16.msra.mxu0 0
        %639 = vmatpush.bf16.msra.mxu0 0
        %640 = vmatpush.bf16.msra.mxu0 %v612
        %641 = vmatmul.bf16.gmra.mxu0 %v603
        %v642 = vpop.f32.mrf.mxu0
        %v643 = vadd.f32 0.0, %v642
        %v644 = vpop.f32.mrf.mxu0
        %v645 = vadd.f32 0.0, %v644
        %646 = vmatmul.bf16.gmra.mxu0 %v606
        %v647 = vpop.f32.mrf.mxu0
        %v648 = vadd.f32 0.0, %v647
        %v649 = vpop.f32.mrf.mxu0
        %v650 = vadd.f32 0.0, %v649
        %651 = vdwg.mxu0
        %v656 = vunpack.c.l.b16 %v416
        %v657 = vunpack.c.l.b16 %v417
        %v658 = vunpack.c.l.b16 %v418
        %v659 = vunpack.c.l.b16 %v419
        %v660 = vpack.c.b16 %v657, %v656
        %v661 = vpack.c.b16 %v659, %v658
        %662 = vrot.lane.b32.xlu0 %v445, 16
        %v663 = vpop.permute.xlu0 %662
        %664 = vrot.lane.b32.xlu0 %v446, 16
        %v665 = vpop.permute.xlu0 %664
        %666 = vrot.lane.b32.xlu0 %v447, 16
        %v667 = vpop.permute.xlu0 %666
        %vm668 = vcmask 130048
        %v669 = vsel %vm668, %v663, %v665
        %v670 = vsel %vm668, %v665, %v667
        %v672 = vsel %vm457, %v660, 0
        %v675 = vsel %vm457, %v661, 0
        %v678 = vand.u32 %v669, %v467
        %v681 = vand.u32 %v670, %v467
        %683 = vmatpush.bf16.msra.mxu0 0
        %684 = vmatpush.bf16.msra.mxu0 0
        %685 = vmatpush.bf16.msra.mxu0 0
        %686 = vmatpush.bf16.msra.mxu0 0
        %687 = vmatpush.bf16.msra.mxu0 0
        %688 = vmatpush.bf16.msra.mxu0 0
        %689 = vmatpush.bf16.msra.mxu0 0
        %690 = vmatpush.bf16.msra.mxu0 %v678
        %691 = vmatmul.bf16.gmra.mxu0 %v672
        %v692 = vpop.f32.mrf.mxu0
        %v693 = vadd.f32 %v624, %v692
        %v694 = vpop.f32.mrf.mxu0
        %v695 = vadd.f32 %v626, %v694
        %696 = vmatmul.bf16.gmra.mxu0 %v675
        %v697 = vpop.f32.mrf.mxu0
        %v698 = vadd.f32 %v629, %v697
        %v699 = vpop.f32.mrf.mxu0
        %v700 = vadd.f32 %v631, %v699
        %701 = vdwg.mxu0
        %702 = vmatpush.bf16.msra.mxu0 0
        %703 = vmatpush.bf16.msra.mxu0 0
        %704 = vmatpush.bf16.msra.mxu0 0
        %705 = vmatpush.bf16.msra.mxu0 0
        %706 = vmatpush.bf16.msra.mxu0 0
        %707 = vmatpush.bf16.msra.mxu0 0
        %708 = vmatpush.bf16.msra.mxu0 0
        %709 = vmatpush.bf16.msra.mxu0 %v681
        %710 = vmatmul.bf16.gmra.mxu0 %v672
        %v711 = vpop.f32.mrf.mxu0
        %v712 = vadd.f32 %v643, %v711
        %v713 = vpop.f32.mrf.mxu0
        %v714 = vadd.f32 %v645, %v713
        %715 = vmatmul.bf16.gmra.mxu0 %v675
        %v716 = vpop.f32.mrf.mxu0
        %v717 = vadd.f32 %v648, %v716
        %v718 = vpop.f32.mrf.mxu0
        %v719 = vadd.f32 %v650, %v718
        %720 = vdwg.mxu0
        %v721 = vld [vmem:[#allocation2 + $0x4] sm:$0x33]
        %v722 = vld [vmem:[#allocation2 + $0xc] sm:$0x3]
        %s723 = scalar_lea.vmem %s1, 80
        %v724 = vld [vmem:[%s723] sm:$0xf]
        %v725 = vld [vmem:[%s723 + $0x4] sm:$0xf]
        %v726 = vld [vmem:[%s723 + $0x8] sm:$0xf]
        %v727 = vld [vmem:[%s723 + $0xc] sm:$0xf]
        %v732 = vunpack.c.l.b16 %v724
        %v733 = vunpack.c.l.b16 %v725
        %v734 = vunpack.c.l.b16 %v726
        %v735 = vunpack.c.l.b16 %v727
        %v736 = vpack.c.b16 %v733, %v732
        %v737 = vpack.c.b16 %v735, %v734
        %v740 = vunpack.c.l.b16 %v721
        %v741 = vunpack.c.h.b16 %v721
        %v742 = vunpack.c.l.b16 %v722
        %v743 = vpack.c.b16 %v740, %v740
        %v744 = vpack.c.b16 %v741, %v741
        %v745 = vpack.c.b16 %v742, %v742
        %746 = vrot.lane.b32.xlu0 %v743, 127
        %v747 = vpop.permute.xlu0 %746
        %748 = vrot.lane.b32.xlu0 %v744, 127
        %v749 = vpop.permute.xlu0 %748
        %750 = vrot.lane.b32.xlu0 %v745, 127
        %v751 = vpop.permute.xlu0 %750
        %vm752 = vcmask 1039360
        %v753 = vsel %vm752, %v747, %v749
        %v754 = vsel %vm752, %v749, %v751
        %v756 = vsel %vm457, %v736, 0
        %v759 = vsel %vm457, %v737, 0
        %v762 = vand.u32 %v753, %v467
        %v765 = vand.u32 %v754, %v467
        %767 = vmatpush.bf16.msra.mxu0 0
        %768 = vmatpush.bf16.msra.mxu0 0
        %769 = vmatpush.bf16.msra.mxu0 0
        %770 = vmatpush.bf16.msra.mxu0 0
        %771 = vmatpush.bf16.msra.mxu0 0
        %772 = vmatpush.bf16.msra.mxu0 0
        %773 = vmatpush.bf16.msra.mxu0 0
        %774 = vmatpush.bf16.msra.mxu0 %v762
        %775 = vmatmul.bf16.gmra.mxu0 %v756
        %v776 = vpop.f32.mrf.mxu0
        %v777 = vadd.f32 0.0, %v776
        %v778 = vpop.f32.mrf.mxu0
        %v779 = vadd.f32 0.0, %v778
        %780 = vmatmul.bf16.gmra.mxu0 %v759
        %v781 = vpop.f32.mrf.mxu0
        %v782 = vadd.f32 0.0, %v781
        %v783 = vpop.f32.mrf.mxu0
        %v784 = vadd.f32 0.0, %v783
        %785 = vdwg.mxu0
        %786 = vmatpush.bf16.msra.mxu0 0
        %787 = vmatpush.bf16.msra.mxu0 0
        %788 = vmatpush.bf16.msra.mxu0 0
        %789 = vmatpush.bf16.msra.mxu0 0
        %790 = vmatpush.bf16.msra.mxu0 0
        %791 = vmatpush.bf16.msra.mxu0 0
        %792 = vmatpush.bf16.msra.mxu0 0
        %793 = vmatpush.bf16.msra.mxu0 %v765
        %794 = vmatmul.bf16.gmra.mxu0 %v756
        %v795 = vpop.f32.mrf.mxu0
        %v796 = vadd.f32 0.0, %v795
        %v797 = vpop.f32.mrf.mxu0
        %v798 = vadd.f32 0.0, %v797
        %799 = vmatmul.bf16.gmra.mxu0 %v759
        %v800 = vpop.f32.mrf.mxu0
        %v801 = vadd.f32 0.0, %v800
        %v802 = vpop.f32.mrf.mxu0
        %v803 = vadd.f32 0.0, %v802
        %804 = vdwg.mxu0
        %v809 = vunpack.c.l.b16 %v421
        %v810 = vunpack.c.l.b16 %v422
        %v811 = vunpack.c.l.b16 %v423
        %v812 = vunpack.c.l.b16 %v424
        %v813 = vpack.c.b16 %v810, %v809
        %v814 = vpack.c.b16 %v812, %v811
        %815 = vrot.lane.b32.xlu0 %v445, 15
        %v816 = vpop.permute.xlu0 %815
        %817 = vrot.lane.b32.xlu0 %v446, 15
        %v818 = vpop.permute.xlu0 %817
        %819 = vrot.lane.b32.xlu0 %v447, 15
        %v820 = vpop.permute.xlu0 %819
        %vm821 = vcmask 121856
        %v822 = vsel %vm821, %v816, %v818
        %v823 = vsel %vm821, %v818, %v820
        %v825 = vsel %vm457, %v813, 0
        %v828 = vsel %vm457, %v814, 0
        %v831 = vand.u32 %v822, %v467
        %v834 = vand.u32 %v823, %v467
        %836 = vmatpush.bf16.msra.mxu0 0
        %837 = vmatpush.bf16.msra.mxu0 0
        %838 = vmatpush.bf16.msra.mxu0 0
        %839 = vmatpush.bf16.msra.mxu0 0
        %840 = vmatpush.bf16.msra.mxu0 0
        %841 = vmatpush.bf16.msra.mxu0 0
        %842 = vmatpush.bf16.msra.mxu0 0
        %843 = vmatpush.bf16.msra.mxu0 %v831
        %844 = vmatmul.bf16.gmra.mxu0 %v825
        %v845 = vpop.f32.mrf.mxu0
        %v846 = vadd.f32 %v777, %v845
        %v847 = vpop.f32.mrf.mxu0
        %v848 = vadd.f32 %v779, %v847
        %849 = vmatmul.bf16.gmra.mxu0 %v828
        %v850 = vpop.f32.mrf.mxu0
        %v851 = vadd.f32 %v782, %v850
        %v852 = vpop.f32.mrf.mxu0
        %v853 = vadd.f32 %v784, %v852
        %854 = vdwg.mxu0
        %855 = vmatpush.bf16.msra.mxu0 0
        %856 = vmatpush.bf16.msra.mxu0 0
        %857 = vmatpush.bf16.msra.mxu0 0
        %858 = vmatpush.bf16.msra.mxu0 0
        %859 = vmatpush.bf16.msra.mxu0 0
        %860 = vmatpush.bf16.msra.mxu0 0
        %861 = vmatpush.bf16.msra.mxu0 0
        %862 = vmatpush.bf16.msra.mxu0 %v834
        %863 = vmatmul.bf16.gmra.mxu0 %v825
        %v864 = vpop.f32.mrf.mxu0
        %v865 = vadd.f32 %v796, %v864
        %v866 = vpop.f32.mrf.mxu0
        %v867 = vadd.f32 %v798, %v866
        %868 = vmatmul.bf16.gmra.mxu0 %v828
        %v869 = vpop.f32.mrf.mxu0
        %v870 = vadd.f32 %v801, %v869
        %v871 = vpop.f32.mrf.mxu0
        %v872 = vadd.f32 %v803, %v871
        %873 = vdwg.mxu0
        %s874 = scalar_lea.vmem %s1, 96
        %v875 = vld [vmem:[%s874] sm:$0xf]
        %v876 = vld [vmem:[%s874 + $0x4] sm:$0xf]
        %v877 = vld [vmem:[%s874 + $0x8] sm:$0xf]
        %v878 = vld [vmem:[%s874 + $0xc] sm:$0xf]
        %v883 = vunpack.c.l.b16 %v875
        %v884 = vunpack.c.l.b16 %v876
        %v885 = vunpack.c.l.b16 %v877
        %v886 = vunpack.c.l.b16 %v878
        %v887 = vpack.c.b16 %v884, %v883
        %v888 = vpack.c.b16 %v886, %v885
        %889 = vrot.lane.b32.xlu0 %v743, 113
        %v890 = vpop.permute.xlu0 %889
        %891 = vrot.lane.b32.xlu0 %v744, 113
        %v892 = vpop.permute.xlu0 %891
        %893 = vrot.lane.b32.xlu0 %v745, 113
        %v894 = vpop.permute.xlu0 %893
        %vm895 = vcmask 924672
        %v896 = vsel %vm895, %v890, %v892
        %v897 = vsel %vm895, %v892, %v894
        %v899 = vsel %vm457, %v887, 0
        %v902 = vsel %vm457, %v888, 0
        %v905 = vand.u32 %v896, %v467
        %v908 = vand.u32 %v897, %v467
        %910 = vmatpush.bf16.msra.mxu0 0
        %911 = vmatpush.bf16.msra.mxu0 0
        %912 = vmatpush.bf16.msra.mxu0 0
        %913 = vmatpush.bf16.msra.mxu0 0
        %914 = vmatpush.bf16.msra.mxu0 0
        %915 = vmatpush.bf16.msra.mxu0 0
        %916 = vmatpush.bf16.msra.mxu0 0
        %917 = vmatpush.bf16.msra.mxu0 %v905
        %918 = vmatmul.bf16.gmra.mxu0 %v899
        %v919 = vpop.f32.mrf.mxu0
        %v920 = vadd.f32 0.0, %v919
        %v921 = vpop.f32.mrf.mxu0
        %v922 = vadd.f32 0.0, %v921
        %923 = vmatmul.bf16.gmra.mxu0 %v902
        %v924 = vpop.f32.mrf.mxu0
        %v925 = vadd.f32 0.0, %v924
        %v926 = vpop.f32.mrf.mxu0
        %v927 = vadd.f32 0.0, %v926
        %928 = vdwg.mxu0
        %929 = vmatpush.bf16.msra.mxu0 0
        %930 = vmatpush.bf16.msra.mxu0 0
        %931 = vmatpush.bf16.msra.mxu0 0
        %932 = vmatpush.bf16.msra.mxu0 0
        %933 = vmatpush.bf16.msra.mxu0 0
        %934 = vmatpush.bf16.msra.mxu0 0
        %935 = vmatpush.bf16.msra.mxu0 0
        %936 = vmatpush.bf16.msra.mxu0 %v908
        %937 = vmatmul.bf16.gmra.mxu0 %v899
        %v938 = vpop.f32.mrf.mxu0
        %v939 = vadd.f32 0.0, %v938
        %v940 = vpop.f32.mrf.mxu0
        %v941 = vadd.f32 0.0, %v940
        %942 = vmatmul.bf16.gmra.mxu0 %v902
        %v943 = vpop.f32.mrf.mxu0
        %v944 = vadd.f32 0.0, %v943
        %v945 = vpop.f32.mrf.mxu0
        %v946 = vadd.f32 0.0, %v945
        %947 = vdwg.mxu0
        %v948 = vadd.f32 %v553, %v920
        %v949 = vadd.f32 %v572, %v939
        %v950 = vadd.f32 %v555, %v922
        %v951 = vadd.f32 %v574, %v941
        %v952 = vadd.f32 %v558, %v925
        %v953 = vadd.f32 %v577, %v944
        %v954 = vadd.f32 %v560, %v927
        %v955 = vadd.f32 %v579, %v946
        %s956 = scalar_lea.vmem %s1, 112
        %v957 = vld [vmem:[%s956] sm:$0xf]
        %v958 = vld [vmem:[%s956 + $0x4] sm:$0xf]
        %v959 = vld [vmem:[%s956 + $0x8] sm:$0xf]
        %v960 = vld [vmem:[%s956 + $0xc] sm:$0xf]
        %v965 = vunpack.c.l.b16 %v957
        %v966 = vunpack.c.l.b16 %v958
        %v967 = vunpack.c.l.b16 %v959
        %v968 = vunpack.c.l.b16 %v960
        %v969 = vpack.c.b16 %v966, %v965
        %v970 = vpack.c.b16 %v968, %v967
        %971 = vrot.lane.b32.xlu0 %v743, 112
        %v972 = vpop.permute.xlu0 %971
        %973 = vrot.lane.b32.xlu0 %v744, 112
        %v974 = vpop.permute.xlu0 %973
        %975 = vrot.lane.b32.xlu0 %v745, 112
        %v976 = vpop.permute.xlu0 %975
        %vm977 = vcmask 916480
        %v978 = vsel %vm977, %v972, %v974
        %v979 = vsel %vm977, %v974, %v976
        %v981 = vsel %vm457, %v969, 0
        %v984 = vsel %vm457, %v970, 0
        %v987 = vand.u32 %v978, %v467
        %v990 = vand.u32 %v979, %v467
        %992 = vmatpush.bf16.msra.mxu0 0
        %993 = vmatpush.bf16.msra.mxu0 0
        %994 = vmatpush.bf16.msra.mxu0 0
        %995 = vmatpush.bf16.msra.mxu0 0
        %996 = vmatpush.bf16.msra.mxu0 0
        %997 = vmatpush.bf16.msra.mxu0 0
        %998 = vmatpush.bf16.msra.mxu0 0
        %999 = vmatpush.bf16.msra.mxu0 %v987
        %1000 = vmatmul.bf16.gmra.mxu0 %v981
        %v1001 = vpop.f32.mrf.mxu0
        %v1002 = vadd.f32 0.0, %v1001
        %v1003 = vpop.f32.mrf.mxu0
        %v1004 = vadd.f32 0.0, %v1003
        %1005 = vmatmul.bf16.gmra.mxu0 %v984
        %v1006 = vpop.f32.mrf.mxu0
        %v1007 = vadd.f32 0.0, %v1006
        %v1008 = vpop.f32.mrf.mxu0
        %v1009 = vadd.f32 0.0, %v1008
        %1010 = vdwg.mxu0
        %1011 = vmatpush.bf16.msra.mxu0 0
        %1012 = vmatpush.bf16.msra.mxu0 0
        %1013 = vmatpush.bf16.msra.mxu0 0
        %1014 = vmatpush.bf16.msra.mxu0 0
        %1015 = vmatpush.bf16.msra.mxu0 0
        %1016 = vmatpush.bf16.msra.mxu0 0
        %1017 = vmatpush.bf16.msra.mxu0 0
        %1018 = vmatpush.bf16.msra.mxu0 %v990
        %1019 = vmatmul.bf16.gmra.mxu0 %v981
        %v1020 = vpop.f32.mrf.mxu0
        %v1021 = vadd.f32 0.0, %v1020
        %v1022 = vpop.f32.mrf.mxu0
        %v1023 = vadd.f32 0.0, %v1022
        %1024 = vmatmul.bf16.gmra.mxu0 %v984
        %v1025 = vpop.f32.mrf.mxu0
        %v1026 = vadd.f32 0.0, %v1025
        %v1027 = vpop.f32.mrf.mxu0
        %v1028 = vadd.f32 0.0, %v1027
        %1029 = vdwg.mxu0
        %v1030 = vadd.f32 %v693, %v1002
        %v1031 = vadd.f32 %v712, %v1021
        %v1032 = vadd.f32 %v695, %v1004
        %v1033 = vadd.f32 %v714, %v1023
        %v1034 = vadd.f32 %v698, %v1007
        %v1035 = vadd.f32 %v717, %v1026
        %v1036 = vadd.f32 %v700, %v1009
        %v1037 = vadd.f32 %v719, %v1028
        %s1038 = scalar_lea.vmem %s1, 128
        %v1039 = vld [vmem:[%s1038] sm:$0xf]
        %v1040 = vld [vmem:[%s1038 + $0x4] sm:$0xf]
        %v1041 = vld [vmem:[%s1038 + $0x8] sm:$0xf]
        %v1042 = vld [vmem:[%s1038 + $0xc] sm:$0xf]
        %v1047 = vunpack.c.l.b16 %v1039
        %v1048 = vunpack.c.l.b16 %v1040
        %v1049 = vunpack.c.l.b16 %v1041
        %v1050 = vunpack.c.l.b16 %v1042
        %v1051 = vpack.c.b16 %v1048, %v1047
        %v1052 = vpack.c.b16 %v1050, %v1049
        %1053 = vrot.lane.b32.xlu0 %v743, 111
        %v1054 = vpop.permute.xlu0 %1053
        %1055 = vrot.lane.b32.xlu0 %v744, 111
        %v1056 = vpop.permute.xlu0 %1055
        %1057 = vrot.lane.b32.xlu0 %v745, 111
        %v1058 = vpop.permute.xlu0 %1057
        %vm1059 = vcmask 908288
        %v1060 = vsel %vm1059, %v1054, %v1056
        %v1061 = vsel %vm1059, %v1056, %v1058
        %v1063 = vsel %vm457, %v1051, 0
        %v1066 = vsel %vm457, %v1052, 0
        %v1069 = vand.u32 %v1060, %v467
        %v1072 = vand.u32 %v1061, %v467
        %1074 = vmatpush.bf16.msra.mxu0 0
        %1075 = vmatpush.bf16.msra.mxu0 0
        %1076 = vmatpush.bf16.msra.mxu0 0
        %1077 = vmatpush.bf16.msra.mxu0 0
        %1078 = vmatpush.bf16.msra.mxu0 0
        %1079 = vmatpush.bf16.msra.mxu0 0
        %1080 = vmatpush.bf16.msra.mxu0 0
        %1081 = vmatpush.bf16.msra.mxu0 %v1069
        %1082 = vmatmul.bf16.gmra.mxu0 %v1063
        %v1083 = vpop.f32.mrf.mxu0
        %v1084 = vadd.f32 0.0, %v1083
        %v1085 = vpop.f32.mrf.mxu0
        %v1086 = vadd.f32 0.0, %v1085
        %1087 = vmatmul.bf16.gmra.mxu0 %v1066
        %v1088 = vpop.f32.mrf.mxu0
        %v1089 = vadd.f32 0.0, %v1088
        %v1090 = vpop.f32.mrf.mxu0
        %v1091 = vadd.f32 0.0, %v1090
        %1092 = vdwg.mxu0
        %1093 = vmatpush.bf16.msra.mxu0 0
        %1094 = vmatpush.bf16.msra.mxu0 0
        %1095 = vmatpush.bf16.msra.mxu0 0
        %1096 = vmatpush.bf16.msra.mxu0 0
        %1097 = vmatpush.bf16.msra.mxu0 0
        %1098 = vmatpush.bf16.msra.mxu0 0
        %1099 = vmatpush.bf16.msra.mxu0 0
        %1100 = vmatpush.bf16.msra.mxu0 %v1072
        %1101 = vmatmul.bf16.gmra.mxu0 %v1063
        %v1102 = vpop.f32.mrf.mxu0
        %v1103 = vadd.f32 0.0, %v1102
        %v1104 = vpop.f32.mrf.mxu0
        %v1105 = vadd.f32 0.0, %v1104
        %1106 = vmatmul.bf16.gmra.mxu0 %v1066
        %v1107 = vpop.f32.mrf.mxu0
        %v1108 = vadd.f32 0.0, %v1107
        %v1109 = vpop.f32.mrf.mxu0
        %v1110 = vadd.f32 0.0, %v1109
        %1111 = vdwg.mxu0
        %v1112 = vadd.f32 %v846, %v1084
        %v1113 = vadd.f32 %v865, %v1103
        %v1114 = vadd.f32 %v848, %v1086
        %v1115 = vadd.f32 %v867, %v1105
        %v1116 = vadd.f32 %v851, %v1089
        %v1117 = vadd.f32 %v870, %v1108
        %v1118 = vadd.f32 %v853, %v1091
        %v1119 = vadd.f32 %v872, %v1110
        %v1120 = vld [vmem:[%s2] sm:$0xff]
        %v1121 = vld [vmem:[%s2 + $0x8] sm:$0xff]
        %v1122 = vld [vmem:[%s2 + $0x10] sm:$0xff]
        %v1123 = vld [vmem:[%s2 + $0x18] sm:$0xff]
        %1125 = vset.pattern.permute.xlu0 0
        %1126 = vperm.xlu0 %1125, %v1120
        %v1127 = vpop.permute.xlu0 %1126
        %1130 = vset.pattern.permute.xlu0 0
        %1131 = vperm.xlu0 %1130, %v1121
        %v1132 = vpop.permute.xlu0 %1131
        %1135 = vset.pattern.permute.xlu0 0
        %1136 = vperm.xlu0 %1135, %v1122
        %v1137 = vpop.permute.xlu0 %1136
        %1140 = vset.pattern.permute.xlu0 0
        %1141 = vperm.xlu0 %1140, %v1123
        %v1142 = vpop.permute.xlu0 %1141
        %v1144 = vadd.f32 %v1030, %v1127
        %v1145 = vadd.f32 %v1031, %v1127
        %v1146 = vadd.f32 %v1032, %v1132
        %v1147 = vadd.f32 %v1033, %v1132
        %v1148 = vadd.f32 %v1034, %v1137
        %v1149 = vadd.f32 %v1035, %v1137
        %v1150 = vadd.f32 %v1036, %v1142
        %v1151 = vadd.f32 %v1037, %v1142
        %v1152 = vsel %vm387, 1, 0
        %v1153 = vsel %vm388, 1, 0
        %vm1154 = vcmp.eq.s32.totalorder %v1152, 1
        %vm1155 = vcmp.eq.s32.totalorder %v1153, 1
        %v1156 = vsel %vm1154, %v948, 0.0
        %v1157 = vsel %vm1155, %v949, 0.0
        %v1158 = vsel %vm1154, %v950, 0.0
        %v1159 = vsel %vm1155, %v951, 0.0
        %v1160 = vsel %vm1154, %v952, 0.0
        %v1161 = vsel %vm1155, %v953, 0.0
        %v1162 = vsel %vm1154, %v954, 0.0
        %v1163 = vsel %vm1155, %v955, 0.0
        %v1164 = vadd.f32 %v1144, %v1156
        %v1165 = vadd.f32 %v1145, %v1157
        %v1166 = vadd.f32 %v1146, %v1158
        %v1167 = vadd.f32 %v1147, %v1159
        %v1168 = vadd.f32 %v1148, %v1160
        %v1169 = vadd.f32 %v1149, %v1161
        %v1170 = vadd.f32 %v1150, %v1162
        %v1171 = vadd.f32 %v1151, %v1163
        %v1172 = vsel %vm389, 1, 0
        %v1173 = vsel %vm390, 1, 0
        %vm1174 = vcmp.eq.s32.totalorder %v1172, 1
        %vm1175 = vcmp.eq.s32.totalorder %v1173, 1
        %v1176 = vsel %vm1174, %v1112, 0.0
        %v1177 = vsel %vm1175, %v1113, 0.0
        %v1178 = vsel %vm1174, %v1114, 0.0
        %v1179 = vsel %vm1175, %v1115, 0.0
        %v1180 = vsel %vm1174, %v1116, 0.0
        %v1181 = vsel %vm1175, %v1117, 0.0
        %v1182 = vsel %vm1174, %v1118, 0.0
        %v1183 = vsel %vm1175, %v1119, 0.0
        %v1184 = vadd.f32 %v1164, %v1176
        %v1185 = vadd.f32 %v1165, %v1177
        %v1186 = vadd.f32 %v1166, %v1178
        %v1187 = vadd.f32 %v1167, %v1179
        %v1188 = vadd.f32 %v1168, %v1180
        %v1189 = vadd.f32 %v1169, %v1181
        %v1190 = vadd.f32 %v1170, %v1182
        %v1191 = vadd.f32 %v1171, %v1183
        %v1192 = vmax.f32 %v1184, 0.0
        %v1193 = vmax.f32 %v1185, 0.0
        %v1194 = vmax.f32 %v1186, 0.0
        %v1195 = vmax.f32 %v1187, 0.0
        %v1196 = vmax.f32 %v1188, 0.0
        %v1197 = vmax.f32 %v1189, 0.0
        %v1198 = vmax.f32 %v1190, 0.0
        %v1199 = vmax.f32 %v1191, 0.0
        %v1200 = vpack.c.bf16 %v1193, %v1192
        %v1201 = vpack.c.bf16 %v1195, %v1194
        %v1202 = vpack.c.bf16 %v1197, %v1196
        %v1203 = vpack.c.bf16 %v1199, %v1198
        %1204 = vst [vmem:[#allocation2 + $0x4] sm:$0xff] %v1200
        %1205 = vst [vmem:[#allocation2 + $0x14] sm:$0xff] %v1201
        %1206 = vst [vmem:[#allocation2 + $0x24] sm:$0xff] %v1202
        %1207 = vst [vmem:[#allocation2 + $0x34] sm:$0xff] %v1203
        %v1208 = vld [vmem:[#allocation2] sm:$0xff]
        %v1209 = vld [vmem:[#allocation2 + $0x8] sm:$0xf]
        %v1210 = vld [vmem:[#allocation2 + $0x10] sm:$0xff]
        %v1211 = vld [vmem:[#allocation2 + $0x18] sm:$0xf]
        %v1212 = vld [vmem:[#allocation2 + $0x20] sm:$0xff]
        %v1213 = vld [vmem:[#allocation2 + $0x28] sm:$0xf]
        %v1214 = vld [vmem:[#allocation2 + $0x30] sm:$0xff]
        %v1215 = vld [vmem:[#allocation2 + $0x38] sm:$0xf]
        %v1216 = vld [vmem:[%s3] sm:$0xf]
        %v1217 = vld [vmem:[%s3 + $0x4] sm:$0xf]
        %v1218 = vld [vmem:[%s3 + $0x8] sm:$0xf]
        %v1219 = vld [vmem:[%s3 + $0xc] sm:$0xf]
        %s1220 = scalar_lea.vmem %s3, 16
        %v1221 = vld [vmem:[%s1220] sm:$0xf]
        %v1222 = vld [vmem:[%s1220 + $0x4] sm:$0xf]
        %v1223 = vld [vmem:[%s1220 + $0x8] sm:$0xf]
        %v1224 = vld [vmem:[%s1220 + $0xc] sm:$0xf]
        %s1225 = scalar_lea.vmem %s3, 32
        %v1226 = vld [vmem:[%s1225] sm:$0xf]
        %v1227 = vld [vmem:[%s1225 + $0x4] sm:$0xf]
        %v1228 = vld [vmem:[%s1225 + $0x8] sm:$0xf]
        %v1229 = vld [vmem:[%s1225 + $0xc] sm:$0xf]
        %s1230 = scalar_lea.vmem %s3, 48
        %v1231 = vld [vmem:[%s1230] sm:$0xf]
        %v1232 = vld [vmem:[%s1230 + $0x4] sm:$0xf]
        %v1233 = vld [vmem:[%s1230 + $0x8] sm:$0xf]
        %v1234 = vld [vmem:[%s1230 + $0xc] sm:$0xf]
        %v1239 = vunpack.c.l.b16 %v1231
        %v1240 = vunpack.c.l.b16 %v1232
        %v1241 = vunpack.c.l.b16 %v1233
        %v1242 = vunpack.c.l.b16 %v1234
        %v1243 = vpack.c.b16 %v1240, %v1239
        %v1244 = vpack.c.b16 %v1242, %v1241
        %v1253 = vunpack.c.l.b16 %v1208
        %v1254 = vunpack.c.h.b16 %v1208
        %v1255 = vunpack.c.l.b16 %v1209
        %v1256 = vunpack.c.l.b16 %v1210
        %v1257 = vunpack.c.h.b16 %v1210
        %v1258 = vunpack.c.l.b16 %v1211
        %v1259 = vunpack.c.l.b16 %v1212
        %v1260 = vunpack.c.h.b16 %v1212
        %v1261 = vunpack.c.l.b16 %v1213
        %v1262 = vunpack.c.l.b16 %v1214
        %v1263 = vunpack.c.h.b16 %v1214
        %v1264 = vunpack.c.l.b16 %v1215
        %v1265 = vpack.c.b16 %v1256, %v1253
        %v1266 = vpack.c.b16 %v1257, %v1254
        %v1267 = vpack.c.b16 %v1258, %v1255
        %v1268 = vpack.c.b16 %v1262, %v1259
        %v1269 = vpack.c.b16 %v1263, %v1260
        %v1270 = vpack.c.b16 %v1264, %v1261
        %1271 = vrot.lane.b32.xlu0 %v1265, 1
        %v1272 = vpop.permute.xlu0 %1271
        %1273 = vrot.lane.b32.xlu0 %v1266, 1
        %v1274 = vpop.permute.xlu0 %1273
        %1275 = vrot.lane.b32.xlu0 %v1267, 1
        %v1276 = vpop.permute.xlu0 %1275
        %1277 = vrot.lane.b32.xlu0 %v1268, 1
        %v1278 = vpop.permute.xlu0 %1277
        %1279 = vrot.lane.b32.xlu0 %v1269, 1
        %v1280 = vpop.permute.xlu0 %1279
        %1281 = vrot.lane.b32.xlu0 %v1270, 1
        %v1282 = vpop.permute.xlu0 %1281
        %v1283 = vsel %vm454, %v1272, %v1274
        %v1284 = vsel %vm454, %v1274, %v1276
        %v1285 = vsel %vm454, %v1278, %v1280
        %v1286 = vsel %vm454, %v1280, %v1282
        %vm1291 = vcmask 261120
        %v1293 = vsel %vm1291, %v1243, 0
        %v1296 = vsel %vm1291, %v1244, 0
        %1298 = vmatpush.bf16.msra.mxu0 0
        %1299 = vmatpush.bf16.msra.mxu0 0
        %1300 = vmatpush.bf16.msra.mxu0 0
        %1301 = vmatpush.bf16.msra.mxu0 0
        %1302 = vmatpush.bf16.msra.mxu0 0
        %1303 = vmatpush.bf16.msra.mxu0 0
        %1304 = vmatpush.bf16.msra.mxu0 %v1285
        %1305 = vmatpush.bf16.msra.mxu0 %v1283
        %1306 = vmatmul.bf16.gmra.mxu0 %v1293
        %v1307 = vpop.f32.mrf.mxu0
        %v1308 = vadd.f32 0.0, %v1307
        %v1309 = vpop.f32.mrf.mxu0
        %v1310 = vadd.f32 0.0, %v1309
        %1311 = vmatmul.bf16.gmra.mxu0 %v1296
        %v1312 = vpop.f32.mrf.mxu0
        %v1313 = vadd.f32 0.0, %v1312
        %v1314 = vpop.f32.mrf.mxu0
        %v1315 = vadd.f32 0.0, %v1314
        %1316 = vdwg.mxu0
        %1317 = vmatpush.bf16.msra.mxu0 0
        %1318 = vmatpush.bf16.msra.mxu0 0
        %1319 = vmatpush.bf16.msra.mxu0 0
        %1320 = vmatpush.bf16.msra.mxu0 0
        %1321 = vmatpush.bf16.msra.mxu0 0
        %1322 = vmatpush.bf16.msra.mxu0 0
        %1323 = vmatpush.bf16.msra.mxu0 %v1286
        %1324 = vmatpush.bf16.msra.mxu0 %v1284
        %1325 = vmatmul.bf16.gmra.mxu0 %v1293
        %v1326 = vpop.f32.mrf.mxu0
        %v1327 = vadd.f32 0.0, %v1326
        %v1328 = vpop.f32.mrf.mxu0
        %v1329 = vadd.f32 0.0, %v1328
        %1330 = vmatmul.bf16.gmra.mxu0 %v1296
        %v1331 = vpop.f32.mrf.mxu0
        %v1332 = vadd.f32 0.0, %v1331
        %v1333 = vpop.f32.mrf.mxu0
        %v1334 = vadd.f32 0.0, %v1333
        %1335 = vdwg.mxu0
        %v1340 = vunpack.c.l.b16 %v1216
        %v1341 = vunpack.c.l.b16 %v1217
        %v1342 = vunpack.c.l.b16 %v1218
        %v1343 = vunpack.c.l.b16 %v1219
        %v1344 = vpack.c.b16 %v1341, %v1340
        %v1345 = vpack.c.b16 %v1343, %v1342
        %1346 = vrot.lane.b32.xlu0 %v1265, 17
        %v1347 = vpop.permute.xlu0 %1346
        %1348 = vrot.lane.b32.xlu0 %v1266, 17
        %v1349 = vpop.permute.xlu0 %1348
        %1350 = vrot.lane.b32.xlu0 %v1267, 17
        %v1351 = vpop.permute.xlu0 %1350
        %1352 = vrot.lane.b32.xlu0 %v1268, 17
        %v1353 = vpop.permute.xlu0 %1352
        %1354 = vrot.lane.b32.xlu0 %v1269, 17
        %v1355 = vpop.permute.xlu0 %1354
        %1356 = vrot.lane.b32.xlu0 %v1270, 17
        %v1357 = vpop.permute.xlu0 %1356
        %v1358 = vsel %vm528, %v1347, %v1349
        %v1359 = vsel %vm528, %v1349, %v1351
        %v1360 = vsel %vm528, %v1353, %v1355
        %v1361 = vsel %vm528, %v1355, %v1357
        %v1367 = vsel %vm1291, %v1344, 0
        %v1370 = vsel %vm1291, %v1345, 0
        %1372 = vmatpush.bf16.msra.mxu0 0
        %1373 = vmatpush.bf16.msra.mxu0 0
        %1374 = vmatpush.bf16.msra.mxu0 0
        %1375 = vmatpush.bf16.msra.mxu0 0
        %1376 = vmatpush.bf16.msra.mxu0 0
        %1377 = vmatpush.bf16.msra.mxu0 0
        %1378 = vmatpush.bf16.msra.mxu0 %v1360
        %1379 = vmatpush.bf16.msra.mxu0 %v1358
        %1380 = vmatmul.bf16.gmra.mxu0 %v1367
        %v1381 = vpop.f32.mrf.mxu0
        %v1382 = vadd.f32 %v1308, %v1381
        %v1383 = vpop.f32.mrf.mxu0
        %v1384 = vadd.f32 %v1310, %v1383
        %1385 = vmatmul.bf16.gmra.mxu0 %v1370
        %v1386 = vpop.f32.mrf.mxu0
        %v1387 = vadd.f32 %v1313, %v1386
        %v1388 = vpop.f32.mrf.mxu0
        %v1389 = vadd.f32 %v1315, %v1388
        %1390 = vdwg.mxu0
        %1391 = vmatpush.bf16.msra.mxu0 0
        %1392 = vmatpush.bf16.msra.mxu0 0
        %1393 = vmatpush.bf16.msra.mxu0 0
        %1394 = vmatpush.bf16.msra.mxu0 0
        %1395 = vmatpush.bf16.msra.mxu0 0
        %1396 = vmatpush.bf16.msra.mxu0 0
        %1397 = vmatpush.bf16.msra.mxu0 %v1361
        %1398 = vmatpush.bf16.msra.mxu0 %v1359
        %1399 = vmatmul.bf16.gmra.mxu0 %v1367
        %v1400 = vpop.f32.mrf.mxu0
        %v1401 = vadd.f32 %v1327, %v1400
        %v1402 = vpop.f32.mrf.mxu0
        %v1403 = vadd.f32 %v1329, %v1402
        %1404 = vmatmul.bf16.gmra.mxu0 %v1370
        %v1405 = vpop.f32.mrf.mxu0
        %v1406 = vadd.f32 %v1332, %v1405
        %v1407 = vpop.f32.mrf.mxu0
        %v1408 = vadd.f32 %v1334, %v1407
        %1409 = vdwg.mxu0
        %v1410 = vld [vmem:[#allocation2 + $0x4] sm:$0xff]
        %v1411 = vld [vmem:[#allocation2 + $0x14] sm:$0xff]
        %v1412 = vld [vmem:[#allocation2 + $0x24] sm:$0xff]
        %v1413 = vld [vmem:[#allocation2 + $0x34] sm:$0xff]
        %s1414 = scalar_lea.vmem %s3, 64
        %v1415 = vld [vmem:[%s1414] sm:$0xf]
        %v1416 = vld [vmem:[%s1414 + $0x4] sm:$0xf]
        %v1417 = vld [vmem:[%s1414 + $0x8] sm:$0xf]
        %v1418 = vld [vmem:[%s1414 + $0xc] sm:$0xf]
        %v1423 = vunpack.c.l.b16 %v1415
        %v1424 = vunpack.c.l.b16 %v1416
        %v1425 = vunpack.c.l.b16 %v1417
        %v1426 = vunpack.c.l.b16 %v1418
        %v1427 = vpack.c.b16 %v1424, %v1423
        %v1428 = vpack.c.b16 %v1426, %v1425
        %v1433 = vunpack.c.l.b16 %v1410
        %v1434 = vunpack.c.h.b16 %v1410
        %v1435 = vunpack.c.l.b16 %v1411
        %v1436 = vunpack.c.h.b16 %v1411
        %v1437 = vunpack.c.l.b16 %v1412
        %v1438 = vunpack.c.h.b16 %v1412
        %v1439 = vunpack.c.l.b16 %v1413
        %v1440 = vunpack.c.h.b16 %v1413
        %v1441 = vpack.c.b16 %v1435, %v1433
        %v1442 = vpack.c.b16 %v1436, %v1434
        %v1443 = vpack.c.b16 %v1439, %v1437
        %v1444 = vpack.c.b16 %v1440, %v1438
        %v1450 = vsel %vm1291, %v1427, 0
        %v1453 = vsel %vm1291, %v1428, 0
        %1455 = vmatpush.bf16.msra.mxu0 0
        %1456 = vmatpush.bf16.msra.mxu0 0
        %1457 = vmatpush.bf16.msra.mxu0 0
        %1458 = vmatpush.bf16.msra.mxu0 0
        %1459 = vmatpush.bf16.msra.mxu0 0
        %1460 = vmatpush.bf16.msra.mxu0 0
        %1461 = vmatpush.bf16.msra.mxu0 %v1443
        %1462 = vmatpush.bf16.msra.mxu0 %v1441
        %1463 = vmatmul.bf16.gmra.mxu0 %v1450
        %v1464 = vpop.f32.mrf.mxu0
        %v1465 = vadd.f32 0.0, %v1464
        %v1466 = vpop.f32.mrf.mxu0
        %v1467 = vadd.f32 0.0, %v1466
        %1468 = vmatmul.bf16.gmra.mxu0 %v1453
        %v1469 = vpop.f32.mrf.mxu0
        %v1470 = vadd.f32 0.0, %v1469
        %v1471 = vpop.f32.mrf.mxu0
        %v1472 = vadd.f32 0.0, %v1471
        %1473 = vdwg.mxu0
        %1474 = vmatpush.bf16.msra.mxu0 0
        %1475 = vmatpush.bf16.msra.mxu0 0
        %1476 = vmatpush.bf16.msra.mxu0 0
        %1477 = vmatpush.bf16.msra.mxu0 0
        %1478 = vmatpush.bf16.msra.mxu0 0
        %1479 = vmatpush.bf16.msra.mxu0 0
        %1480 = vmatpush.bf16.msra.mxu0 %v1444
        %1481 = vmatpush.bf16.msra.mxu0 %v1442
        %1482 = vmatmul.bf16.gmra.mxu0 %v1450
        %v1483 = vpop.f32.mrf.mxu0
        %v1484 = vadd.f32 0.0, %v1483
        %v1485 = vpop.f32.mrf.mxu0
        %v1486 = vadd.f32 0.0, %v1485
        %1487 = vmatmul.bf16.gmra.mxu0 %v1453
        %v1488 = vpop.f32.mrf.mxu0
        %v1489 = vadd.f32 0.0, %v1488
        %v1490 = vpop.f32.mrf.mxu0
        %v1491 = vadd.f32 0.0, %v1490
        %1492 = vdwg.mxu0
        %v1497 = vunpack.c.l.b16 %v1221
        %v1498 = vunpack.c.l.b16 %v1222
        %v1499 = vunpack.c.l.b16 %v1223
        %v1500 = vunpack.c.l.b16 %v1224
        %v1501 = vpack.c.b16 %v1498, %v1497
        %v1502 = vpack.c.b16 %v1500, %v1499
        %1503 = vrot.lane.b32.xlu0 %v1265, 16
        %v1504 = vpop.permute.xlu0 %1503
        %1505 = vrot.lane.b32.xlu0 %v1266, 16
        %v1506 = vpop.permute.xlu0 %1505
        %1507 = vrot.lane.b32.xlu0 %v1267, 16
        %v1508 = vpop.permute.xlu0 %1507
        %1509 = vrot.lane.b32.xlu0 %v1268, 16
        %v1510 = vpop.permute.xlu0 %1509
        %1511 = vrot.lane.b32.xlu0 %v1269, 16
        %v1512 = vpop.permute.xlu0 %1511
        %1513 = vrot.lane.b32.xlu0 %v1270, 16
        %v1514 = vpop.permute.xlu0 %1513
        %v1515 = vsel %vm668, %v1504, %v1506
        %v1516 = vsel %vm668, %v1506, %v1508
        %v1517 = vsel %vm668, %v1510, %v1512
        %v1518 = vsel %vm668, %v1512, %v1514
        %v1524 = vsel %vm1291, %v1501, 0
        %v1527 = vsel %vm1291, %v1502, 0
        %1529 = vmatpush.bf16.msra.mxu0 0
        %1530 = vmatpush.bf16.msra.mxu0 0
        %1531 = vmatpush.bf16.msra.mxu0 0
        %1532 = vmatpush.bf16.msra.mxu0 0
        %1533 = vmatpush.bf16.msra.mxu0 0
        %1534 = vmatpush.bf16.msra.mxu0 0
        %1535 = vmatpush.bf16.msra.mxu0 %v1517
        %1536 = vmatpush.bf16.msra.mxu0 %v1515
        %1537 = vmatmul.bf16.gmra.mxu0 %v1524
        %v1538 = vpop.f32.mrf.mxu0
        %v1539 = vadd.f32 %v1465, %v1538
        %v1540 = vpop.f32.mrf.mxu0
        %v1541 = vadd.f32 %v1467, %v1540
        %1542 = vmatmul.bf16.gmra.mxu0 %v1527
        %v1543 = vpop.f32.mrf.mxu0
        %v1544 = vadd.f32 %v1470, %v1543
        %v1545 = vpop.f32.mrf.mxu0
        %v1546 = vadd.f32 %v1472, %v1545
        %1547 = vdwg.mxu0
        %1548 = vmatpush.bf16.msra.mxu0 0
        %1549 = vmatpush.bf16.msra.mxu0 0
        %1550 = vmatpush.bf16.msra.mxu0 0
        %1551 = vmatpush.bf16.msra.mxu0 0
        %1552 = vmatpush.bf16.msra.mxu0 0
        %1553 = vmatpush.bf16.msra.mxu0 0
        %1554 = vmatpush.bf16.msra.mxu0 %v1518
        %1555 = vmatpush.bf16.msra.mxu0 %v1516
        %1556 = vmatmul.bf16.gmra.mxu0 %v1524
        %v1557 = vpop.f32.mrf.mxu0
        %v1558 = vadd.f32 %v1484, %v1557
        %v1559 = vpop.f32.mrf.mxu0
        %v1560 = vadd.f32 %v1486, %v1559
        %1561 = vmatmul.bf16.gmra.mxu0 %v1527
        %v1562 = vpop.f32.mrf.mxu0
        %v1563 = vadd.f32 %v1489, %v1562
        %v1564 = vpop.f32.mrf.mxu0
        %v1565 = vadd.f32 %v1491, %v1564
        %1566 = vdwg.mxu0
        %v1567 = vld [vmem:[#allocation2 + $0x4] sm:$0xff]
        %v1568 = vld [vmem:[#allocation2 + $0xc] sm:$0xf]
        %v1569 = vld [vmem:[#allocation2 + $0x14] sm:$0xff]
        %v1570 = vld [vmem:[#allocation2 + $0x1c] sm:$0xf]
        %v1571 = vld [vmem:[#allocation2 + $0x24] sm:$0xff]
        %v1572 = vld [vmem:[#allocation2 + $0x2c] sm:$0xf]
        %v1573 = vld [vmem:[#allocation2 + $0x34] sm:$0xff]
        %v1574 = vld [vmem:[#allocation2 + $0x3c] sm:$0xf]
        %s1575 = scalar_lea.vmem %s3, 80
        %v1576 = vld [vmem:[%s1575] sm:$0xf]
        %v1577 = vld [vmem:[%s1575 + $0x4] sm:$0xf]
        %v1578 = vld [vmem:[%s1575 + $0x8] sm:$0xf]
        %v1579 = vld [vmem:[%s1575 + $0xc] sm:$0xf]
        %v1584 = vunpack.c.l.b16 %v1576
        %v1585 = vunpack.c.l.b16 %v1577
        %v1586 = vunpack.c.l.b16 %v1578
        %v1587 = vunpack.c.l.b16 %v1579
        %v1588 = vpack.c.b16 %v1585, %v1584
        %v1589 = vpack.c.b16 %v1587, %v1586
        %v1598 = vunpack.c.l.b16 %v1567
        %v1599 = vunpack.c.h.b16 %v1567
        %v1600 = vunpack.c.l.b16 %v1568
        %v1601 = vunpack.c.l.b16 %v1569
        %v1602 = vunpack.c.h.b16 %v1569
        %v1603 = vunpack.c.l.b16 %v1570
        %v1604 = vunpack.c.l.b16 %v1571
        %v1605 = vunpack.c.h.b16 %v1571
        %v1606 = vunpack.c.l.b16 %v1572
        %v1607 = vunpack.c.l.b16 %v1573
        %v1608 = vunpack.c.h.b16 %v1573
        %v1609 = vunpack.c.l.b16 %v1574
        %v1610 = vpack.c.b16 %v1601, %v1598
        %v1611 = vpack.c.b16 %v1602, %v1599
        %v1612 = vpack.c.b16 %v1603, %v1600
        %v1613 = vpack.c.b16 %v1607, %v1604
        %v1614 = vpack.c.b16 %v1608, %v1605
        %v1615 = vpack.c.b16 %v1609, %v1606
        %1616 = vrot.lane.b32.xlu0 %v1610, 127
        %v1617 = vpop.permute.xlu0 %1616
        %1618 = vrot.lane.b32.xlu0 %v1611, 127
        %v1619 = vpop.permute.xlu0 %1618
        %1620 = vrot.lane.b32.xlu0 %v1612, 127
        %v1621 = vpop.permute.xlu0 %1620
        %1622 = vrot.lane.b32.xlu0 %v1613, 127
        %v1623 = vpop.permute.xlu0 %1622
        %1624 = vrot.lane.b32.xlu0 %v1614, 127
        %v1625 = vpop.permute.xlu0 %1624
        %1626 = vrot.lane.b32.xlu0 %v1615, 127
        %v1627 = vpop.permute.xlu0 %1626
        %v1628 = vsel %vm752, %v1617, %v1619
        %v1629 = vsel %vm752, %v1619, %v1621
        %v1630 = vsel %vm752, %v1623, %v1625
        %v1631 = vsel %vm752, %v1625, %v1627
        %v1637 = vsel %vm1291, %v1588, 0
        %v1640 = vsel %vm1291, %v1589, 0
        %1642 = vmatpush.bf16.msra.mxu0 0
        %1643 = vmatpush.bf16.msra.mxu0 0
        %1644 = vmatpush.bf16.msra.mxu0 0
        %1645 = vmatpush.bf16.msra.mxu0 0
        %1646 = vmatpush.bf16.msra.mxu0 0
        %1647 = vmatpush.bf16.msra.mxu0 0
        %1648 = vmatpush.bf16.msra.mxu0 %v1630
        %1649 = vmatpush.bf16.msra.mxu0 %v1628
        %1650 = vmatmul.bf16.gmra.mxu0 %v1637
        %v1651 = vpop.f32.mrf.mxu0
        %v1652 = vadd.f32 0.0, %v1651
        %v1653 = vpop.f32.mrf.mxu0
        %v1654 = vadd.f32 0.0, %v1653
        %1655 = vmatmul.bf16.gmra.mxu0 %v1640
        %v1656 = vpop.f32.mrf.mxu0
        %v1657 = vadd.f32 0.0, %v1656
        %v1658 = vpop.f32.mrf.mxu0
        %v1659 = vadd.f32 0.0, %v1658
        %1660 = vdwg.mxu0
        %1661 = vmatpush.bf16.msra.mxu0 0
        %1662 = vmatpush.bf16.msra.mxu0 0
        %1663 = vmatpush.bf16.msra.mxu0 0
        %1664 = vmatpush.bf16.msra.mxu0 0
        %1665 = vmatpush.bf16.msra.mxu0 0
        %1666 = vmatpush.bf16.msra.mxu0 0
        %1667 = vmatpush.bf16.msra.mxu0 %v1631
        %1668 = vmatpush.bf16.msra.mxu0 %v1629
        %1669 = vmatmul.bf16.gmra.mxu0 %v1637
        %v1670 = vpop.f32.mrf.mxu0
        %v1671 = vadd.f32 0.0, %v1670
        %v1672 = vpop.f32.mrf.mxu0
        %v1673 = vadd.f32 0.0, %v1672
        %1674 = vmatmul.bf16.gmra.mxu0 %v1640
        %v1675 = vpop.f32.mrf.mxu0
        %v1676 = vadd.f32 0.0, %v1675
        %v1677 = vpop.f32.mrf.mxu0
        %v1678 = vadd.f32 0.0, %v1677
        %1679 = vdwg.mxu0
        %v1684 = vunpack.c.l.b16 %v1226
        %v1685 = vunpack.c.l.b16 %v1227
        %v1686 = vunpack.c.l.b16 %v1228
        %v1687 = vunpack.c.l.b16 %v1229
        %v1688 = vpack.c.b16 %v1685, %v1684
        %v1689 = vpack.c.b16 %v1687, %v1686
        %1690 = vrot.lane.b32.xlu0 %v1265, 15
        %v1691 = vpop.permute.xlu0 %1690
        %1692 = vrot.lane.b32.xlu0 %v1266, 15
        %v1693 = vpop.permute.xlu0 %1692
        %1694 = vrot.lane.b32.xlu0 %v1267, 15
        %v1695 = vpop.permute.xlu0 %1694
        %1696 = vrot.lane.b32.xlu0 %v1268, 15
        %v1697 = vpop.permute.xlu0 %1696
        %1698 = vrot.lane.b32.xlu0 %v1269, 15
        %v1699 = vpop.permute.xlu0 %1698
        %1700 = vrot.lane.b32.xlu0 %v1270, 15
        %v1701 = vpop.permute.xlu0 %1700
        %v1702 = vsel %vm821, %v1691, %v1693
        %v1703 = vsel %vm821, %v1693, %v1695
        %v1704 = vsel %vm821, %v1697, %v1699
        %v1705 = vsel %vm821, %v1699, %v1701
        %v1711 = vsel %vm1291, %v1688, 0
        %v1714 = vsel %vm1291, %v1689, 0
        %1716 = vmatpush.bf16.msra.mxu0 0
        %1717 = vmatpush.bf16.msra.mxu0 0
        %1718 = vmatpush.bf16.msra.mxu0 0
        %1719 = vmatpush.bf16.msra.mxu0 0
        %1720 = vmatpush.bf16.msra.mxu0 0
        %1721 = vmatpush.bf16.msra.mxu0 0
        %1722 = vmatpush.bf16.msra.mxu0 %v1704
        %1723 = vmatpush.bf16.msra.mxu0 %v1702
        %1724 = vmatmul.bf16.gmra.mxu0 %v1711
        %v1725 = vpop.f32.mrf.mxu0
        %v1726 = vadd.f32 %v1652, %v1725
        %v1727 = vpop.f32.mrf.mxu0
        %v1728 = vadd.f32 %v1654, %v1727
        %1729 = vmatmul.bf16.gmra.mxu0 %v1714
        %v1730 = vpop.f32.mrf.mxu0
        %v1731 = vadd.f32 %v1657, %v1730
        %v1732 = vpop.f32.mrf.mxu0
        %v1733 = vadd.f32 %v1659, %v1732
        %1734 = vdwg.mxu0
        %1735 = vmatpush.bf16.msra.mxu0 0
        %1736 = vmatpush.bf16.msra.mxu0 0
        %1737 = vmatpush.bf16.msra.mxu0 0
        %1738 = vmatpush.bf16.msra.mxu0 0
        %1739 = vmatpush.bf16.msra.mxu0 0
        %1740 = vmatpush.bf16.msra.mxu0 0
        %1741 = vmatpush.bf16.msra.mxu0 %v1705
        %1742 = vmatpush.bf16.msra.mxu0 %v1703
        %1743 = vmatmul.bf16.gmra.mxu0 %v1711
        %v1744 = vpop.f32.mrf.mxu0
        %v1745 = vadd.f32 %v1671, %v1744
        %v1746 = vpop.f32.mrf.mxu0
        %v1747 = vadd.f32 %v1673, %v1746
        %1748 = vmatmul.bf16.gmra.mxu0 %v1714
        %v1749 = vpop.f32.mrf.mxu0
        %v1750 = vadd.f32 %v1676, %v1749
        %v1751 = vpop.f32.mrf.mxu0
        %v1752 = vadd.f32 %v1678, %v1751
        %1753 = vdwg.mxu0
        %s1754 = scalar_lea.vmem %s3, 96
        %v1755 = vld [vmem:[%s1754] sm:$0xf]
        %v1756 = vld [vmem:[%s1754 + $0x4] sm:$0xf]
        %v1757 = vld [vmem:[%s1754 + $0x8] sm:$0xf]
        %v1758 = vld [vmem:[%s1754 + $0xc] sm:$0xf]
        %v1763 = vunpack.c.l.b16 %v1755
        %v1764 = vunpack.c.l.b16 %v1756
        %v1765 = vunpack.c.l.b16 %v1757
        %v1766 = vunpack.c.l.b16 %v1758
        %v1767 = vpack.c.b16 %v1764, %v1763
        %v1768 = vpack.c.b16 %v1766, %v1765
        %1769 = vrot.lane.b32.xlu0 %v1610, 113
        %v1770 = vpop.permute.xlu0 %1769
        %1771 = vrot.lane.b32.xlu0 %v1611, 113
        %v1772 = vpop.permute.xlu0 %1771
        %1773 = vrot.lane.b32.xlu0 %v1612, 113
        %v1774 = vpop.permute.xlu0 %1773
        %1775 = vrot.lane.b32.xlu0 %v1613, 113
        %v1776 = vpop.permute.xlu0 %1775
        %1777 = vrot.lane.b32.xlu0 %v1614, 113
        %v1778 = vpop.permute.xlu0 %1777
        %1779 = vrot.lane.b32.xlu0 %v1615, 113
        %v1780 = vpop.permute.xlu0 %1779
        %v1781 = vsel %vm895, %v1770, %v1772
        %v1782 = vsel %vm895, %v1772, %v1774
        %v1783 = vsel %vm895, %v1776, %v1778
        %v1784 = vsel %vm895, %v1778, %v1780
        %v1790 = vsel %vm1291, %v1767, 0
        %v1793 = vsel %vm1291, %v1768, 0
        %1795 = vmatpush.bf16.msra.mxu0 0
        %1796 = vmatpush.bf16.msra.mxu0 0
        %1797 = vmatpush.bf16.msra.mxu0 0
        %1798 = vmatpush.bf16.msra.mxu0 0
        %1799 = vmatpush.bf16.msra.mxu0 0
        %1800 = vmatpush.bf16.msra.mxu0 0
        %1801 = vmatpush.bf16.msra.mxu0 %v1783
        %1802 = vmatpush.bf16.msra.mxu0 %v1781
        %1803 = vmatmul.bf16.gmra.mxu0 %v1790
        %v1804 = vpop.f32.mrf.mxu0
        %v1805 = vadd.f32 0.0, %v1804
        %v1806 = vpop.f32.mrf.mxu0
        %v1807 = vadd.f32 0.0, %v1806
        %1808 = vmatmul.bf16.gmra.mxu0 %v1793
        %v1809 = vpop.f32.mrf.mxu0
        %v1810 = vadd.f32 0.0, %v1809
        %v1811 = vpop.f32.mrf.mxu0
        %v1812 = vadd.f32 0.0, %v1811
        %1813 = vdwg.mxu0
        %1814 = vmatpush.bf16.msra.mxu0 0
        %1815 = vmatpush.bf16.msra.mxu0 0
        %1816 = vmatpush.bf16.msra.mxu0 0
        %1817 = vmatpush.bf16.msra.mxu0 0
        %1818 = vmatpush.bf16.msra.mxu0 0
        %1819 = vmatpush.bf16.msra.mxu0 0
        %1820 = vmatpush.bf16.msra.mxu0 %v1784
        %1821 = vmatpush.bf16.msra.mxu0 %v1782
        %1822 = vmatmul.bf16.gmra.mxu0 %v1790
        %v1823 = vpop.f32.mrf.mxu0
        %v1824 = vadd.f32 0.0, %v1823
        %v1825 = vpop.f32.mrf.mxu0
        %v1826 = vadd.f32 0.0, %v1825
        %1827 = vmatmul.bf16.gmra.mxu0 %v1793
        %v1828 = vpop.f32.mrf.mxu0
        %v1829 = vadd.f32 0.0, %v1828
        %v1830 = vpop.f32.mrf.mxu0
        %v1831 = vadd.f32 0.0, %v1830
        %1832 = vdwg.mxu0
        %v1833 = vadd.f32 %v1382, %v1805
        %v1834 = vadd.f32 %v1401, %v1824
        %v1835 = vadd.f32 %v1384, %v1807
        %v1836 = vadd.f32 %v1403, %v1826
        %v1837 = vadd.f32 %v1387, %v1810
        %v1838 = vadd.f32 %v1406, %v1829
        %v1839 = vadd.f32 %v1389, %v1812
        %v1840 = vadd.f32 %v1408, %v1831
        %s1841 = scalar_lea.vmem %s3, 112
        %v1842 = vld [vmem:[%s1841] sm:$0xf]
        %v1843 = vld [vmem:[%s1841 + $0x4] sm:$0xf]
        %v1844 = vld [vmem:[%s1841 + $0x8] sm:$0xf]
        %v1845 = vld [vmem:[%s1841 + $0xc] sm:$0xf]
        %v1850 = vunpack.c.l.b16 %v1842
        %v1851 = vunpack.c.l.b16 %v1843
        %v1852 = vunpack.c.l.b16 %v1844
        %v1853 = vunpack.c.l.b16 %v1845
        %v1854 = vpack.c.b16 %v1851, %v1850
        %v1855 = vpack.c.b16 %v1853, %v1852
        %1856 = vrot.lane.b32.xlu0 %v1610, 112
        %v1857 = vpop.permute.xlu0 %1856
        %1858 = vrot.lane.b32.xlu0 %v1611, 112
        %v1859 = vpop.permute.xlu0 %1858
        %1860 = vrot.lane.b32.xlu0 %v1612, 112
        %v1861 = vpop.permute.xlu0 %1860
        %1862 = vrot.lane.b32.xlu0 %v1613, 112
        %v1863 = vpop.permute.xlu0 %1862
        %1864 = vrot.lane.b32.xlu0 %v1614, 112
        %v1865 = vpop.permute.xlu0 %1864
        %1866 = vrot.lane.b32.xlu0 %v1615, 112
        %v1867 = vpop.permute.xlu0 %1866
        %v1868 = vsel %vm977, %v1857, %v1859
        %v1869 = vsel %vm977, %v1859, %v1861
        %v1870 = vsel %vm977, %v1863, %v1865
        %v1871 = vsel %vm977, %v1865, %v1867
        %v1877 = vsel %vm1291, %v1854, 0
        %v1880 = vsel %vm1291, %v1855, 0
        %1882 = vmatpush.bf16.msra.mxu0 0
        %1883 = vmatpush.bf16.msra.mxu0 0
        %1884 = vmatpush.bf16.msra.mxu0 0
        %1885 = vmatpush.bf16.msra.mxu0 0
        %1886 = vmatpush.bf16.msra.mxu0 0
        %1887 = vmatpush.bf16.msra.mxu0 0
        %1888 = vmatpush.bf16.msra.mxu0 %v1870
        %1889 = vmatpush.bf16.msra.mxu0 %v1868
        %1890 = vmatmul.bf16.gmra.mxu0 %v1877
        %v1891 = vpop.f32.mrf.mxu0
        %v1892 = vadd.f32 0.0, %v1891
        %v1893 = vpop.f32.mrf.mxu0
        %v1894 = vadd.f32 0.0, %v1893
        %1895 = vmatmul.bf16.gmra.mxu0 %v1880
        %v1896 = vpop.f32.mrf.mxu0
        %v1897 = vadd.f32 0.0, %v1896
        %v1898 = vpop.f32.mrf.mxu0
        %v1899 = vadd.f32 0.0, %v1898
        %1900 = vdwg.mxu0
        %1901 = vmatpush.bf16.msra.mxu0 0
        %1902 = vmatpush.bf16.msra.mxu0 0
        %1903 = vmatpush.bf16.msra.mxu0 0
        %1904 = vmatpush.bf16.msra.mxu0 0
        %1905 = vmatpush.bf16.msra.mxu0 0
        %1906 = vmatpush.bf16.msra.mxu0 0
        %1907 = vmatpush.bf16.msra.mxu0 %v1871
        %1908 = vmatpush.bf16.msra.mxu0 %v1869
        %1909 = vmatmul.bf16.gmra.mxu0 %v1877
        %v1910 = vpop.f32.mrf.mxu0
        %v1911 = vadd.f32 0.0, %v1910
        %v1912 = vpop.f32.mrf.mxu0
        %v1913 = vadd.f32 0.0, %v1912
        %1914 = vmatmul.bf16.gmra.mxu0 %v1880
        %v1915 = vpop.f32.mrf.mxu0
        %v1916 = vadd.f32 0.0, %v1915
        %v1917 = vpop.f32.mrf.mxu0
        %v1918 = vadd.f32 0.0, %v1917
        %1919 = vdwg.mxu0
        %v1920 = vadd.f32 %v1539, %v1892
        %v1921 = vadd.f32 %v1558, %v1911
        %v1922 = vadd.f32 %v1541, %v1894
        %v1923 = vadd.f32 %v1560, %v1913
        %v1924 = vadd.f32 %v1544, %v1897
        %v1925 = vadd.f32 %v1563, %v1916
        %v1926 = vadd.f32 %v1546, %v1899
        %v1927 = vadd.f32 %v1565, %v1918
        %s1928 = scalar_lea.vmem %s3, 128
        %v1929 = vld [vmem:[%s1928] sm:$0xf]
        %v1930 = vld [vmem:[%s1928 + $0x4] sm:$0xf]
        %v1931 = vld [vmem:[%s1928 + $0x8] sm:$0xf]
        %v1932 = vld [vmem:[%s1928 + $0xc] sm:$0xf]
        %v1937 = vunpack.c.l.b16 %v1929
        %v1938 = vunpack.c.l.b16 %v1930
        %v1939 = vunpack.c.l.b16 %v1931
        %v1940 = vunpack.c.l.b16 %v1932
        %v1941 = vpack.c.b16 %v1938, %v1937
        %v1942 = vpack.c.b16 %v1940, %v1939
        %1943 = vrot.lane.b32.xlu0 %v1610, 111
        %v1944 = vpop.permute.xlu0 %1943
        %1945 = vrot.lane.b32.xlu0 %v1611, 111
        %v1946 = vpop.permute.xlu0 %1945
        %1947 = vrot.lane.b32.xlu0 %v1612, 111
        %v1948 = vpop.permute.xlu0 %1947
        %1949 = vrot.lane.b32.xlu0 %v1613, 111
        %v1950 = vpop.permute.xlu0 %1949
        %1951 = vrot.lane.b32.xlu0 %v1614, 111
        %v1952 = vpop.permute.xlu0 %1951
        %1953 = vrot.lane.b32.xlu0 %v1615, 111
        %v1954 = vpop.permute.xlu0 %1953
        %v1955 = vsel %vm1059, %v1944, %v1946
        %v1956 = vsel %vm1059, %v1946, %v1948
        %v1957 = vsel %vm1059, %v1950, %v1952
        %v1958 = vsel %vm1059, %v1952, %v1954
        %v1964 = vsel %vm1291, %v1941, 0
        %v1967 = vsel %vm1291, %v1942, 0
        %1969 = vmatpush.bf16.msra.mxu0 0
        %1970 = vmatpush.bf16.msra.mxu0 0
        %1971 = vmatpush.bf16.msra.mxu0 0
        %1972 = vmatpush.bf16.msra.mxu0 0
        %1973 = vmatpush.bf16.msra.mxu0 0
        %1974 = vmatpush.bf16.msra.mxu0 0
        %1975 = vmatpush.bf16.msra.mxu0 %v1957
        %1976 = vmatpush.bf16.msra.mxu0 %v1955
        %1977 = vmatmul.bf16.gmra.mxu0 %v1964
        %v1978 = vpop.f32.mrf.mxu0
        %v1979 = vadd.f32 0.0, %v1978
        %v1980 = vpop.f32.mrf.mxu0
        %v1981 = vadd.f32 0.0, %v1980
        %1982 = vmatmul.bf16.gmra.mxu0 %v1967
        %v1983 = vpop.f32.mrf.mxu0
        %v1984 = vadd.f32 0.0, %v1983
        %v1985 = vpop.f32.mrf.mxu0
        %v1986 = vadd.f32 0.0, %v1985
        %1987 = vdwg.mxu0
        %1988 = vmatpush.bf16.msra.mxu0 0
        %1989 = vmatpush.bf16.msra.mxu0 0
        %1990 = vmatpush.bf16.msra.mxu0 0
        %1991 = vmatpush.bf16.msra.mxu0 0
        %1992 = vmatpush.bf16.msra.mxu0 0
        %1993 = vmatpush.bf16.msra.mxu0 0
        %1994 = vmatpush.bf16.msra.mxu0 %v1958
        %1995 = vmatpush.bf16.msra.mxu0 %v1956
        %1996 = vmatmul.bf16.gmra.mxu0 %v1964
        %v1997 = vpop.f32.mrf.mxu0
        %v1998 = vadd.f32 0.0, %v1997
        %v1999 = vpop.f32.mrf.mxu0
        %v2000 = vadd.f32 0.0, %v1999
        %2001 = vmatmul.bf16.gmra.mxu0 %v1967
        %v2002 = vpop.f32.mrf.mxu0
        %v2003 = vadd.f32 0.0, %v2002
        %v2004 = vpop.f32.mrf.mxu0
        %v2005 = vadd.f32 0.0, %v2004
        %2006 = vdwg.mxu0
        %v2007 = vadd.f32 %v1726, %v1979
        %v2008 = vadd.f32 %v1745, %v1998
        %v2009 = vadd.f32 %v1728, %v1981
        %v2010 = vadd.f32 %v1747, %v2000
        %v2011 = vadd.f32 %v1731, %v1984
        %v2012 = vadd.f32 %v1750, %v2003
        %v2013 = vadd.f32 %v1733, %v1986
        %v2014 = vadd.f32 %v1752, %v2005
        %v2015 = vld [vmem:[%s4] sm:$0xff]
        %v2016 = vld [vmem:[%s4 + $0x8] sm:$0xff]
        %v2017 = vld [vmem:[%s4 + $0x10] sm:$0xff]
        %v2018 = vld [vmem:[%s4 + $0x18] sm:$0xff]
        %2020 = vset.pattern.permute.xlu0 0
        %2021 = vperm.xlu0 %2020, %v2015
        %v2022 = vpop.permute.xlu0 %2021
        %2025 = vset.pattern.permute.xlu0 0
        %2026 = vperm.xlu0 %2025, %v2016
        %v2027 = vpop.permute.xlu0 %2026
        %2030 = vset.pattern.permute.xlu0 0
        %2031 = vperm.xlu0 %2030, %v2017
        %v2032 = vpop.permute.xlu0 %2031
        %2035 = vset.pattern.permute.xlu0 0
        %2036 = vperm.xlu0 %2035, %v2018
        %v2037 = vpop.permute.xlu0 %2036
        %v2039 = vadd.f32 %v1920, %v2022
        %v2040 = vadd.f32 %v1921, %v2022
        %v2041 = vadd.f32 %v1922, %v2027
        %v2042 = vadd.f32 %v1923, %v2027
        %v2043 = vadd.f32 %v1924, %v2032
        %v2044 = vadd.f32 %v1925, %v2032
        %v2045 = vadd.f32 %v1926, %v2037
        %v2046 = vadd.f32 %v1927, %v2037
        %v2047 = vsel %vm1154, %v1833, 0.0
        %v2048 = vsel %vm1155, %v1834, 0.0
        %v2049 = vsel %vm1154, %v1835, 0.0
        %v2050 = vsel %vm1155, %v1836, 0.0
        %v2051 = vsel %vm1154, %v1837, 0.0
        %v2052 = vsel %vm1155, %v1838, 0.0
        %v2053 = vsel %vm1154, %v1839, 0.0
        %v2054 = vsel %vm1155, %v1840, 0.0
        %v2055 = vadd.f32 %v2039, %v2047
        %v2056 = vadd.f32 %v2040, %v2048
        %v2057 = vadd.f32 %v2041, %v2049
        %v2058 = vadd.f32 %v2042, %v2050
        %v2059 = vadd.f32 %v2043, %v2051
        %v2060 = vadd.f32 %v2044, %v2052
        %v2061 = vadd.f32 %v2045, %v2053
        %v2062 = vadd.f32 %v2046, %v2054
        %v2063 = vsel %vm1174, %v2007, 0.0
        %v2064 = vsel %vm1175, %v2008, 0.0
        %v2065 = vsel %vm1174, %v2009, 0.0
        %v2066 = vsel %vm1175, %v2010, 0.0
        %v2067 = vsel %vm1174, %v2011, 0.0
        %v2068 = vsel %vm1175, %v2012, 0.0
        %v2069 = vsel %vm1174, %v2013, 0.0
        %v2070 = vsel %vm1175, %v2014, 0.0
        %v2071 = vadd.f32 %v2055, %v2063
        %v2072 = vadd.f32 %v2056, %v2064
        %v2073 = vadd.f32 %v2057, %v2065
        %v2074 = vadd.f32 %v2058, %v2066
        %v2075 = vadd.f32 %v2059, %v2067
        %v2076 = vadd.f32 %v2060, %v2068
        %v2077 = vadd.f32 %v2061, %v2069
        %v2078 = vadd.f32 %v2062, %v2070
        %v2079 = vmax.f32 %v2071, 0.0
        %v2080 = vmax.f32 %v2072, 0.0
        %v2081 = vmax.f32 %v2073, 0.0
        %v2082 = vmax.f32 %v2074, 0.0
        %v2083 = vmax.f32 %v2075, 0.0
        %v2084 = vmax.f32 %v2076, 0.0
        %v2085 = vmax.f32 %v2077, 0.0
        %v2086 = vmax.f32 %v2078, 0.0
        %v2087 = vpack.c.bf16 %v2080, %v2079
        %v2088 = vpack.c.bf16 %v2082, %v2081
        %v2089 = vpack.c.bf16 %v2084, %v2083
        %v2090 = vpack.c.bf16 %v2086, %v2085
        %2091 = vst [vmem:[#allocation2 + $0x4] sm:$0xff] %v2087
        %2092 = vst [vmem:[#allocation2 + $0x14] sm:$0xff] %v2088
        %2093 = vst [vmem:[#allocation2 + $0x24] sm:$0xff] %v2089
        %2094 = vst [vmem:[#allocation2 + $0x34] sm:$0xff] %v2090
        %v2095 = vld [vmem:[#allocation2] sm:$0xff]
        %v2096 = vld [vmem:[#allocation2 + $0x8] sm:$0xf]
        %v2097 = vld [vmem:[#allocation2 + $0x10] sm:$0xff]
        %v2098 = vld [vmem:[#allocation2 + $0x18] sm:$0xf]
        %v2099 = vld [vmem:[#allocation2 + $0x20] sm:$0xff]
        %v2100 = vld [vmem:[#allocation2 + $0x28] sm:$0xf]
        %v2101 = vld [vmem:[#allocation2 + $0x30] sm:$0xff]
        %v2102 = vld [vmem:[#allocation2 + $0x38] sm:$0xf]
        %v2103 = vld [vmem:[#allocation3] sm:$0xf]
        %v2104 = vld [vmem:[#allocation3 + $0x4] sm:$0xf]
        %v2105 = vld [vmem:[#allocation3 + $0x8] sm:$0xf]
        %v2106 = vld [vmem:[#allocation3 + $0xc] sm:$0xf]
        %s2107 = scalar_lea.vmem [#allocation3], 16
        %v2108 = vld [vmem:[%s2107] sm:$0xf]
        %v2109 = vld [vmem:[%s2107 + $0x4] sm:$0xf]
        %v2110 = vld [vmem:[%s2107 + $0x8] sm:$0xf]
        %v2111 = vld [vmem:[%s2107 + $0xc] sm:$0xf]
        %s2112 = scalar_lea.vmem [#allocation3], 32
        %v2113 = vld [vmem:[%s2112] sm:$0xf]
        %v2114 = vld [vmem:[%s2112 + $0x4] sm:$0xf]
        %v2115 = vld [vmem:[%s2112 + $0x8] sm:$0xf]
        %v2116 = vld [vmem:[%s2112 + $0xc] sm:$0xf]
        %s2117 = scalar_lea.vmem [#allocation3], 48
        %v2118 = vld [vmem:[%s2117] sm:$0xf]
        %v2119 = vld [vmem:[%s2117 + $0x4] sm:$0xf]
        %v2120 = vld [vmem:[%s2117 + $0x8] sm:$0xf]
        %v2121 = vld [vmem:[%s2117 + $0xc] sm:$0xf]
        %v2126 = vunpack.c.l.b16 %v2118
        %v2127 = vunpack.c.l.b16 %v2119
        %v2128 = vunpack.c.l.b16 %v2120
        %v2129 = vunpack.c.l.b16 %v2121
        %v2130 = vpack.c.b16 %v2127, %v2126
        %v2131 = vpack.c.b16 %v2129, %v2128
        %v2140 = vunpack.c.l.b16 %v2095
        %v2141 = vunpack.c.h.b16 %v2095
        %v2142 = vunpack.c.l.b16 %v2096
        %v2143 = vunpack.c.l.b16 %v2097
        %v2144 = vunpack.c.h.b16 %v2097
        %v2145 = vunpack.c.l.b16 %v2098
        %v2146 = vunpack.c.l.b16 %v2099
        %v2147 = vunpack.c.h.b16 %v2099
        %v2148 = vunpack.c.l.b16 %v2100
        %v2149 = vunpack.c.l.b16 %v2101
        %v2150 = vunpack.c.h.b16 %v2101
        %v2151 = vunpack.c.l.b16 %v2102
        %v2152 = vpack.c.b16 %v2143, %v2140
        %v2153 = vpack.c.b16 %v2144, %v2141
        %v2154 = vpack.c.b16 %v2145, %v2142
        %v2155 = vpack.c.b16 %v2149, %v2146
        %v2156 = vpack.c.b16 %v2150, %v2147
        %v2157 = vpack.c.b16 %v2151, %v2148
        %2158 = vrot.lane.b32.xlu0 %v2152, 1
        %v2159 = vpop.permute.xlu0 %2158
        %2160 = vrot.lane.b32.xlu0 %v2153, 1
        %v2161 = vpop.permute.xlu0 %2160
        %2162 = vrot.lane.b32.xlu0 %v2154, 1
        %v2163 = vpop.permute.xlu0 %2162
        %2164 = vrot.lane.b32.xlu0 %v2155, 1
        %v2165 = vpop.permute.xlu0 %2164
        %2166 = vrot.lane.b32.xlu0 %v2156, 1
        %v2167 = vpop.permute.xlu0 %2166
        %2168 = vrot.lane.b32.xlu0 %v2157, 1
        %v2169 = vpop.permute.xlu0 %2168
        %v2170 = vsel %vm454, %v2159, %v2161
        %v2171 = vsel %vm454, %v2161, %v2163
        %v2172 = vsel %vm454, %v2165, %v2167
        %v2173 = vsel %vm454, %v2167, %v2169
        %v2179 = vsel %vm1291, %v2130, 0
        %v2182 = vsel %vm1291, %v2131, 0
        %2184 = vmatpush.bf16.msra.mxu0 0
        %2185 = vmatpush.bf16.msra.mxu0 0
        %2186 = vmatpush.bf16.msra.mxu0 0
        %2187 = vmatpush.bf16.msra.mxu0 0
        %2188 = vmatpush.bf16.msra.mxu0 0
        %2189 = vmatpush.bf16.msra.mxu0 0
        %2190 = vmatpush.bf16.msra.mxu0 %v2172
        %2191 = vmatpush.bf16.msra.mxu0 %v2170
        %2192 = vmatmul.bf16.gmra.mxu0 %v2179
        %v2193 = vpop.f32.mrf.mxu0
        %v2194 = vadd.f32 0.0, %v2193
        %v2195 = vpop.f32.mrf.mxu0
        %v2196 = vadd.f32 0.0, %v2195
        %2197 = vmatmul.bf16.gmra.mxu0 %v2182
        %v2198 = vpop.f32.mrf.mxu0
        %v2199 = vadd.f32 0.0, %v2198
        %v2200 = vpop.f32.mrf.mxu0
        %v2201 = vadd.f32 0.0, %v2200
        %2202 = vdwg.mxu0
        %2203 = vmatpush.bf16.msra.mxu0 0
        %2204 = vmatpush.bf16.msra.mxu0 0
        %2205 = vmatpush.bf16.msra.mxu0 0
        %2206 = vmatpush.bf16.msra.mxu0 0
        %2207 = vmatpush.bf16.msra.mxu0 0
        %2208 = vmatpush.bf16.msra.mxu0 0
        %2209 = vmatpush.bf16.msra.mxu0 %v2173
        %2210 = vmatpush.bf16.msra.mxu0 %v2171
        %2211 = vmatmul.bf16.gmra.mxu0 %v2179
        %v2212 = vpop.f32.mrf.mxu0
        %v2213 = vadd.f32 0.0, %v2212
        %v2214 = vpop.f32.mrf.mxu0
        %v2215 = vadd.f32 0.0, %v2214
        %2216 = vmatmul.bf16.gmra.mxu0 %v2182
        %v2217 = vpop.f32.mrf.mxu0
        %v2218 = vadd.f32 0.0, %v2217
        %v2219 = vpop.f32.mrf.mxu0
        %v2220 = vadd.f32 0.0, %v2219
        %2221 = vdwg.mxu0
        %v2226 = vunpack.c.l.b16 %v2103
        %v2227 = vunpack.c.l.b16 %v2104
        %v2228 = vunpack.c.l.b16 %v2105
        %v2229 = vunpack.c.l.b16 %v2106
        %v2230 = vpack.c.b16 %v2227, %v2226
        %v2231 = vpack.c.b16 %v2229, %v2228
        %2232 = vrot.lane.b32.xlu0 %v2152, 17
        %v2233 = vpop.permute.xlu0 %2232
        %2234 = vrot.lane.b32.xlu0 %v2153, 17
        %v2235 = vpop.permute.xlu0 %2234
        %2236 = vrot.lane.b32.xlu0 %v2154, 17
        %v2237 = vpop.permute.xlu0 %2236
        %2238 = vrot.lane.b32.xlu0 %v2155, 17
        %v2239 = vpop.permute.xlu0 %2238
        %2240 = vrot.lane.b32.xlu0 %v2156, 17
        %v2241 = vpop.permute.xlu0 %2240
        %2242 = vrot.lane.b32.xlu0 %v2157, 17
        %v2243 = vpop.permute.xlu0 %2242
        %v2244 = vsel %vm528, %v2233, %v2235
        %v2245 = vsel %vm528, %v2235, %v2237
        %v2246 = vsel %vm528, %v2239, %v2241
        %v2247 = vsel %vm528, %v2241, %v2243
        %v2253 = vsel %vm1291, %v2230, 0
        %v2256 = vsel %vm1291, %v2231, 0
        %2258 = vmatpush.bf16.msra.mxu0 0
        %2259 = vmatpush.bf16.msra.mxu0 0
        %2260 = vmatpush.bf16.msra.mxu0 0
        %2261 = vmatpush.bf16.msra.mxu0 0
        %2262 = vmatpush.bf16.msra.mxu0 0
        %2263 = vmatpush.bf16.msra.mxu0 0
        %2264 = vmatpush.bf16.msra.mxu0 %v2246
        %2265 = vmatpush.bf16.msra.mxu0 %v2244
        %2266 = vmatmul.bf16.gmra.mxu0 %v2253
        %v2267 = vpop.f32.mrf.mxu0
        %v2268 = vadd.f32 %v2194, %v2267
        %v2269 = vpop.f32.mrf.mxu0
        %v2270 = vadd.f32 %v2196, %v2269
        %2271 = vmatmul.bf16.gmra.mxu0 %v2256
        %v2272 = vpop.f32.mrf.mxu0
        %v2273 = vadd.f32 %v2199, %v2272
        %v2274 = vpop.f32.mrf.mxu0
        %v2275 = vadd.f32 %v2201, %v2274
        %2276 = vdwg.mxu0
        %2277 = vmatpush.bf16.msra.mxu0 0
        %2278 = vmatpush.bf16.msra.mxu0 0
        %2279 = vmatpush.bf16.msra.mxu0 0
        %2280 = vmatpush.bf16.msra.mxu0 0
        %2281 = vmatpush.bf16.msra.mxu0 0
        %2282 = vmatpush.bf16.msra.mxu0 0
        %2283 = vmatpush.bf16.msra.mxu0 %v2247
        %2284 = vmatpush.bf16.msra.mxu0 %v2245
        %2285 = vmatmul.bf16.gmra.mxu0 %v2253
        %v2286 = vpop.f32.mrf.mxu0
        %v2287 = vadd.f32 %v2213, %v2286
        %v2288 = vpop.f32.mrf.mxu0
        %v2289 = vadd.f32 %v2215, %v2288
        %2290 = vmatmul.bf16.gmra.mxu0 %v2256
        %v2291 = vpop.f32.mrf.mxu0
        %v2292 = vadd.f32 %v2218, %v2291
        %v2293 = vpop.f32.mrf.mxu0
        %v2294 = vadd.f32 %v2220, %v2293
        %2295 = vdwg.mxu0
        %v2296 = vld [vmem:[#allocation2 + $0x4] sm:$0xff]
        %v2297 = vld [vmem:[#allocation2 + $0x14] sm:$0xff]
        %v2298 = vld [vmem:[#allocation2 + $0x24] sm:$0xff]
        %v2299 = vld [vmem:[#allocation2 + $0x34] sm:$0xff]
        %s2300 = scalar_lea.vmem [#allocation3], 64
        %v2301 = vld [vmem:[%s2300] sm:$0xf]
        %v2302 = vld [vmem:[%s2300 + $0x4] sm:$0xf]
        %v2303 = vld [vmem:[%s2300 + $0x8] sm:$0xf]
        %v2304 = vld [vmem:[%s2300 + $0xc] sm:$0xf]
        %v2309 = vunpack.c.l.b16 %v2301
        %v2310 = vunpack.c.l.b16 %v2302
        %v2311 = vunpack.c.l.b16 %v2303
        %v2312 = vunpack.c.l.b16 %v2304
        %v2313 = vpack.c.b16 %v2310, %v2309
        %v2314 = vpack.c.b16 %v2312, %v2311
        %v2319 = vunpack.c.l.b16 %v2296
        %v2320 = vunpack.c.h.b16 %v2296
        %v2321 = vunpack.c.l.b16 %v2297
        %v2322 = vunpack.c.h.b16 %v2297
        %v2323 = vunpack.c.l.b16 %v2298
        %v2324 = vunpack.c.h.b16 %v2298
        %v2325 = vunpack.c.l.b16 %v2299
        %v2326 = vunpack.c.h.b16 %v2299
        %v2327 = vpack.c.b16 %v2321, %v2319
        %v2328 = vpack.c.b16 %v2322, %v2320
        %v2329 = vpack.c.b16 %v2325, %v2323
        %v2330 = vpack.c.b16 %v2326, %v2324
        %v2336 = vsel %vm1291, %v2313, 0
        %v2339 = vsel %vm1291, %v2314, 0
        %2341 = vmatpush.bf16.msra.mxu0 0
        %2342 = vmatpush.bf16.msra.mxu0 0
        %2343 = vmatpush.bf16.msra.mxu0 0
        %2344 = vmatpush.bf16.msra.mxu0 0
        %2345 = vmatpush.bf16.msra.mxu0 0
        %2346 = vmatpush.bf16.msra.mxu0 0
        %2347 = vmatpush.bf16.msra.mxu0 %v2329
        %2348 = vmatpush.bf16.msra.mxu0 %v2327
        %2349 = vmatmul.bf16.gmra.mxu0 %v2336
        %v2350 = vpop.f32.mrf.mxu0
        %v2351 = vadd.f32 0.0, %v2350
        %v2352 = vpop.f32.mrf.mxu0
        %v2353 = vadd.f32 0.0, %v2352
        %2354 = vmatmul.bf16.gmra.mxu0 %v2339
        %v2355 = vpop.f32.mrf.mxu0
        %v2356 = vadd.f32 0.0, %v2355
        %v2357 = vpop.f32.mrf.mxu0
        %v2358 = vadd.f32 0.0, %v2357
        %2359 = vdwg.mxu0
        %2360 = vmatpush.bf16.msra.mxu0 0
        %2361 = vmatpush.bf16.msra.mxu0 0
        %2362 = vmatpush.bf16.msra.mxu0 0
        %2363 = vmatpush.bf16.msra.mxu0 0
        %2364 = vmatpush.bf16.msra.mxu0 0
        %2365 = vmatpush.bf16.msra.mxu0 0
        %2366 = vmatpush.bf16.msra.mxu0 %v2330
        %2367 = vmatpush.bf16.msra.mxu0 %v2328
        %2368 = vmatmul.bf16.gmra.mxu0 %v2336
        %v2369 = vpop.f32.mrf.mxu0
        %v2370 = vadd.f32 0.0, %v2369
        %v2371 = vpop.f32.mrf.mxu0
        %v2372 = vadd.f32 0.0, %v2371
        %2373 = vmatmul.bf16.gmra.mxu0 %v2339
        %v2374 = vpop.f32.mrf.mxu0
        %v2375 = vadd.f32 0.0, %v2374
        %v2376 = vpop.f32.mrf.mxu0
        %v2377 = vadd.f32 0.0, %v2376
        %2378 = vdwg.mxu0
        %v2383 = vunpack.c.l.b16 %v2108
        %v2384 = vunpack.c.l.b16 %v2109
        %v2385 = vunpack.c.l.b16 %v2110
        %v2386 = vunpack.c.l.b16 %v2111
        %v2387 = vpack.c.b16 %v2384, %v2383
        %v2388 = vpack.c.b16 %v2386, %v2385
        %2389 = vrot.lane.b32.xlu0 %v2152, 16
        %v2390 = vpop.permute.xlu0 %2389
        %2391 = vrot.lane.b32.xlu0 %v2153, 16
        %v2392 = vpop.permute.xlu0 %2391
        %2393 = vrot.lane.b32.xlu0 %v2154, 16
        %v2394 = vpop.permute.xlu0 %2393
        %2395 = vrot.lane.b32.xlu0 %v2155, 16
        %v2396 = vpop.permute.xlu0 %2395
        %2397 = vrot.lane.b32.xlu0 %v2156, 16
        %v2398 = vpop.permute.xlu0 %2397
        %2399 = vrot.lane.b32.xlu0 %v2157, 16
        %v2400 = vpop.permute.xlu0 %2399
        %v2401 = vsel %vm668, %v2390, %v2392
        %v2402 = vsel %vm668, %v2392, %v2394
        %v2403 = vsel %vm668, %v2396, %v2398
        %v2404 = vsel %vm668, %v2398, %v2400
        %v2410 = vsel %vm1291, %v2387, 0
        %v2413 = vsel %vm1291, %v2388, 0
        %2415 = vmatpush.bf16.msra.mxu0 0
        %2416 = vmatpush.bf16.msra.mxu0 0
        %2417 = vmatpush.bf16.msra.mxu0 0
        %2418 = vmatpush.bf16.msra.mxu0 0
        %2419 = vmatpush.bf16.msra.mxu0 0
        %2420 = vmatpush.bf16.msra.mxu0 0
        %2421 = vmatpush.bf16.msra.mxu0 %v2403
        %2422 = vmatpush.bf16.msra.mxu0 %v2401
        %2423 = vmatmul.bf16.gmra.mxu0 %v2410
        %v2424 = vpop.f32.mrf.mxu0
        %v2425 = vadd.f32 %v2351, %v2424
        %v2426 = vpop.f32.mrf.mxu0
        %v2427 = vadd.f32 %v2353, %v2426
        %2428 = vmatmul.bf16.gmra.mxu0 %v2413
        %v2429 = vpop.f32.mrf.mxu0
        %v2430 = vadd.f32 %v2356, %v2429
        %v2431 = vpop.f32.mrf.mxu0
        %v2432 = vadd.f32 %v2358, %v2431
        %2433 = vdwg.mxu0
        %2434 = vmatpush.bf16.msra.mxu0 0
        %2435 = vmatpush.bf16.msra.mxu0 0
        %2436 = vmatpush.bf16.msra.mxu0 0
        %2437 = vmatpush.bf16.msra.mxu0 0
        %2438 = vmatpush.bf16.msra.mxu0 0
        %2439 = vmatpush.bf16.msra.mxu0 0
        %2440 = vmatpush.bf16.msra.mxu0 %v2404
        %2441 = vmatpush.bf16.msra.mxu0 %v2402
        %2442 = vmatmul.bf16.gmra.mxu0 %v2410
        %v2443 = vpop.f32.mrf.mxu0
        %v2444 = vadd.f32 %v2370, %v2443
        %v2445 = vpop.f32.mrf.mxu0
        %v2446 = vadd.f32 %v2372, %v2445
        %2447 = vmatmul.bf16.gmra.mxu0 %v2413
        %v2448 = vpop.f32.mrf.mxu0
        %v2449 = vadd.f32 %v2375, %v2448
        %v2450 = vpop.f32.mrf.mxu0
        %v2451 = vadd.f32 %v2377, %v2450
        %2452 = vdwg.mxu0
        %v2453 = vld [vmem:[#allocation2 + $0x4] sm:$0xff]
        %v2454 = vld [vmem:[#allocation2 + $0xc] sm:$0xf]
        %v2455 = vld [vmem:[#allocation2 + $0x14] sm:$0xff]
        %v2456 = vld [vmem:[#allocation2 + $0x1c] sm:$0xf]
        %v2457 = vld [vmem:[#allocation2 + $0x24] sm:$0xff]
        %v2458 = vld [vmem:[#allocation2 + $0x2c] sm:$0xf]
        %v2459 = vld [vmem:[#allocation2 + $0x34] sm:$0xff]
        %v2460 = vld [vmem:[#allocation2 + $0x3c] sm:$0xf]
        %s2461 = scalar_lea.vmem [#allocation3], 80
        %v2462 = vld [vmem:[%s2461] sm:$0xf]
        %v2463 = vld [vmem:[%s2461 + $0x4] sm:$0xf]
        %v2464 = vld [vmem:[%s2461 + $0x8] sm:$0xf]
        %v2465 = vld [vmem:[%s2461 + $0xc] sm:$0xf]
        %v2470 = vunpack.c.l.b16 %v2462
        %v2471 = vunpack.c.l.b16 %v2463
        %v2472 = vunpack.c.l.b16 %v2464
        %v2473 = vunpack.c.l.b16 %v2465
        %v2474 = vpack.c.b16 %v2471, %v2470
        %v2475 = vpack.c.b16 %v2473, %v2472
        %v2484 = vunpack.c.l.b16 %v2453
        %v2485 = vunpack.c.h.b16 %v2453
        %v2486 = vunpack.c.l.b16 %v2454
        %v2487 = vunpack.c.l.b16 %v2455
        %v2488 = vunpack.c.h.b16 %v2455
        %v2489 = vunpack.c.l.b16 %v2456
        %v2490 = vunpack.c.l.b16 %v2457
        %v2491 = vunpack.c.h.b16 %v2457
        %v2492 = vunpack.c.l.b16 %v2458
        %v2493 = vunpack.c.l.b16 %v2459
        %v2494 = vunpack.c.h.b16 %v2459
        %v2495 = vunpack.c.l.b16 %v2460
        %v2496 = vpack.c.b16 %v2487, %v2484
        %v2497 = vpack.c.b16 %v2488, %v2485
        %v2498 = vpack.c.b16 %v2489, %v2486
        %v2499 = vpack.c.b16 %v2493, %v2490
        %v2500 = vpack.c.b16 %v2494, %v2491
        %v2501 = vpack.c.b16 %v2495, %v2492
        %2502 = vrot.lane.b32.xlu0 %v2496, 127
        %v2503 = vpop.permute.xlu0 %2502
        %2504 = vrot.lane.b32.xlu0 %v2497, 127
        %v2505 = vpop.permute.xlu0 %2504
        %2506 = vrot.lane.b32.xlu0 %v2498, 127
        %v2507 = vpop.permute.xlu0 %2506
        %2508 = vrot.lane.b32.xlu0 %v2499, 127
        %v2509 = vpop.permute.xlu0 %2508
        %2510 = vrot.lane.b32.xlu0 %v2500, 127
        %v2511 = vpop.permute.xlu0 %2510
        %2512 = vrot.lane.b32.xlu0 %v2501, 127
        %v2513 = vpop.permute.xlu0 %2512
        %v2514 = vsel %vm752, %v2503, %v2505
        %v2515 = vsel %vm752, %v2505, %v2507
        %v2516 = vsel %vm752, %v2509, %v2511
        %v2517 = vsel %vm752, %v2511, %v2513
        %v2523 = vsel %vm1291, %v2474, 0
        %v2526 = vsel %vm1291, %v2475, 0
        %2528 = vmatpush.bf16.msra.mxu0 0
        %2529 = vmatpush.bf16.msra.mxu0 0
        %2530 = vmatpush.bf16.msra.mxu0 0
        %2531 = vmatpush.bf16.msra.mxu0 0
        %2532 = vmatpush.bf16.msra.mxu0 0
        %2533 = vmatpush.bf16.msra.mxu0 0
        %2534 = vmatpush.bf16.msra.mxu0 %v2516
        %2535 = vmatpush.bf16.msra.mxu0 %v2514
        %2536 = vmatmul.bf16.gmra.mxu0 %v2523
        %v2537 = vpop.f32.mrf.mxu0
        %v2538 = vadd.f32 0.0, %v2537
        %v2539 = vpop.f32.mrf.mxu0
        %v2540 = vadd.f32 0.0, %v2539
        %2541 = vmatmul.bf16.gmra.mxu0 %v2526
        %v2542 = vpop.f32.mrf.mxu0
        %v2543 = vadd.f32 0.0, %v2542
        %v2544 = vpop.f32.mrf.mxu0
        %v2545 = vadd.f32 0.0, %v2544
        %2546 = vdwg.mxu0
        %2547 = vmatpush.bf16.msra.mxu0 0
        %2548 = vmatpush.bf16.msra.mxu0 0
        %2549 = vmatpush.bf16.msra.mxu0 0
        %2550 = vmatpush.bf16.msra.mxu0 0
        %2551 = vmatpush.bf16.msra.mxu0 0
        %2552 = vmatpush.bf16.msra.mxu0 0
        %2553 = vmatpush.bf16.msra.mxu0 %v2517
        %2554 = vmatpush.bf16.msra.mxu0 %v2515
        %2555 = vmatmul.bf16.gmra.mxu0 %v2523
        %v2556 = vpop.f32.mrf.mxu0
        %v2557 = vadd.f32 0.0, %v2556
        %v2558 = vpop.f32.mrf.mxu0
        %v2559 = vadd.f32 0.0, %v2558
        %2560 = vmatmul.bf16.gmra.mxu0 %v2526
        %v2561 = vpop.f32.mrf.mxu0
        %v2562 = vadd.f32 0.0, %v2561
        %v2563 = vpop.f32.mrf.mxu0
        %v2564 = vadd.f32 0.0, %v2563
        %2565 = vdwg.mxu0
        %v2570 = vunpack.c.l.b16 %v2113
        %v2571 = vunpack.c.l.b16 %v2114
        %v2572 = vunpack.c.l.b16 %v2115
        %v2573 = vunpack.c.l.b16 %v2116
        %v2574 = vpack.c.b16 %v2571, %v2570
        %v2575 = vpack.c.b16 %v2573, %v2572
        %2576 = vrot.lane.b32.xlu0 %v2152, 15
        %v2577 = vpop.permute.xlu0 %2576
        %2578 = vrot.lane.b32.xlu0 %v2153, 15
        %v2579 = vpop.permute.xlu0 %2578
        %2580 = vrot.lane.b32.xlu0 %v2154, 15
        %v2581 = vpop.permute.xlu0 %2580
        %2582 = vrot.lane.b32.xlu0 %v2155, 15
        %v2583 = vpop.permute.xlu0 %2582
        %2584 = vrot.lane.b32.xlu0 %v2156, 15
        %v2585 = vpop.permute.xlu0 %2584
        %2586 = vrot.lane.b32.xlu0 %v2157, 15
        %v2587 = vpop.permute.xlu0 %2586
        %v2588 = vsel %vm821, %v2577, %v2579
        %v2589 = vsel %vm821, %v2579, %v2581
        %v2590 = vsel %vm821, %v2583, %v2585
        %v2591 = vsel %vm821, %v2585, %v2587
        %v2597 = vsel %vm1291, %v2574, 0
        %v2600 = vsel %vm1291, %v2575, 0
        %2602 = vmatpush.bf16.msra.mxu0 0
        %2603 = vmatpush.bf16.msra.mxu0 0
        %2604 = vmatpush.bf16.msra.mxu0 0
        %2605 = vmatpush.bf16.msra.mxu0 0
        %2606 = vmatpush.bf16.msra.mxu0 0
        %2607 = vmatpush.bf16.msra.mxu0 0
        %2608 = vmatpush.bf16.msra.mxu0 %v2590
        %2609 = vmatpush.bf16.msra.mxu0 %v2588
        %2610 = vmatmul.bf16.gmra.mxu0 %v2597
        %v2611 = vpop.f32.mrf.mxu0
        %v2612 = vadd.f32 %v2538, %v2611
        %v2613 = vpop.f32.mrf.mxu0
        %v2614 = vadd.f32 %v2540, %v2613
        %2615 = vmatmul.bf16.gmra.mxu0 %v2600
        %v2616 = vpop.f32.mrf.mxu0
        %v2617 = vadd.f32 %v2543, %v2616
        %v2618 = vpop.f32.mrf.mxu0
        %v2619 = vadd.f32 %v2545, %v2618
        %2620 = vdwg.mxu0
        %2621 = vmatpush.bf16.msra.mxu0 0
        %2622 = vmatpush.bf16.msra.mxu0 0
        %2623 = vmatpush.bf16.msra.mxu0 0
        %2624 = vmatpush.bf16.msra.mxu0 0
        %2625 = vmatpush.bf16.msra.mxu0 0
        %2626 = vmatpush.bf16.msra.mxu0 0
        %2627 = vmatpush.bf16.msra.mxu0 %v2591
        %2628 = vmatpush.bf16.msra.mxu0 %v2589
        %2629 = vmatmul.bf16.gmra.mxu0 %v2597
        %v2630 = vpop.f32.mrf.mxu0
        %v2631 = vadd.f32 %v2557, %v2630
        %v2632 = vpop.f32.mrf.mxu0
        %v2633 = vadd.f32 %v2559, %v2632
        %2634 = vmatmul.bf16.gmra.mxu0 %v2600
        %v2635 = vpop.f32.mrf.mxu0
        %v2636 = vadd.f32 %v2562, %v2635
        %v2637 = vpop.f32.mrf.mxu0
        %v2638 = vadd.f32 %v2564, %v2637
        %2639 = vdwg.mxu0
        %s2640 = scalar_lea.vmem [#allocation3], 96
        %v2641 = vld [vmem:[%s2640] sm:$0xf]
        %v2642 = vld [vmem:[%s2640 + $0x4] sm:$0xf]
        %v2643 = vld [vmem:[%s2640 + $0x8] sm:$0xf]
        %v2644 = vld [vmem:[%s2640 + $0xc] sm:$0xf]
        %v2649 = vunpack.c.l.b16 %v2641
        %v2650 = vunpack.c.l.b16 %v2642
        %v2651 = vunpack.c.l.b16 %v2643
        %v2652 = vunpack.c.l.b16 %v2644
        %v2653 = vpack.c.b16 %v2650, %v2649
        %v2654 = vpack.c.b16 %v2652, %v2651
        %2655 = vrot.lane.b32.xlu0 %v2496, 113
        %v2656 = vpop.permute.xlu0 %2655
        %2657 = vrot.lane.b32.xlu0 %v2497, 113
        %v2658 = vpop.permute.xlu0 %2657
        %2659 = vrot.lane.b32.xlu0 %v2498, 113
        %v2660 = vpop.permute.xlu0 %2659
        %2661 = vrot.lane.b32.xlu0 %v2499, 113
        %v2662 = vpop.permute.xlu0 %2661
        %2663 = vrot.lane.b32.xlu0 %v2500, 113
        %v2664 = vpop.permute.xlu0 %2663
        %2665 = vrot.lane.b32.xlu0 %v2501, 113
        %v2666 = vpop.permute.xlu0 %2665
        %v2667 = vsel %vm895, %v2656, %v2658
        %v2668 = vsel %vm895, %v2658, %v2660
        %v2669 = vsel %vm895, %v2662, %v2664
        %v2670 = vsel %vm895, %v2664, %v2666
        %v2676 = vsel %vm1291, %v2653, 0
        %v2679 = vsel %vm1291, %v2654, 0
        %2681 = vmatpush.bf16.msra.mxu0 0
        %2682 = vmatpush.bf16.msra.mxu0 0
        %2683 = vmatpush.bf16.msra.mxu0 0
        %2684 = vmatpush.bf16.msra.mxu0 0
        %2685 = vmatpush.bf16.msra.mxu0 0
        %2686 = vmatpush.bf16.msra.mxu0 0
        %2687 = vmatpush.bf16.msra.mxu0 %v2669
        %2688 = vmatpush.bf16.msra.mxu0 %v2667
        %2689 = vmatmul.bf16.gmra.mxu0 %v2676
        %v2690 = vpop.f32.mrf.mxu0
        %v2691 = vadd.f32 0.0, %v2690
        %v2692 = vpop.f32.mrf.mxu0
        %v2693 = vadd.f32 0.0, %v2692
        %2694 = vmatmul.bf16.gmra.mxu0 %v2679
        %v2695 = vpop.f32.mrf.mxu0
        %v2696 = vadd.f32 0.0, %v2695
        %v2697 = vpop.f32.mrf.mxu0
        %v2698 = vadd.f32 0.0, %v2697
        %2699 = vdwg.mxu0
        %2700 = vmatpush.bf16.msra.mxu0 0
        %2701 = vmatpush.bf16.msra.mxu0 0
        %2702 = vmatpush.bf16.msra.mxu0 0
        %2703 = vmatpush.bf16.msra.mxu0 0
        %2704 = vmatpush.bf16.msra.mxu0 0
        %2705 = vmatpush.bf16.msra.mxu0 0
        %2706 = vmatpush.bf16.msra.mxu0 %v2670
        %2707 = vmatpush.bf16.msra.mxu0 %v2668
        %2708 = vmatmul.bf16.gmra.mxu0 %v2676
        %v2709 = vpop.f32.mrf.mxu0
        %v2710 = vadd.f32 0.0, %v2709
        %v2711 = vpop.f32.mrf.mxu0
        %v2712 = vadd.f32 0.0, %v2711
        %2713 = vmatmul.bf16.gmra.mxu0 %v2679
        %v2714 = vpop.f32.mrf.mxu0
        %v2715 = vadd.f32 0.0, %v2714
        %v2716 = vpop.f32.mrf.mxu0
        %v2717 = vadd.f32 0.0, %v2716
        %2718 = vdwg.mxu0
        %v2719 = vadd.f32 %v2268, %v2691
        %v2720 = vadd.f32 %v2287, %v2710
        %v2721 = vadd.f32 %v2270, %v2693
        %v2722 = vadd.f32 %v2289, %v2712
        %v2723 = vadd.f32 %v2273, %v2696
        %v2724 = vadd.f32 %v2292, %v2715
        %v2725 = vadd.f32 %v2275, %v2698
        %v2726 = vadd.f32 %v2294, %v2717
        %s2727 = scalar_lea.vmem [#allocation3], 112
        %v2728 = vld [vmem:[%s2727] sm:$0xf]
        %v2729 = vld [vmem:[%s2727 + $0x4] sm:$0xf]
        %v2730 = vld [vmem:[%s2727 + $0x8] sm:$0xf]
        %v2731 = vld [vmem:[%s2727 + $0xc] sm:$0xf]
        %v2736 = vunpack.c.l.b16 %v2728
        %v2737 = vunpack.c.l.b16 %v2729
        %v2738 = vunpack.c.l.b16 %v2730
        %v2739 = vunpack.c.l.b16 %v2731
        %v2740 = vpack.c.b16 %v2737, %v2736
        %v2741 = vpack.c.b16 %v2739, %v2738
        %2742 = vrot.lane.b32.xlu0 %v2496, 112
        %v2743 = vpop.permute.xlu0 %2742
        %2744 = vrot.lane.b32.xlu0 %v2497, 112
        %v2745 = vpop.permute.xlu0 %2744
        %2746 = vrot.lane.b32.xlu0 %v2498, 112
        %v2747 = vpop.permute.xlu0 %2746
        %2748 = vrot.lane.b32.xlu0 %v2499, 112
        %v2749 = vpop.permute.xlu0 %2748
        %2750 = vrot.lane.b32.xlu0 %v2500, 112
        %v2751 = vpop.permute.xlu0 %2750
        %2752 = vrot.lane.b32.xlu0 %v2501, 112
        %v2753 = vpop.permute.xlu0 %2752
        %v2754 = vsel %vm977, %v2743, %v2745
        %v2755 = vsel %vm977, %v2745, %v2747
        %v2756 = vsel %vm977, %v2749, %v2751
        %v2757 = vsel %vm977, %v2751, %v2753
        %v2763 = vsel %vm1291, %v2740, 0
        %v2766 = vsel %vm1291, %v2741, 0
        %2768 = vmatpush.bf16.msra.mxu0 0
        %2769 = vmatpush.bf16.msra.mxu0 0
        %2770 = vmatpush.bf16.msra.mxu0 0
        %2771 = vmatpush.bf16.msra.mxu0 0
        %2772 = vmatpush.bf16.msra.mxu0 0
        %2773 = vmatpush.bf16.msra.mxu0 0
        %2774 = vmatpush.bf16.msra.mxu0 %v2756
        %2775 = vmatpush.bf16.msra.mxu0 %v2754
        %2776 = vmatmul.bf16.gmra.mxu0 %v2763
        %v2777 = vpop.f32.mrf.mxu0
        %v2778 = vadd.f32 0.0, %v2777
        %v2779 = vpop.f32.mrf.mxu0
        %v2780 = vadd.f32 0.0, %v2779
        %2781 = vmatmul.bf16.gmra.mxu0 %v2766
        %v2782 = vpop.f32.mrf.mxu0
        %v2783 = vadd.f32 0.0, %v2782
        %v2784 = vpop.f32.mrf.mxu0
        %v2785 = vadd.f32 0.0, %v2784
        %2786 = vdwg.mxu0
        %2787 = vmatpush.bf16.msra.mxu0 0
        %2788 = vmatpush.bf16.msra.mxu0 0
        %2789 = vmatpush.bf16.msra.mxu0 0
        %2790 = vmatpush.bf16.msra.mxu0 0
        %2791 = vmatpush.bf16.msra.mxu0 0
        %2792 = vmatpush.bf16.msra.mxu0 0
        %2793 = vmatpush.bf16.msra.mxu0 %v2757
        %2794 = vmatpush.bf16.msra.mxu0 %v2755
        %2795 = vmatmul.bf16.gmra.mxu0 %v2763
        %v2796 = vpop.f32.mrf.mxu0
        %v2797 = vadd.f32 0.0, %v2796
        %v2798 = vpop.f32.mrf.mxu0
        %v2799 = vadd.f32 0.0, %v2798
        %2800 = vmatmul.bf16.gmra.mxu0 %v2766
        %v2801 = vpop.f32.mrf.mxu0
        %v2802 = vadd.f32 0.0, %v2801
        %v2803 = vpop.f32.mrf.mxu0
        %v2804 = vadd.f32 0.0, %v2803
        %2805 = vdwg.mxu0
        %v2806 = vadd.f32 %v2425, %v2778
        %v2807 = vadd.f32 %v2444, %v2797
        %v2808 = vadd.f32 %v2427, %v2780
        %v2809 = vadd.f32 %v2446, %v2799
        %v2810 = vadd.f32 %v2430, %v2783
        %v2811 = vadd.f32 %v2449, %v2802
        %v2812 = vadd.f32 %v2432, %v2785
        %v2813 = vadd.f32 %v2451, %v2804
        %s2814 = scalar_lea.vmem [#allocation3], 128
        %v2815 = vld [vmem:[%s2814] sm:$0xf]
        %v2816 = vld [vmem:[%s2814 + $0x4] sm:$0xf]
        %v2817 = vld [vmem:[%s2814 + $0x8] sm:$0xf]
        %v2818 = vld [vmem:[%s2814 + $0xc] sm:$0xf]
        %v2823 = vunpack.c.l.b16 %v2815
        %v2824 = vunpack.c.l.b16 %v2816
        %v2825 = vunpack.c.l.b16 %v2817
        %v2826 = vunpack.c.l.b16 %v2818
        %v2827 = vpack.c.b16 %v2824, %v2823
        %v2828 = vpack.c.b16 %v2826, %v2825
        %2829 = vrot.lane.b32.xlu0 %v2496, 111
        %v2830 = vpop.permute.xlu0 %2829
        %2831 = vrot.lane.b32.xlu0 %v2497, 111
        %v2832 = vpop.permute.xlu0 %2831
        %2833 = vrot.lane.b32.xlu0 %v2498, 111
        %v2834 = vpop.permute.xlu0 %2833
        %2835 = vrot.lane.b32.xlu0 %v2499, 111
        %v2836 = vpop.permute.xlu0 %2835
        %2837 = vrot.lane.b32.xlu0 %v2500, 111
        %v2838 = vpop.permute.xlu0 %2837
        %2839 = vrot.lane.b32.xlu0 %v2501, 111
        %v2840 = vpop.permute.xlu0 %2839
        %v2841 = vsel %vm1059, %v2830, %v2832
        %v2842 = vsel %vm1059, %v2832, %v2834
        %v2843 = vsel %vm1059, %v2836, %v2838
        %v2844 = vsel %vm1059, %v2838, %v2840
        %v2850 = vsel %vm1291, %v2827, 0
        %v2853 = vsel %vm1291, %v2828, 0
        %2855 = vmatpush.bf16.msra.mxu0 0
        %2856 = vmatpush.bf16.msra.mxu0 0
        %2857 = vmatpush.bf16.msra.mxu0 0
        %2858 = vmatpush.bf16.msra.mxu0 0
        %2859 = vmatpush.bf16.msra.mxu0 0
        %2860 = vmatpush.bf16.msra.mxu0 0
        %2861 = vmatpush.bf16.msra.mxu0 %v2843
        %2862 = vmatpush.bf16.msra.mxu0 %v2841
        %2863 = vmatmul.bf16.gmra.mxu0 %v2850
        %v2864 = vpop.f32.mrf.mxu0
        %v2865 = vadd.f32 0.0, %v2864
        %v2866 = vpop.f32.mrf.mxu0
        %v2867 = vadd.f32 0.0, %v2866
        %2868 = vmatmul.bf16.gmra.mxu0 %v2853
        %v2869 = vpop.f32.mrf.mxu0
        %v2870 = vadd.f32 0.0, %v2869
        %v2871 = vpop.f32.mrf.mxu0
        %v2872 = vadd.f32 0.0, %v2871
        %2873 = vdwg.mxu0
        %2874 = vmatpush.bf16.msra.mxu0 0
        %2875 = vmatpush.bf16.msra.mxu0 0
        %2876 = vmatpush.bf16.msra.mxu0 0
        %2877 = vmatpush.bf16.msra.mxu0 0
        %2878 = vmatpush.bf16.msra.mxu0 0
        %2879 = vmatpush.bf16.msra.mxu0 0
        %2880 = vmatpush.bf16.msra.mxu0 %v2844
        %2881 = vmatpush.bf16.msra.mxu0 %v2842
        %2882 = vmatmul.bf16.gmra.mxu0 %v2850
        %v2883 = vpop.f32.mrf.mxu0
        %v2884 = vadd.f32 0.0, %v2883
        %v2885 = vpop.f32.mrf.mxu0
        %v2886 = vadd.f32 0.0, %v2885
        %2887 = vmatmul.bf16.gmra.mxu0 %v2853
        %v2888 = vpop.f32.mrf.mxu0
        %v2889 = vadd.f32 0.0, %v2888
        %v2890 = vpop.f32.mrf.mxu0
        %v2891 = vadd.f32 0.0, %v2890
        %2892 = vdwg.mxu0
        %v2893 = vadd.f32 %v2612, %v2865
        %v2894 = vadd.f32 %v2631, %v2884
        %v2895 = vadd.f32 %v2614, %v2867
        %v2896 = vadd.f32 %v2633, %v2886
        %v2897 = vadd.f32 %v2617, %v2870
        %v2898 = vadd.f32 %v2636, %v2889
        %v2899 = vadd.f32 %v2619, %v2872
        %v2900 = vadd.f32 %v2638, %v2891
        %v2901 = vld [vmem:[%s6] sm:$0xff]
        %v2902 = vld [vmem:[%s6 + $0x8] sm:$0xff]
        %v2903 = vld [vmem:[%s6 + $0x10] sm:$0xff]
        %v2904 = vld [vmem:[%s6 + $0x18] sm:$0xff]
        %2906 = vset.pattern.permute.xlu0 0
        %2907 = vperm.xlu0 %2906, %v2901
        %v2908 = vpop.permute.xlu0 %2907
        %2911 = vset.pattern.permute.xlu0 0
        %2912 = vperm.xlu0 %2911, %v2902
        %v2913 = vpop.permute.xlu0 %2912
        %2916 = vset.pattern.permute.xlu0 0
        %2917 = vperm.xlu0 %2916, %v2903
        %v2918 = vpop.permute.xlu0 %2917
        %2921 = vset.pattern.permute.xlu0 0
        %2922 = vperm.xlu0 %2921, %v2904
        %v2923 = vpop.permute.xlu0 %2922
        %v2925 = vadd.f32 %v2806, %v2908
        %v2926 = vadd.f32 %v2807, %v2908
        %v2927 = vadd.f32 %v2808, %v2913
        %v2928 = vadd.f32 %v2809, %v2913
        %v2929 = vadd.f32 %v2810, %v2918
        %v2930 = vadd.f32 %v2811, %v2918
        %v2931 = vadd.f32 %v2812, %v2923
        %v2932 = vadd.f32 %v2813, %v2923
        %v2933 = vsel %vm1154, %v2719, 0.0
        %v2934 = vsel %vm1155, %v2720, 0.0
        %v2935 = vsel %vm1154, %v2721, 0.0
        %v2936 = vsel %vm1155, %v2722, 0.0
        %v2937 = vsel %vm1154, %v2723, 0.0
        %v2938 = vsel %vm1155, %v2724, 0.0
        %v2939 = vsel %vm1154, %v2725, 0.0
        %v2940 = vsel %vm1155, %v2726, 0.0
        %v2941 = vadd.f32 %v2925, %v2933
        %v2942 = vadd.f32 %v2926, %v2934
        %v2943 = vadd.f32 %v2927, %v2935
        %v2944 = vadd.f32 %v2928, %v2936
        %v2945 = vadd.f32 %v2929, %v2937
        %v2946 = vadd.f32 %v2930, %v2938
        %v2947 = vadd.f32 %v2931, %v2939
        %v2948 = vadd.f32 %v2932, %v2940
        %v2949 = vsel %vm1174, %v2893, 0.0
        %v2950 = vsel %vm1175, %v2894, 0.0
        %v2951 = vsel %vm1174, %v2895, 0.0
        %v2952 = vsel %vm1175, %v2896, 0.0
        %v2953 = vsel %vm1174, %v2897, 0.0
        %v2954 = vsel %vm1175, %v2898, 0.0
        %v2955 = vsel %vm1174, %v2899, 0.0
        %v2956 = vsel %vm1175, %v2900, 0.0
        %v2957 = vadd.f32 %v2941, %v2949
        %v2958 = vadd.f32 %v2942, %v2950
        %v2959 = vadd.f32 %v2943, %v2951
        %v2960 = vadd.f32 %v2944, %v2952
        %v2961 = vadd.f32 %v2945, %v2953
        %v2962 = vadd.f32 %v2946, %v2954
        %v2963 = vadd.f32 %v2947, %v2955
        %v2964 = vadd.f32 %v2948, %v2956
        %v2965 = vmax.f32 %v2957, 0.0
        %v2966 = vmax.f32 %v2958, 0.0
        %v2967 = vmax.f32 %v2959, 0.0
        %v2968 = vmax.f32 %v2960, 0.0
        %v2969 = vmax.f32 %v2961, 0.0
        %v2970 = vmax.f32 %v2962, 0.0
        %v2971 = vmax.f32 %v2963, 0.0
        %v2972 = vmax.f32 %v2964, 0.0
        %v2973 = vpack.c.bf16 %v2966, %v2965
        %v2974 = vpack.c.bf16 %v2968, %v2967
        %v2975 = vpack.c.bf16 %v2970, %v2969
        %v2976 = vpack.c.bf16 %v2972, %v2971
        %2977 = vst [vmem:[#allocation2 + $0x4] sm:$0xff] %v2973
        %2978 = vst [vmem:[#allocation2 + $0x14] sm:$0xff] %v2974
        %2979 = vst [vmem:[#allocation2 + $0x24] sm:$0xff] %v2975
        %2980 = vst [vmem:[#allocation2 + $0x34] sm:$0xff] %v2976
        %v2981 = vld [vmem:[#allocation2] sm:$0xff]
        %v2982 = vld [vmem:[#allocation2 + $0x8] sm:$0xf]
        %v2983 = vld [vmem:[#allocation2 + $0x10] sm:$0xff]
        %v2984 = vld [vmem:[#allocation2 + $0x18] sm:$0xf]
        %v2985 = vld [vmem:[#allocation2 + $0x20] sm:$0xff]
        %v2986 = vld [vmem:[#allocation2 + $0x28] sm:$0xf]
        %v2987 = vld [vmem:[#allocation2 + $0x30] sm:$0xff]
        %v2988 = vld [vmem:[#allocation2 + $0x38] sm:$0xf]
        %v2989 = vld [vmem:[%s7] sm:$0x3]
        %s2990 = scalar_lea.vmem %s7, 2
        %v2991 = vld [vmem:[%s2990] sm:$0x3]
        %s2992 = scalar_lea.vmem %s7, 4
        %v2993 = vld [vmem:[%s2992] sm:$0x3]
        %s2994 = scalar_lea.vmem %s7, 6
        %v2995 = vld [vmem:[%s2994] sm:$0x3]
        %v3004 = vunpack.c.l.b16 %v2981
        %v3005 = vunpack.c.h.b16 %v2981
        %v3006 = vunpack.c.l.b16 %v2982
        %v3007 = vunpack.c.l.b16 %v2983
        %v3008 = vunpack.c.h.b16 %v2983
        %v3009 = vunpack.c.l.b16 %v2984
        %v3010 = vunpack.c.l.b16 %v2985
        %v3011 = vunpack.c.h.b16 %v2985
        %v3012 = vunpack.c.l.b16 %v2986
        %v3013 = vunpack.c.l.b16 %v2987
        %v3014 = vunpack.c.h.b16 %v2987
        %v3015 = vunpack.c.l.b16 %v2988
        %v3016 = vpack.c.b16 %v3007, %v3004
        %v3017 = vpack.c.b16 %v3008, %v3005
        %v3018 = vpack.c.b16 %v3009, %v3006
        %v3019 = vpack.c.b16 %v3013, %v3010
        %v3020 = vpack.c.b16 %v3014, %v3011
        %v3021 = vpack.c.b16 %v3015, %v3012
        %3022 = vrot.lane.b32.xlu0 %v3016, 1
        %v3023 = vpop.permute.xlu0 %3022
        %3024 = vrot.lane.b32.xlu0 %v3017, 1
        %v3025 = vpop.permute.xlu0 %3024
        %3026 = vrot.lane.b32.xlu0 %v3018, 1
        %v3027 = vpop.permute.xlu0 %3026
        %3028 = vrot.lane.b32.xlu0 %v3019, 1
        %v3029 = vpop.permute.xlu0 %3028
        %3030 = vrot.lane.b32.xlu0 %v3020, 1
        %v3031 = vpop.permute.xlu0 %3030
        %3032 = vrot.lane.b32.xlu0 %v3021, 1
        %v3033 = vpop.permute.xlu0 %3032
        %v3034 = vsel %vm454, %v3023, %v3025
        %v3035 = vsel %vm454, %v3025, %v3027
        %v3036 = vsel %vm454, %v3029, %v3031
        %v3037 = vsel %vm454, %v3031, %v3033
        %v3043 = vsel %vm1291, %v2995, 0
        %3045 = vmatpush.bf16.msra.mxu0 0
        %3046 = vmatpush.bf16.msra.mxu0 0
        %3047 = vmatpush.bf16.msra.mxu0 0
        %3048 = vmatpush.bf16.msra.mxu0 0
        %3049 = vmatpush.bf16.msra.mxu0 0
        %3050 = vmatpush.bf16.msra.mxu0 0
        %3051 = vmatpush.bf16.msra.mxu0 %v3036
        %3052 = vmatpush.bf16.msra.mxu0 %v3034
        %3053 = vmatmul.bf16.gmra.mxu0 %v3043
        %v3054 = vpop.f32.mrf.mxu0
        %v3055 = vadd.f32 0.0, %v3054
        %v3056 = vpop.f32.mrf.mxu0
        %3057 = vdwg.mxu0
        %3058 = vmatpush.bf16.msra.mxu0 0
        %3059 = vmatpush.bf16.msra.mxu0 0
        %3060 = vmatpush.bf16.msra.mxu0 0
        %3061 = vmatpush.bf16.msra.mxu0 0
        %3062 = vmatpush.bf16.msra.mxu0 0
        %3063 = vmatpush.bf16.msra.mxu0 0
        %3064 = vmatpush.bf16.msra.mxu0 %v3037
        %3065 = vmatpush.bf16.msra.mxu0 %v3035
        %3066 = vmatmul.bf16.gmra.mxu0 %v3043
        %v3067 = vpop.f32.mrf.mxu0
        %v3068 = vadd.f32 0.0, %v3067
        %v3069 = vpop.f32.mrf.mxu0
        %3070 = vdwg.mxu0
        %3071 = vrot.lane.b32.xlu0 %v3016, 17
        %v3072 = vpop.permute.xlu0 %3071
        %3073 = vrot.lane.b32.xlu0 %v3017, 17
        %v3074 = vpop.permute.xlu0 %3073
        %3075 = vrot.lane.b32.xlu0 %v3018, 17
        %v3076 = vpop.permute.xlu0 %3075
        %3077 = vrot.lane.b32.xlu0 %v3019, 17
        %v3078 = vpop.permute.xlu0 %3077
        %3079 = vrot.lane.b32.xlu0 %v3020, 17
        %v3080 = vpop.permute.xlu0 %3079
        %3081 = vrot.lane.b32.xlu0 %v3021, 17
        %v3082 = vpop.permute.xlu0 %3081
        %v3083 = vsel %vm528, %v3072, %v3074
        %v3084 = vsel %vm528, %v3074, %v3076
        %v3085 = vsel %vm528, %v3078, %v3080
        %v3086 = vsel %vm528, %v3080, %v3082
        %v3092 = vsel %vm1291, %v2989, 0
        %3094 = vmatpush.bf16.msra.mxu0 0
        %3095 = vmatpush.bf16.msra.mxu0 0
        %3096 = vmatpush.bf16.msra.mxu0 0
        %3097 = vmatpush.bf16.msra.mxu0 0
        %3098 = vmatpush.bf16.msra.mxu0 0
        %3099 = vmatpush.bf16.msra.mxu0 0
        %3100 = vmatpush.bf16.msra.mxu0 %v3085
        %3101 = vmatpush.bf16.msra.mxu0 %v3083
        %3102 = vmatmul.bf16.gmra.mxu0 %v3092
        %v3103 = vpop.f32.mrf.mxu0
        %v3104 = vadd.f32 %v3055, %v3103
        %v3105 = vpop.f32.mrf.mxu0
        %3106 = vdwg.mxu0
        %3107 = vmatpush.bf16.msra.mxu0 0
        %3108 = vmatpush.bf16.msra.mxu0 0
        %3109 = vmatpush.bf16.msra.mxu0 0
        %3110 = vmatpush.bf16.msra.mxu0 0
        %3111 = vmatpush.bf16.msra.mxu0 0
        %3112 = vmatpush.bf16.msra.mxu0 0
        %3113 = vmatpush.bf16.msra.mxu0 %v3086
        %3114 = vmatpush.bf16.msra.mxu0 %v3084
        %3115 = vmatmul.bf16.gmra.mxu0 %v3092
        %v3116 = vpop.f32.mrf.mxu0
        %v3117 = vadd.f32 %v3068, %v3116
        %v3118 = vpop.f32.mrf.mxu0
        %3119 = vdwg.mxu0
        %v3120 = vld [vmem:[#allocation2 + $0x4] sm:$0xff]
        %v3121 = vld [vmem:[#allocation2 + $0x14] sm:$0xff]
        %v3122 = vld [vmem:[#allocation2 + $0x24] sm:$0xff]
        %v3123 = vld [vmem:[#allocation2 + $0x34] sm:$0xff]
        %s3124 = scalar_lea.vmem %s7, 8
        %v3125 = vld [vmem:[%s3124] sm:$0x3]
        %v3130 = vunpack.c.l.b16 %v3120
        %v3131 = vunpack.c.h.b16 %v3120
        %v3132 = vunpack.c.l.b16 %v3121
        %v3133 = vunpack.c.h.b16 %v3121
        %v3134 = vunpack.c.l.b16 %v3122
        %v3135 = vunpack.c.h.b16 %v3122
        %v3136 = vunpack.c.l.b16 %v3123
        %v3137 = vunpack.c.h.b16 %v3123
        %v3138 = vpack.c.b16 %v3132, %v3130
        %v3139 = vpack.c.b16 %v3133, %v3131
        %v3140 = vpack.c.b16 %v3136, %v3134
        %v3141 = vpack.c.b16 %v3137, %v3135
        %v3147 = vsel %vm1291, %v3125, 0
        %3149 = vmatpush.bf16.msra.mxu0 0
        %3150 = vmatpush.bf16.msra.mxu0 0
        %3151 = vmatpush.bf16.msra.mxu0 0
        %3152 = vmatpush.bf16.msra.mxu0 0
        %3153 = vmatpush.bf16.msra.mxu0 0
        %3154 = vmatpush.bf16.msra.mxu0 0
        %3155 = vmatpush.bf16.msra.mxu0 %v3140
        %3156 = vmatpush.bf16.msra.mxu0 %v3138
        %3157 = vmatmul.bf16.gmra.mxu0 %v3147
        %v3158 = vpop.f32.mrf.mxu0
        %v3159 = vadd.f32 0.0, %v3158
        %v3160 = vpop.f32.mrf.mxu0
        %3161 = vdwg.mxu0
        %3162 = vmatpush.bf16.msra.mxu0 0
        %3163 = vmatpush.bf16.msra.mxu0 0
        %3164 = vmatpush.bf16.msra.mxu0 0
        %3165 = vmatpush.bf16.msra.mxu0 0
        %3166 = vmatpush.bf16.msra.mxu0 0
        %3167 = vmatpush.bf16.msra.mxu0 0
        %3168 = vmatpush.bf16.msra.mxu0 %v3141
        %3169 = vmatpush.bf16.msra.mxu0 %v3139
        %3170 = vmatmul.bf16.gmra.mxu0 %v3147
        %v3171 = vpop.f32.mrf.mxu0
        %v3172 = vadd.f32 0.0, %v3171
        %v3173 = vpop.f32.mrf.mxu0
        %3174 = vdwg.mxu0
        %3175 = vrot.lane.b32.xlu0 %v3016, 16
        %v3176 = vpop.permute.xlu0 %3175
        %3177 = vrot.lane.b32.xlu0 %v3017, 16
        %v3178 = vpop.permute.xlu0 %3177
        %3179 = vrot.lane.b32.xlu0 %v3018, 16
        %v3180 = vpop.permute.xlu0 %3179
        %3181 = vrot.lane.b32.xlu0 %v3019, 16
        %v3182 = vpop.permute.xlu0 %3181
        %3183 = vrot.lane.b32.xlu0 %v3020, 16
        %v3184 = vpop.permute.xlu0 %3183
        %3185 = vrot.lane.b32.xlu0 %v3021, 16
        %v3186 = vpop.permute.xlu0 %3185
        %v3187 = vsel %vm668, %v3176, %v3178
        %v3188 = vsel %vm668, %v3178, %v3180
        %v3189 = vsel %vm668, %v3182, %v3184
        %v3190 = vsel %vm668, %v3184, %v3186
        %v3196 = vsel %vm1291, %v2991, 0
        %3198 = vmatpush.bf16.msra.mxu0 0
        %3199 = vmatpush.bf16.msra.mxu0 0
        %3200 = vmatpush.bf16.msra.mxu0 0
        %3201 = vmatpush.bf16.msra.mxu0 0
        %3202 = vmatpush.bf16.msra.mxu0 0
        %3203 = vmatpush.bf16.msra.mxu0 0
        %3204 = vmatpush.bf16.msra.mxu0 %v3189
        %3205 = vmatpush.bf16.msra.mxu0 %v3187
        %3206 = vmatmul.bf16.gmra.mxu0 %v3196
        %v3207 = vpop.f32.mrf.mxu0
        %v3208 = vadd.f32 %v3159, %v3207
        %v3209 = vpop.f32.mrf.mxu0
        %3210 = vdwg.mxu0
        %3211 = vmatpush.bf16.msra.mxu0 0
        %3212 = vmatpush.bf16.msra.mxu0 0
        %3213 = vmatpush.bf16.msra.mxu0 0
        %3214 = vmatpush.bf16.msra.mxu0 0
        %3215 = vmatpush.bf16.msra.mxu0 0
        %3216 = vmatpush.bf16.msra.mxu0 0
        %3217 = vmatpush.bf16.msra.mxu0 %v3190
        %3218 = vmatpush.bf16.msra.mxu0 %v3188
        %3219 = vmatmul.bf16.gmra.mxu0 %v3196
        %v3220 = vpop.f32.mrf.mxu0
        %v3221 = vadd.f32 %v3172, %v3220
        %v3222 = vpop.f32.mrf.mxu0
        %3223 = vdwg.mxu0
        %v3224 = vld [vmem:[#allocation2 + $0x4] sm:$0xff]
        %v3225 = vld [vmem:[#allocation2 + $0xc] sm:$0xf]
        %v3226 = vld [vmem:[#allocation2 + $0x14] sm:$0xff]
        %v3227 = vld [vmem:[#allocation2 + $0x1c] sm:$0xf]
        %v3228 = vld [vmem:[#allocation2 + $0x24] sm:$0xff]
        %v3229 = vld [vmem:[#allocation2 + $0x2c] sm:$0xf]
        %v3230 = vld [vmem:[#allocation2 + $0x34] sm:$0xff]
        %v3231 = vld [vmem:[#allocation2 + $0x3c] sm:$0xf]
        %s3232 = scalar_lea.vmem %s7, 10
        %v3233 = vld [vmem:[%s3232] sm:$0x3]
        %v3242 = vunpack.c.l.b16 %v3224
        %v3243 = vunpack.c.h.b16 %v3224
        %v3244 = vunpack.c.l.b16 %v3225
        %v3245 = vunpack.c.l.b16 %v3226
        %v3246 = vunpack.c.h.b16 %v3226
        %v3247 = vunpack.c.l.b16 %v3227
        %v3248 = vunpack.c.l.b16 %v3228
        %v3249 = vunpack.c.h.b16 %v3228
        %v3250 = vunpack.c.l.b16 %v3229
        %v3251 = vunpack.c.l.b16 %v3230
        %v3252 = vunpack.c.h.b16 %v3230
        %v3253 = vunpack.c.l.b16 %v3231
        %v3254 = vpack.c.b16 %v3245, %v3242
        %v3255 = vpack.c.b16 %v3246, %v3243
        %v3256 = vpack.c.b16 %v3247, %v3244
        %v3257 = vpack.c.b16 %v3251, %v3248
        %v3258 = vpack.c.b16 %v3252, %v3249
        %v3259 = vpack.c.b16 %v3253, %v3250
        %3260 = vrot.lane.b32.xlu0 %v3254, 127
        %v3261 = vpop.permute.xlu0 %3260
        %3262 = vrot.lane.b32.xlu0 %v3255, 127
        %v3263 = vpop.permute.xlu0 %3262
        %3264 = vrot.lane.b32.xlu0 %v3256, 127
        %v3265 = vpop.permute.xlu0 %3264
        %3266 = vrot.lane.b32.xlu0 %v3257, 127
        %v3267 = vpop.permute.xlu0 %3266
        %3268 = vrot.lane.b32.xlu0 %v3258, 127
        %v3269 = vpop.permute.xlu0 %3268
        %3270 = vrot.lane.b32.xlu0 %v3259, 127
        %v3271 = vpop.permute.xlu0 %3270
        %v3272 = vsel %vm752, %v3261, %v3263
        %v3273 = vsel %vm752, %v3263, %v3265
        %v3274 = vsel %vm752, %v3267, %v3269
        %v3275 = vsel %vm752, %v3269, %v3271
        %v3281 = vsel %vm1291, %v3233, 0
        %3283 = vmatpush.bf16.msra.mxu0 0
        %3284 = vmatpush.bf16.msra.mxu0 0
        %3285 = vmatpush.bf16.msra.mxu0 0
        %3286 = vmatpush.bf16.msra.mxu0 0
        %3287 = vmatpush.bf16.msra.mxu0 0
        %3288 = vmatpush.bf16.msra.mxu0 0
        %3289 = vmatpush.bf16.msra.mxu0 %v3274
        %3290 = vmatpush.bf16.msra.mxu0 %v3272
        %3291 = vmatmul.bf16.gmra.mxu0 %v3281
        %v3292 = vpop.f32.mrf.mxu0
        %v3293 = vadd.f32 0.0, %v3292
        %v3294 = vpop.f32.mrf.mxu0
        %3295 = vdwg.mxu0
        %3296 = vmatpush.bf16.msra.mxu0 0
        %3297 = vmatpush.bf16.msra.mxu0 0
        %3298 = vmatpush.bf16.msra.mxu0 0
        %3299 = vmatpush.bf16.msra.mxu0 0
        %3300 = vmatpush.bf16.msra.mxu0 0
        %3301 = vmatpush.bf16.msra.mxu0 0
        %3302 = vmatpush.bf16.msra.mxu0 %v3275
        %3303 = vmatpush.bf16.msra.mxu0 %v3273
        %3304 = vmatmul.bf16.gmra.mxu0 %v3281
        %v3305 = vpop.f32.mrf.mxu0
        %v3306 = vadd.f32 0.0, %v3305
        %v3307 = vpop.f32.mrf.mxu0
        %3308 = vdwg.mxu0
        %3309 = vrot.lane.b32.xlu0 %v3016, 15
        %v3310 = vpop.permute.xlu0 %3309
        %3311 = vrot.lane.b32.xlu0 %v3017, 15
        %v3312 = vpop.permute.xlu0 %3311
        %3313 = vrot.lane.b32.xlu0 %v3018, 15
        %v3314 = vpop.permute.xlu0 %3313
        %3315 = vrot.lane.b32.xlu0 %v3019, 15
        %v3316 = vpop.permute.xlu0 %3315
        %3317 = vrot.lane.b32.xlu0 %v3020, 15
        %v3318 = vpop.permute.xlu0 %3317
        %3319 = vrot.lane.b32.xlu0 %v3021, 15
        %v3320 = vpop.permute.xlu0 %3319
        %v3321 = vsel %vm821, %v3310, %v3312
        %v3322 = vsel %vm821, %v3312, %v3314
        %v3323 = vsel %vm821, %v3316, %v3318
        %v3324 = vsel %vm821, %v3318, %v3320
        %v3330 = vsel %vm1291, %v2993, 0
        %3332 = vmatpush.bf16.msra.mxu0 0
        %3333 = vmatpush.bf16.msra.mxu0 0
        %3334 = vmatpush.bf16.msra.mxu0 0
        %3335 = vmatpush.bf16.msra.mxu0 0
        %3336 = vmatpush.bf16.msra.mxu0 0
        %3337 = vmatpush.bf16.msra.mxu0 0
        %3338 = vmatpush.bf16.msra.mxu0 %v3323
        %3339 = vmatpush.bf16.msra.mxu0 %v3321
        %3340 = vmatmul.bf16.gmra.mxu0 %v3330
        %v3341 = vpop.f32.mrf.mxu0
        %v3342 = vadd.f32 %v3293, %v3341
        %v3343 = vpop.f32.mrf.mxu0
        %3344 = vdwg.mxu0
        %3345 = vmatpush.bf16.msra.mxu0 0
        %3346 = vmatpush.bf16.msra.mxu0 0
        %3347 = vmatpush.bf16.msra.mxu0 0
        %3348 = vmatpush.bf16.msra.mxu0 0
        %3349 = vmatpush.bf16.msra.mxu0 0
        %3350 = vmatpush.bf16.msra.mxu0 0
        %3351 = vmatpush.bf16.msra.mxu0 %v3324
        %3352 = vmatpush.bf16.msra.mxu0 %v3322
        %3353 = vmatmul.bf16.gmra.mxu0 %v3330
        %v3354 = vpop.f32.mrf.mxu0
        %v3355 = vadd.f32 %v3306, %v3354
        %v3356 = vpop.f32.mrf.mxu0
        %3357 = vdwg.mxu0
        %s3358 = scalar_lea.vmem %s7, 12
        %v3359 = vld [vmem:[%s3358] sm:$0x3]
        %3360 = vrot.lane.b32.xlu0 %v3254, 113
        %v3361 = vpop.permute.xlu0 %3360
        %3362 = vrot.lane.b32.xlu0 %v3255, 113
        %v3363 = vpop.permute.xlu0 %3362
        %3364 = vrot.lane.b32.xlu0 %v3256, 113
        %v3365 = vpop.permute.xlu0 %3364
        %3366 = vrot.lane.b32.xlu0 %v3257, 113
        %v3367 = vpop.permute.xlu0 %3366
        %3368 = vrot.lane.b32.xlu0 %v3258, 113
        %v3369 = vpop.permute.xlu0 %3368
        %3370 = vrot.lane.b32.xlu0 %v3259, 113
        %v3371 = vpop.permute.xlu0 %3370
        %v3372 = vsel %vm895, %v3361, %v3363
        %v3373 = vsel %vm895, %v3363, %v3365
        %v3374 = vsel %vm895, %v3367, %v3369
        %v3375 = vsel %vm895, %v3369, %v3371
        %v3381 = vsel %vm1291, %v3359, 0
        %3383 = vmatpush.bf16.msra.mxu0 0
        %3384 = vmatpush.bf16.msra.mxu0 0
        %3385 = vmatpush.bf16.msra.mxu0 0
        %3386 = vmatpush.bf16.msra.mxu0 0
        %3387 = vmatpush.bf16.msra.mxu0 0
        %3388 = vmatpush.bf16.msra.mxu0 0
        %3389 = vmatpush.bf16.msra.mxu0 %v3374
        %3390 = vmatpush.bf16.msra.mxu0 %v3372
        %3391 = vmatmul.bf16.gmra.mxu0 %v3381
        %v3392 = vpop.f32.mrf.mxu0
        %v3393 = vadd.f32 0.0, %v3392
        %v3394 = vpop.f32.mrf.mxu0
        %3395 = vdwg.mxu0
        %3396 = vmatpush.bf16.msra.mxu0 0
        %3397 = vmatpush.bf16.msra.mxu0 0
        %3398 = vmatpush.bf16.msra.mxu0 0
        %3399 = vmatpush.bf16.msra.mxu0 0
        %3400 = vmatpush.bf16.msra.mxu0 0
        %3401 = vmatpush.bf16.msra.mxu0 0
        %3402 = vmatpush.bf16.msra.mxu0 %v3375
        %3403 = vmatpush.bf16.msra.mxu0 %v3373
        %3404 = vmatmul.bf16.gmra.mxu0 %v3381
        %v3405 = vpop.f32.mrf.mxu0
        %v3406 = vadd.f32 0.0, %v3405
        %v3407 = vpop.f32.mrf.mxu0
        %3408 = vdwg.mxu0
        %v3409 = vadd.f32 %v3104, %v3393
        %v3410 = vadd.f32 %v3117, %v3406
        %s3411 = scalar_lea.vmem %s7, 14
        %v3412 = vld [vmem:[%s3411] sm:$0x3]
        %3413 = vrot.lane.b32.xlu0 %v3254, 112
        %v3414 = vpop.permute.xlu0 %3413
        %3415 = vrot.lane.b32.xlu0 %v3255, 112
        %v3416 = vpop.permute.xlu0 %3415
        %3417 = vrot.lane.b32.xlu0 %v3256, 112
        %v3418 = vpop.permute.xlu0 %3417
        %3419 = vrot.lane.b32.xlu0 %v3257, 112
        %v3420 = vpop.permute.xlu0 %3419
        %3421 = vrot.lane.b32.xlu0 %v3258, 112
        %v3422 = vpop.permute.xlu0 %3421
        %3423 = vrot.lane.b32.xlu0 %v3259, 112
        %v3424 = vpop.permute.xlu0 %3423
        %v3425 = vsel %vm977, %v3414, %v3416
        %v3426 = vsel %vm977, %v3416, %v3418
        %v3427 = vsel %vm977, %v3420, %v3422
        %v3428 = vsel %vm977, %v3422, %v3424
        %v3434 = vsel %vm1291, %v3412, 0
        %3436 = vmatpush.bf16.msra.mxu0 0
        %3437 = vmatpush.bf16.msra.mxu0 0
        %3438 = vmatpush.bf16.msra.mxu0 0
        %3439 = vmatpush.bf16.msra.mxu0 0
        %3440 = vmatpush.bf16.msra.mxu0 0
        %3441 = vmatpush.bf16.msra.mxu0 0
        %3442 = vmatpush.bf16.msra.mxu0 %v3427
        %3443 = vmatpush.bf16.msra.mxu0 %v3425
        %3444 = vmatmul.bf16.gmra.mxu0 %v3434
        %v3445 = vpop.f32.mrf.mxu0
        %v3446 = vadd.f32 0.0, %v3445
        %v3447 = vpop.f32.mrf.mxu0
        %3448 = vdwg.mxu0
        %3449 = vmatpush.bf16.msra.mxu0 0
        %3450 = vmatpush.bf16.msra.mxu0 0
        %3451 = vmatpush.bf16.msra.mxu0 0
        %3452 = vmatpush.bf16.msra.mxu0 0
        %3453 = vmatpush.bf16.msra.mxu0 0
        %3454 = vmatpush.bf16.msra.mxu0 0
        %3455 = vmatpush.bf16.msra.mxu0 %v3428
        %3456 = vmatpush.bf16.msra.mxu0 %v3426
        %3457 = vmatmul.bf16.gmra.mxu0 %v3434
        %v3458 = vpop.f32.mrf.mxu0
        %v3459 = vadd.f32 0.0, %v3458
        %v3460 = vpop.f32.mrf.mxu0
        %3461 = vdwg.mxu0
        %v3462 = vadd.f32 %v3208, %v3446
        %v3463 = vadd.f32 %v3221, %v3459
        %s3464 = scalar_lea.vmem %s7, 16
        %v3465 = vld [vmem:[%s3464] sm:$0x3]
        %3466 = vrot.lane.b32.xlu0 %v3254, 111
        %v3467 = vpop.permute.xlu0 %3466
        %3468 = vrot.lane.b32.xlu0 %v3255, 111
        %v3469 = vpop.permute.xlu0 %3468
        %3470 = vrot.lane.b32.xlu0 %v3256, 111
        %v3471 = vpop.permute.xlu0 %3470
        %3472 = vrot.lane.b32.xlu0 %v3257, 111
        %v3473 = vpop.permute.xlu0 %3472
        %3474 = vrot.lane.b32.xlu0 %v3258, 111
        %v3475 = vpop.permute.xlu0 %3474
        %3476 = vrot.lane.b32.xlu0 %v3259, 111
        %v3477 = vpop.permute.xlu0 %3476
        %v3478 = vsel %vm1059, %v3467, %v3469
        %v3479 = vsel %vm1059, %v3469, %v3471
        %v3480 = vsel %vm1059, %v3473, %v3475
        %v3481 = vsel %vm1059, %v3475, %v3477
        %v3487 = vsel %vm1291, %v3465, 0
        %3489 = vmatpush.bf16.msra.mxu0 0
        %3490 = vmatpush.bf16.msra.mxu0 0
        %3491 = vmatpush.bf16.msra.mxu0 0
        %3492 = vmatpush.bf16.msra.mxu0 0
        %3493 = vmatpush.bf16.msra.mxu0 0
        %3494 = vmatpush.bf16.msra.mxu0 0
        %3495 = vmatpush.bf16.msra.mxu0 %v3480
        %3496 = vmatpush.bf16.msra.mxu0 %v3478
        %3497 = vmatmul.bf16.gmra.mxu0 %v3487
        %v3498 = vpop.f32.mrf.mxu0
        %v3499 = vadd.f32 0.0, %v3498
        %v3500 = vpop.f32.mrf.mxu0
        %3501 = vdwg.mxu0
        %3502 = vmatpush.bf16.msra.mxu0 0
        %3503 = vmatpush.bf16.msra.mxu0 0
        %3504 = vmatpush.bf16.msra.mxu0 0
        %3505 = vmatpush.bf16.msra.mxu0 0
        %3506 = vmatpush.bf16.msra.mxu0 0
        %3507 = vmatpush.bf16.msra.mxu0 0
        %3508 = vmatpush.bf16.msra.mxu0 %v3481
        %3509 = vmatpush.bf16.msra.mxu0 %v3479
        %3510 = vmatmul.bf16.gmra.mxu0 %v3487
        %v3511 = vpop.f32.mrf.mxu0
        %v3512 = vadd.f32 0.0, %v3511
        %v3513 = vpop.f32.mrf.mxu0
        %3514 = vdwg.mxu0
        %v3515 = vadd.f32 %v3342, %v3499
        %v3516 = vadd.f32 %v3355, %v3512
        %v3517 = vld [vmem:[%s8] sm:$0x7]
        %3519 = vset.pattern.permute.xlu0 0
        %3520 = vperm.xlu0 %3519, %v3517
        %v3521 = vpop.permute.xlu0 %3520
        %v3523 = vadd.f32 %v3462, %v3521
        %v3524 = vadd.f32 %v3463, %v3521
        %v3525 = vsel %vm1154, %v3409, 0.0
        %v3526 = vsel %vm1155, %v3410, 0.0
        %v3527 = vadd.f32 %v3523, %v3525
        %v3528 = vadd.f32 %v3524, %v3526
        %v3529 = vsel %vm1174, %v3515, 0.0
        %v3530 = vsel %vm1175, %v3516, 0.0
        %v3531 = vadd.f32 %v3527, %v3529
        %v3532 = vadd.f32 %v3528, %v3530
        %v3533 = vld [vmem:[%s344] sm:$0x77]
        %v3536 = vrot.slane %v3532, 4
        %vm3537 = vcmask 1043456
        %v3538 = vsel %vm3537, %v3531, %v3536
        %v3540 = vadd.f32 %v3533, %v3538
        %3541 = vst [vmem:[%s349] sm:$0x77] %v3540
        %p3542 = scmp.lt.s32.totalorder %s21, 1
        %s3543 = scalar_select %p3542, %s21, 1
        %s3544 = smul.addr %s3543, 2
        %s3545 = smul.addr %s3544, 4
        %s3546 = scalar_lea.vmem %s9, %s3545
        // Predicated region
        $region61: #{tpu_custom_call.1} parent=55 // pred_check
          %p3547 = pneg %p233
        $region62: #{tpu_custom_call.1} parent=55 // pred_check_branch
          %3549 = sbr.rel (%p3547) target = $region64
        $region63: #{tpu_custom_call.1} parent=55 // pred_region
          _
        $region64: #{tpu_custom_call.1} parent=55 // pred_fallthru
          _
      $region56: #{tpu_custom_call.1} parent=5 // pred_fallthru
        _
      %p3550 = scmp.le.s32.totalorder 2, %s16
      // Predicated region
      $region65: #{tpu_custom_call.1} parent=5 // pred_check
        %p3551 = pneg %p3550
      $region66: #{tpu_custom_call.1} parent=5 // pred_check_branch
        %3553 = sbr.rel (%p3551) target = $region68
      $region67: #{tpu_custom_call.1} parent=5 // pred_region
        %s3554 = ssub.s32 %s16, 2
        // Predicated region
        $region69: #{tpu_custom_call.1} parent=67 // pred_check
          %p3555 = pneg %p239
        $region70: #{tpu_custom_call.1} parent=67 // pred_check_branch
          %3557 = sbr.rel (%p3555) target = $region72
        $region71: #{tpu_custom_call.1} parent=67 // pred_region
          %p3558 = scmp.lt.s32.totalorder %s22, 1
          %s3559 = scalar_select %p3558, %s22, 1
          %s3560 = smul.addr %s3559, 2
          %s3561 = smul.addr %s3560, 4
          %s3562 = scalar_lea.vmem %s9, %s3561
        $region72: #{tpu_custom_call.1} parent=67 // pred_fallthru
          _
      $region68: #{tpu_custom_call.1} parent=5 // pred_fallthru
        _
    $region6: #{tpu_custom_call.1} parent=1 // loop_footer
      %s20 = sadd.s32 1, %s16
    $region7: #{tpu_custom_call.1} parent=1 // loop_footer_branch
      %15 = sbr.rel target = $region3
    $region8: #{tpu_custom_call.1} parent=1 // loop_exit
      _
    %3563 = vsyncpa [#allocation4], 1
    %s3564 = scalar_lea.sflag [#allocation4], 1
    %3565 = vsyncpa %s3564, 1

</llo_original>
